<compile_context>
chip_gen: v6e
topology: v6e:2x2x1
jax: 0.10.0
libtpu: 0.0.40
codegen_flags: <defaults>
</compile_context>

<pallas_src>
import jax
import jax.numpy as jnp
from jax.experimental import pallas as pl
from jax.experimental.pallas import tpu as pltpu

IN_DIM = 3 * 32 * 32   # 3072
H1_DIM = 256
H2_DIM = 128
OUT_DIM = 10
OUT_PAD = 128          # lane-dense padded output width


def _round_up(x, m):
    return ((x + m - 1) // m) * m


def mlp_kernel(x_ref, w1_ref, b1_ref, w2_ref, b2_ref, w3_ref, b3_ref, o_ref):
    # Cast the f32 activation tile to bf16 in VMEM (VPU pass, hidden under the
    # x DMA) so the MXU runs at its native bf16 rate with f32 accumulation.
    x = x_ref[...].astype(jnp.bfloat16)
    # fc1 + ReLU
    h1 = jnp.dot(x, w1_ref[...], preferred_element_type=jnp.float32) + b1_ref[...]
    h1 = jnp.maximum(h1, 0.0).astype(jnp.bfloat16)
    # fc2 + ReLU
    h2 = jnp.dot(h1, w2_ref[...], preferred_element_type=jnp.float32) + b2_ref[...]
    h2 = jnp.maximum(h2, 0.0).astype(jnp.bfloat16)
    # out (no activation), padded to 128 lanes, stored bf16 (lane-dense vst)
    o_ref[...] = (
        jnp.dot(h2, w3_ref[...], preferred_element_type=jnp.float32) + b3_ref[...]
    ).astype(o_ref.dtype)


def _tile_config(B):
    """Pick the batch tile and VMEM limit from the chip's VMEM capacity."""
    try:
        vmem_bytes = pltpu.get_tpu_info().vmem_capacity_bytes
    except Exception:
        vmem_bytes = 64 << 20  # conservative fallback (v7x per-TC figure)
    if vmem_bytes >= (100 << 20):
        # v5e / v6e: 128 MiB physical VMEM. f32-x double buffer = TM*24 KiB.
        tm_max, vmem_limit = 2048, 96 << 20   # ~54 MiB total at TM=2048
    else:
        # v7x: 64 MiB per TensorCore.
        tm_max, vmem_limit = 1024, 48 << 20   # ~30 MiB total at TM=1024
    # Target at least 2 grid steps so the "parallel" batch axis shards across
    # both TensorCores on v7x (one extra ~0.35us step elsewhere: negligible);
    # round to a multiple of 16 for bf16 sublane packing.
    tm = min(tm_max, max(16, _round_up((B + 1) // 2, 16)))
    return tm, vmem_limit


def classifier_forward(x_nchw, params):
    """x_nchw: (B, 3, 32, 32) float. Returns logits (B, 10) in float32."""
    B = x_nchw.shape[0]
    w1, b1, w2, b2, w3, b3 = params  # w*: bf16 (in,out); b*: f32 (1,out); layer3 padded to 128

    # Flatten exactly like torch .view(B, -1); NO wrapper-side cast or pad —
    # the kernel casts in VMEM and the cdiv grid handles the ragged edge.
    x_flat = x_nchw.reshape(B, -1)

    TM, vmem_limit = _tile_config(B)
    grid = (pl.cdiv(B, TM),)

    flops = 2 * B * (IN_DIM * H1_DIM + H1_DIM * H2_DIM + H2_DIM * OUT_PAD)
    bytes_accessed = (
        B * IN_DIM * x_flat.dtype.itemsize                              # x (native dtype)
        + (IN_DIM * H1_DIM + H1_DIM * H2_DIM + H2_DIM * OUT_PAD) * 2    # bf16 weights
        + (H1_DIM + H2_DIM + OUT_PAD) * 4                               # f32 biases
        + B * OUT_PAD * 2                                               # bf16 logits
    )

    out = pl.pallas_call(
        mlp_kernel,
        out_shape=jax.ShapeDtypeStruct((B, OUT_PAD), jnp.bfloat16),
        grid_spec=pltpu.PrefetchScalarGridSpec(
            num_scalar_prefetch=0,
            grid=grid,
            in_specs=[
                pl.BlockSpec((TM, IN_DIM), lambda i: (i, 0)),        # x tile (streamed)
                pl.BlockSpec((IN_DIM, H1_DIM), lambda i: (0, 0)),    # w1 (resident)
                pl.BlockSpec((1, H1_DIM), lambda i: (0, 0)),         # b1 (resident)
                pl.BlockSpec((H1_DIM, H2_DIM), lambda i: (0, 0)),    # w2 (resident)
                pl.BlockSpec((1, H2_DIM), lambda i: (0, 0)),         # b2 (resident)
                pl.BlockSpec((H2_DIM, OUT_PAD), lambda i: (0, 0)),   # w3 (resident, padded)
                pl.BlockSpec((1, OUT_PAD), lambda i: (0, 0)),        # b3 (resident, padded)
            ],
            out_specs=pl.BlockSpec((TM, OUT_PAD), lambda i: (i, 0)),
        ),
        compiler_params=pltpu.CompilerParams(
            dimension_semantics=("parallel",),
            vmem_limit_bytes=vmem_limit,
        ),
        cost_estimate=pl.CostEstimate(
            flops=flops, transcendentals=0, bytes_accessed=bytes_accessed
        ),
    )(x_flat, w1, b1, w2, b2, w3, b3)

    # Drop padded logit columns; return f32 like the torch module (tiny cast
    # on a (B, 10) slice — negligible vs. halved HBM writes of the bf16 store).
    return out[:, :OUT_DIM].astype(jnp.float32)


def init_params(key):
    """Deterministic init matching nn.Linear shapes, stored transposed (in, out).

    Weights are bf16 (halves HBM traffic, native MXU rate); biases stay f32.
    Layer 3 is zero-padded 10 -> 128 output columns for lane-dense stores.
    """
    dims = [(IN_DIM, H1_DIM), (H1_DIM, H2_DIM), (H2_DIM, OUT_DIM)]
    params = []
    for i, (fan_in, fan_out) in enumerate(dims):
        kw, kb, key = jax.random.split(jax.random.fold_in(key, i), 3)
        bound = 1.0 / (fan_in ** 0.5)  # PyTorch Linear default uniform bound
        w = jax.random.uniform(kw, (fan_in, fan_out), jnp.float32, -bound, bound)
        b = jax.random.uniform(kb, (1, fan_out), jnp.float32, -bound, bound)
        if fan_out == OUT_DIM:  # pad final layer to 128 lanes
            w = jnp.pad(w, ((0, 0), (0, OUT_PAD - OUT_DIM)))
            b = jnp.pad(b, ((0, 0), (0, OUT_PAD - OUT_DIM)))
        params += [w.astype(jnp.bfloat16), b.astype(jnp.float32)]
    return tuple(params)


def reference_forward(x_nchw, params):
    """Plain-JAX reference mirroring the kernel's bf16-in / f32-accum scheme."""
    w1, b1, w2, b2, w3, b3 = params
    f32 = jnp.float32
    x = x_nchw.reshape(x_nchw.shape[0], -1).astype(jnp.bfloat16).astype(f32)
    h1 = jnp.maximum(x @ w1.astype(f32) + b1, 0.0).astype(jnp.bfloat16).astype(f32)
    h2 = jnp.maximum(h1 @ w2.astype(f32) + b2, 0.0).astype(jnp.bfloat16).astype(f32)
    return (h2 @ w3.astype(f32) + b3)[:, :OUT_DIM]


if __name__ == "__main__":
    key = jax.random.PRNGKey(0)
    kx, kp = jax.random.split(key)

    # Small batch, CIFAR10-shaped input (B, 3, 32, 32) in NCHW, float32.
    B = 2
    x = jax.random.normal(kx, (B, 3, 32, 32), jnp.float32)
    params = init_params(kp)

    logits = classifier_forward(x, params)
    jax.block_until_ready(logits)

    ref = reference_forward(x, params)
    assert logits.shape == (B, OUT_DIM)
    assert jnp.allclose(logits, ref, atol=2e-2, rtol=2e-2), (
        float(jnp.max(jnp.abs(logits - ref)))
    )

    print("KERNEL_OK")
</pallas_src>

<mosaic_0001>
module attributes {stable_mosaic.version = 11 : i64} {
  func.func @mlp_kernel(%arg0: i32, %arg1: memref<16x3072xf32, #tpu.memory_space<vmem>>, %arg2: memref<3072x256xbf16, #tpu.memory_space<vmem>>, %arg3: memref<1x256xf32, #tpu.memory_space<vmem>>, %arg4: memref<256x128xbf16, #tpu.memory_space<vmem>>, %arg5: memref<1x128xf32, #tpu.memory_space<vmem>>, %arg6: memref<128x128xbf16, #tpu.memory_space<vmem>>, %arg7: memref<1x128xf32, #tpu.memory_space<vmem>>, %arg8: memref<16x128xbf16, #tpu.memory_space<vmem>>) attributes {dimension_semantics = [#tpu.dimension_semantics<parallel>], iteration_bounds = array<i64: 1>, scalar_prefetch = 0 : i64, scratch_operands = 0 : i64, tpu.core_type = #tpu.core_type<tc>, window_params = [{transform_indices = @transform_0, window_bounds = array<i64: 16, 3072>}, {pipeline_mode = #tpu.pipeline_mode<synchronous>, transform_indices = @transform_1, window_bounds = array<i64: 3072, 256>}, {pipeline_mode = #tpu.pipeline_mode<synchronous>, transform_indices = @transform_2, window_bounds = array<i64: 1, 256>}, {pipeline_mode = #tpu.pipeline_mode<synchronous>, transform_indices = @transform_3, window_bounds = array<i64: 256, 128>}, {pipeline_mode = #tpu.pipeline_mode<synchronous>, transform_indices = @transform_4, window_bounds = array<i64: 1, 128>}, {pipeline_mode = #tpu.pipeline_mode<synchronous>, transform_indices = @transform_5, window_bounds = array<i64: 128, 128>}, {pipeline_mode = #tpu.pipeline_mode<synchronous>, transform_indices = @transform_6, window_bounds = array<i64: 1, 128>}, {transform_indices = @transform_7, window_bounds = array<i64: 16, 128>}]} {
    %c0 = arith.constant 0 : index
    %c0_0 = arith.constant 0 : index
    %0 = vector.load %arg1[%c0, %c0_0] : memref<16x3072xf32, #tpu.memory_space<vmem>>, vector<16x3072xf32>
    %1 = arith.truncf %0 : vector<16x3072xf32> to vector<16x3072xbf16>
    %c0_1 = arith.constant 0 : index
    %c0_2 = arith.constant 0 : index
    %2 = vector.load %arg2[%c0_1, %c0_2] : memref<3072x256xbf16, #tpu.memory_space<vmem>>, vector<3072x256xbf16>
    %cst = arith.constant dense<0.000000e+00> : vector<16x256xf32>
    %3 = tpu.matmul %1, %2, %cst {dimension_numbers = #tpu.dot_dimension_numbers<[1], [0], [0], [1], [0, 0, 1, 1], [], []>} : vector<16x3072xbf16>, vector<3072x256xbf16>, vector<16x256xf32> -> vector<16x256xf32>
    %c0_3 = arith.constant 0 : index
    %c0_4 = arith.constant 0 : index
    %4 = vector.load %arg3[%c0_3, %c0_4] : memref<1x256xf32, #tpu.memory_space<vmem>>, vector<1x256xf32>
    %5 = vector.broadcast %4 : vector<1x256xf32> to vector<16x256xf32>
    %6 = arith.addf %3, %5 : vector<16x256xf32>
    %cst_5 = arith.constant 0.000000e+00 : f32
    %7 = vector.broadcast %cst_5 : f32 to vector<16x256xf32>
    %8 = arith.maximumf %6, %7 : vector<16x256xf32>
    %9 = arith.truncf %8 : vector<16x256xf32> to vector<16x256xbf16>
    %c0_6 = arith.constant 0 : index
    %c0_7 = arith.constant 0 : index
    %10 = vector.load %arg4[%c0_6, %c0_7] : memref<256x128xbf16, #tpu.memory_space<vmem>>, vector<256x128xbf16>
    %cst_8 = arith.constant dense<0.000000e+00> : vector<16x128xf32>
    %11 = tpu.matmul %9, %10, %cst_8 {dimension_numbers = #tpu.dot_dimension_numbers<[1], [0], [0], [1], [0, 0, 1, 1], [], []>} : vector<16x256xbf16>, vector<256x128xbf16>, vector<16x128xf32> -> vector<16x128xf32>
    %c0_9 = arith.constant 0 : index
    %c0_10 = arith.constant 0 : index
    %12 = vector.load %arg5[%c0_9, %c0_10] : memref<1x128xf32, #tpu.memory_space<vmem>>, vector<1x128xf32>
    %13 = vector.broadcast %12 : vector<1x128xf32> to vector<16x128xf32>
    %14 = arith.addf %11, %13 : vector<16x128xf32>
    %cst_11 = arith.constant 0.000000e+00 : f32
    %15 = vector.broadcast %cst_11 : f32 to vector<16x128xf32>
    %16 = arith.maximumf %14, %15 : vector<16x128xf32>
    %17 = arith.truncf %16 : vector<16x128xf32> to vector<16x128xbf16>
    %c0_12 = arith.constant 0 : index
    %c0_13 = arith.constant 0 : index
    %18 = vector.load %arg6[%c0_12, %c0_13] : memref<128x128xbf16, #tpu.memory_space<vmem>>, vector<128x128xbf16>
    %cst_14 = arith.constant dense<0.000000e+00> : vector<16x128xf32>
    %19 = tpu.matmul %17, %18, %cst_14 {dimension_numbers = #tpu.dot_dimension_numbers<[1], [0], [0], [1], [0, 0, 1, 1], [], []>} : vector<16x128xbf16>, vector<128x128xbf16>, vector<16x128xf32> -> vector<16x128xf32>
    %c0_15 = arith.constant 0 : index
    %c0_16 = arith.constant 0 : index
    %20 = vector.load %arg7[%c0_15, %c0_16] : memref<1x128xf32, #tpu.memory_space<vmem>>, vector<1x128xf32>
    %21 = vector.broadcast %20 : vector<1x128xf32> to vector<16x128xf32>
    %22 = arith.addf %19, %21 : vector<16x128xf32>
    %23 = arith.truncf %22 : vector<16x128xf32> to vector<16x128xbf16>
    %c0_17 = arith.constant 0 : index
    %c0_18 = arith.constant 0 : index
    %24 = vector.load %arg8[%c0_17, %c0_18] : memref<16x128xbf16, #tpu.memory_space<vmem>>, vector<16x128xbf16>
    tpu.vector_store %arg8[%c0_17, %c0_18], %23 {strides = array<i32>} : memref<16x128xbf16, #tpu.memory_space<vmem>>, vector<16x128xbf16>,
    return
  }
  func.func @transform_0(%arg0: i32) -> (i32, i32) {
    %c0_i32 = arith.constant 0 : i32
    %c0_i32_0 = arith.constant 0 : i32
    return %arg0, %c0_i32 : i32, i32
  }
  func.func @transform_1(%arg0: i32) -> (i32, i32) {
    %c0_i32 = arith.constant 0 : i32
    %c0_i32_0 = arith.constant 0 : i32
    %c0_i32_1 = arith.constant 0 : i32
    return %c0_i32, %c0_i32_0 : i32, i32
  }
  func.func @transform_2(%arg0: i32) -> (i32, i32) {
    %c0_i32 = arith.constant 0 : i32
    %c0_i32_0 = arith.constant 0 : i32
    %c0_i32_1 = arith.constant 0 : i32
    return %c0_i32, %c0_i32_0 : i32, i32
  }
  func.func @transform_3(%arg0: i32) -> (i32, i32) {
    %c0_i32 = arith.constant 0 : i32
    %c0_i32_0 = arith.constant 0 : i32
    %c0_i32_1 = arith.constant 0 : i32
    return %c0_i32, %c0_i32_0 : i32, i32
  }
  func.func @transform_4(%arg0: i32) -> (i32, i32) {
    %c0_i32 = arith.constant 0 : i32
    %c0_i32_0 = arith.constant 0 : i32
    %c0_i32_1 = arith.constant 0 : i32
    return %c0_i32, %c0_i32_0 : i32, i32
  }
  func.func @transform_5(%arg0: i32) -> (i32, i32) {
    %c0_i32 = arith.constant 0 : i32
    %c0_i32_0 = arith.constant 0 : i32
    %c0_i32_1 = arith.constant 0 : i32
    return %c0_i32, %c0_i32_0 : i32, i32
  }
  func.func @transform_6(%arg0: i32) -> (i32, i32) {
    %c0_i32 = arith.constant 0 : i32
    %c0_i32_0 = arith.constant 0 : i32
    %c0_i32_1 = arith.constant 0 : i32
    return %c0_i32, %c0_i32_0 : i32, i32
  }
  func.func @transform_7(%arg0: i32) -> (i32, i32) {
    %c0_i32 = arith.constant 0 : i32
    %c0_i32_0 = arith.constant 0 : i32
    return %arg0, %c0_i32 : i32, i32
  }
}

</mosaic_0001>

<llo_original>
// kernel: tpu_custom_call.1
$region0: #{tpu_custom_call.1}
  #allocation0 [shape = 'u32[]', space=smem, size = 0x4, offset = 0x4, fixed_abs, tag = 'smem constant byte address 0x4 - core index']
  #allocation1 [shape = 'u32[144,128]{1,0:T(1,128)}', space=vmem, size = 0x12000, scoped, tag = 'internal scratch']
  %s0 = inlined_call_operand.hbm [shape: f32[2,3072], index: 0, kind: input, shape index: {}]
  %s1 = inlined_call_operand.hbm [shape: bf16[3072,256], index: 1, kind: input, shape index: {}]
  %s2 = inlined_call_operand.hbm [shape: f32[1,256], index: 2, kind: input, shape index: {}]
  %s3 = inlined_call_operand.hbm [shape: bf16[256,128], index: 3, kind: input, shape index: {}]
  %s4 = inlined_call_operand.hbm [shape: f32[1,128], index: 4, kind: input, shape index: {}]
  %s5 = inlined_call_operand.hbm [shape: bf16[128,128], index: 5, kind: input, shape index: {}]
  %s6 = inlined_call_operand.hbm [shape: f32[1,128], index: 6, kind: input, shape index: {}]
  %s7 = inlined_call_operand.hbm [shape: bf16[2,128], index: 7, kind: output, shape index: {}]
  %s8 = sld [smem:[#allocation0]]
  $region66: #{tpu_custom_call.1} parent=0
    _
  %s10 = ssub.s32 1, %s8
  %s11 = scalar_select 0, %s10, %s8
  $region1: #{tpu_custom_call.1} parent=0
    #allocation2 [shape = 'u8[196608]{0}', space=vmem, size = 0x30000, scoped, tag = 'input window, operand 0, single buffered']
    #allocation3 [shape = 's32[1]{0}', space=sflag, size = 0x4, scoped, tag = 'scoped memory for tpu_custom_call.1']
    #allocation4 [shape = 's32[1]{0}', space=sflag, size = 0x4, scoped, tag = 'scoped memory for tpu_custom_call.1']
    #allocation5 [shape = 'u8[1572864]{0}', space=vmem, size = 0x180000, scoped, tag = 'input window, operand 1, single buffered']
    #allocation6 [shape = 's32[1]{0}', space=sflag, size = 0x4, scoped, tag = 'scoped memory for tpu_custom_call.1']
    #allocation7 [shape = 'u8[1024]{0}', space=vmem, size = 0x400, scoped, tag = 'input window, operand 2, single buffered']
    #allocation8 [shape = 'u8[65536]{0}', space=vmem, size = 0x10000, scoped, tag = 'input window, operand 3, single buffered']
    #allocation9 [shape = 's32[1]{0}', space=sflag, size = 0x4, scoped, tag = 'scoped memory for tpu_custom_call.1']
    #allocation10 [shape = 'u8[512]{0}', space=vmem, size = 0x400, scoped, tag = 'input window, operand 4, single buffered']
    #allocation11 [shape = 'u8[32768]{0}', space=vmem, size = 0x8000, scoped, tag = 'input window, operand 5, single buffered']
    #allocation12 [shape = 's32[1]{0}', space=sflag, size = 0x4, scoped, tag = 'scoped memory for tpu_custom_call.1']
    #allocation13 [shape = 'u8[512]{0}', space=vmem, size = 0x400, scoped, tag = 'input window, operand 6, single buffered']
    #allocation14 [shape = 'u8[4096]{0}', space=vmem, size = 0x1000, scoped, tag = 'output window, operand 0, single buffered']
    %12 = vsyncpa [#allocation3], 0
    %13 = vsyncpa [#allocation6], 0
    %14 = vsyncpa [#allocation9], 0
    %15 = vsyncpa [#allocation12], 0
    %16 = vsyncpa [#allocation4], 0
    // Predicated region
    $region2: #{tpu_custom_call.1} parent=1 // pred_check
      _
    $region3: #{tpu_custom_call.1} parent=1 // pred_check_branch
      %18 = sbr.rel (0) target = $region5
    $region4: #{tpu_custom_call.1} parent=1 // pred_region
      %s20 = ssub.s32 6144, 768
      %21 = vsyncadd [#allocation3], %s20
      %s22 = sshll.u32 [#allocation2], 4
      %s23 = int_to_ptr.vmem [resolvable:$true] %s22
      %28 = dma.hbm_to_vmem [thread:$0]  %s0, 768, %s23, [#allocation3], 768, 768, 48
    $region5: #{tpu_custom_call.1} parent=1 // pred_fallthru
      _
    // Predicated region
    $region6: #{tpu_custom_call.1} parent=1 // pred_check
      _
    $region7: #{tpu_custom_call.1} parent=1 // pred_check_branch
      %30 = sbr.rel (0) target = $region9
    $region8: #{tpu_custom_call.1} parent=1 // pred_region
      %s32 = ssub.s32 49152, 49152
      %33 = vsyncadd [#allocation6], %s32
      %s34 = sshll.u32 [#allocation5], 4
      %s35 = int_to_ptr.vmem [resolvable:$true] %s34
      %40 = dma.hbm_to_vmem [thread:$0]  %s1, 49152, %s35, [#allocation6], 128, 128, 8
    $region9: #{tpu_custom_call.1} parent=1 // pred_fallthru
      _
    // Predicated region
    $region10: #{tpu_custom_call.1} parent=1 // pred_check
      _
    $region11: #{tpu_custom_call.1} parent=1 // pred_check_branch
      %42 = sbr.rel (0) target = $region13
    $region12: #{tpu_custom_call.1} parent=1 // pred_region
      %s44 = ssub.s32 32, 32
      %45 = vsyncadd [#allocation6], %s44
      %s47 = sshll.u32 [#allocation7], 4
      %s48 = int_to_ptr.vmem [resolvable:$true] %s47
      %50 = dma.hbm_to_vmem [thread:$0]  %s2, 32, %s48, [#allocation6]
    $region13: #{tpu_custom_call.1} parent=1 // pred_fallthru
      _
    // Predicated region
    $region14: #{tpu_custom_call.1} parent=1 // pred_check
      _
    $region15: #{tpu_custom_call.1} parent=1 // pred_check_branch
      %52 = sbr.rel (0) target = $region17
    $region16: #{tpu_custom_call.1} parent=1 // pred_region
      %s54 = ssub.s32 2048, 2048
      %55 = vsyncadd [#allocation9], %s54
      %s56 = sshll.u32 [#allocation8], 4
      %s57 = int_to_ptr.vmem [resolvable:$true] %s56
      %62 = dma.hbm_to_vmem [thread:$0]  %s3, 2048, %s57, [#allocation9], 64, 64, 4
    $region17: #{tpu_custom_call.1} parent=1 // pred_fallthru
      _
    // Predicated region
    $region18: #{tpu_custom_call.1} parent=1 // pred_check
      _
    $region19: #{tpu_custom_call.1} parent=1 // pred_check_branch
      %64 = sbr.rel (0) target = $region21
    $region20: #{tpu_custom_call.1} parent=1 // pred_region
      %s66 = ssub.s32 16, 16
      %67 = vsyncadd [#allocation9], %s66
      %s69 = sshll.u32 [#allocation10], 4
      %s70 = int_to_ptr.vmem [resolvable:$true] %s69
      %72 = dma.hbm_to_vmem [thread:$0]  %s4, 16, %s70, [#allocation9]
    $region21: #{tpu_custom_call.1} parent=1 // pred_fallthru
      _
    // Predicated region
    $region22: #{tpu_custom_call.1} parent=1 // pred_check
      _
    $region23: #{tpu_custom_call.1} parent=1 // pred_check_branch
      %74 = sbr.rel (0) target = $region25
    $region24: #{tpu_custom_call.1} parent=1 // pred_region
      %s76 = ssub.s32 1024, 1024
      %77 = vsyncadd [#allocation12], %s76
      %s78 = sshll.u32 [#allocation11], 4
      %s79 = int_to_ptr.vmem [resolvable:$true] %s78
      %84 = dma.hbm_to_vmem [thread:$0]  %s5, 1024, %s79, [#allocation12], 64, 64, 4
    $region25: #{tpu_custom_call.1} parent=1 // pred_fallthru
      _
    // Predicated region
    $region26: #{tpu_custom_call.1} parent=1 // pred_check
      _
    $region27: #{tpu_custom_call.1} parent=1 // pred_check_branch
      %86 = sbr.rel (0) target = $region29
    $region28: #{tpu_custom_call.1} parent=1 // pred_region
      %s88 = ssub.s32 16, 16
      %89 = vsyncadd [#allocation12], %s88
      %s91 = sshll.u32 [#allocation13], 4
      %s92 = int_to_ptr.vmem [resolvable:$true] %s91
      %94 = dma.hbm_to_vmem [thread:$0]  %s6, 16, %s92, [#allocation12]
    $region29: #{tpu_custom_call.1} parent=1 // pred_fallthru
      _
    // Predicated region
    $region30: #{tpu_custom_call.1} parent=1 // pred_check
      _
    $region31: #{tpu_custom_call.1} parent=1 // pred_check_branch
      %96 = sbr.rel (0) target = $region33
    $region32: #{tpu_custom_call.1} parent=1 // pred_region
      %97 = dma.done [#allocation3], 6144
    $region33: #{tpu_custom_call.1} parent=1 // pred_fallthru
      _
    // Predicated region
    $region34: #{tpu_custom_call.1} parent=1 // pred_check
      _
    $region35: #{tpu_custom_call.1} parent=1 // pred_check_branch
      %99 = sbr.rel (0) target = $region37
    $region36: #{tpu_custom_call.1} parent=1 // pred_region
      %100 = dma.done [#allocation6], 49152
    $region37: #{tpu_custom_call.1} parent=1 // pred_fallthru
      _
    // Predicated region
    $region38: #{tpu_custom_call.1} parent=1 // pred_check
      _
    $region39: #{tpu_custom_call.1} parent=1 // pred_check_branch
      %102 = sbr.rel (0) target = $region41
    $region40: #{tpu_custom_call.1} parent=1 // pred_region
      %103 = dma.done [#allocation6], 32
    $region41: #{tpu_custom_call.1} parent=1 // pred_fallthru
      _
    // Predicated region
    $region42: #{tpu_custom_call.1} parent=1 // pred_check
      _
    $region43: #{tpu_custom_call.1} parent=1 // pred_check_branch
      %105 = sbr.rel (0) target = $region45
    $region44: #{tpu_custom_call.1} parent=1 // pred_region
      %106 = dma.done [#allocation9], 2048
    $region45: #{tpu_custom_call.1} parent=1 // pred_fallthru
      _
    // Predicated region
    $region46: #{tpu_custom_call.1} parent=1 // pred_check
      _
    $region47: #{tpu_custom_call.1} parent=1 // pred_check_branch
      %108 = sbr.rel (0) target = $region49
    $region48: #{tpu_custom_call.1} parent=1 // pred_region
      %109 = dma.done [#allocation9], 16
    $region49: #{tpu_custom_call.1} parent=1 // pred_fallthru
      _
    // Predicated region
    $region50: #{tpu_custom_call.1} parent=1 // pred_check
      _
    $region51: #{tpu_custom_call.1} parent=1 // pred_check_branch
      %111 = sbr.rel (0) target = $region53
    $region52: #{tpu_custom_call.1} parent=1 // pred_region
      %112 = dma.done [#allocation12], 1024
    $region53: #{tpu_custom_call.1} parent=1 // pred_fallthru
      _
    // Predicated region
    $region54: #{tpu_custom_call.1} parent=1 // pred_check
      _
    $region55: #{tpu_custom_call.1} parent=1 // pred_check_branch
      %114 = sbr.rel (0) target = $region57
    $region56: #{tpu_custom_call.1} parent=1 // pred_region
      %115 = dma.done [#allocation12], 16
    $region57: #{tpu_custom_call.1} parent=1 // pred_fallthru
      _
    %v117 = vld [vmem:[#allocation2] sm:$0xff]
    %v118 = vld [vmem:[#allocation2 + $0x8] sm:$0xff]
    %v119 = vld [vmem:[#allocation2 + $0x10] sm:$0xff]
    %v120 = vld [vmem:[#allocation2 + $0x18] sm:$0xff]
    %v121 = vld [vmem:[#allocation2 + $0x20] sm:$0xff]
    %v122 = vld [vmem:[#allocation2 + $0x28] sm:$0xff]
    %v123 = vld [vmem:[#allocation2 + $0x30] sm:$0xff]
    %v124 = vld [vmem:[#allocation2 + $0x38] sm:$0xff]
    %v125 = vld [vmem:[#allocation2 + $0x40] sm:$0xff]
    %v126 = vld [vmem:[#allocation2 + $0x48] sm:$0xff]
    %v127 = vld [vmem:[#allocation2 + $0x50] sm:$0xff]
    %v128 = vld [vmem:[#allocation2 + $0x58] sm:$0xff]
    %v129 = vld [vmem:[#allocation2 + $0x60] sm:$0xff]
    %v130 = vld [vmem:[#allocation2 + $0x68] sm:$0xff]
    %v131 = vld [vmem:[#allocation2 + $0x70] sm:$0xff]
    %v132 = vld [vmem:[#allocation2 + $0x78] sm:$0xff]
    %v133 = vld [vmem:[#allocation2 + $0x80] sm:$0xff]
    %v134 = vld [vmem:[#allocation2 + $0x88] sm:$0xff]
    %v135 = vld [vmem:[#allocation2 + $0x90] sm:$0xff]
    %v136 = vld [vmem:[#allocation2 + $0x98] sm:$0xff]
    %v137 = vld [vmem:[#allocation2 + $0xa0] sm:$0xff]
    %v138 = vld [vmem:[#allocation2 + $0xa8] sm:$0xff]
    %v139 = vld [vmem:[#allocation2 + $0xb0] sm:$0xff]
    %v140 = vld [vmem:[#allocation2 + $0xb8] sm:$0xff]
    %v141 = vld [vmem:[#allocation2 + $0xc0] sm:$0xff]
    %v142 = vld [vmem:[#allocation2 + $0xc8] sm:$0xff]
    %v143 = vld [vmem:[#allocation2 + $0xd0] sm:$0xff]
    %v144 = vld [vmem:[#allocation2 + $0xd8] sm:$0xff]
    %v145 = vld [vmem:[#allocation2 + $0xe0] sm:$0xff]
    %v146 = vld [vmem:[#allocation2 + $0xe8] sm:$0xff]
    %v147 = vld [vmem:[#allocation2 + $0xf0] sm:$0xff]
    %v148 = vld [vmem:[#allocation2 + $0xf8] sm:$0xff]
    %v149 = vld [vmem:[#allocation2 + $0x100] sm:$0xff]
    %v150 = vld [vmem:[#allocation2 + $0x108] sm:$0xff]
    %v151 = vld [vmem:[#allocation2 + $0x110] sm:$0xff]
    %v152 = vld [vmem:[#allocation2 + $0x118] sm:$0xff]
    %v153 = vld [vmem:[#allocation2 + $0x120] sm:$0xff]
    %v154 = vld [vmem:[#allocation2 + $0x128] sm:$0xff]
    %v155 = vld [vmem:[#allocation2 + $0x130] sm:$0xff]
    %v156 = vld [vmem:[#allocation2 + $0x138] sm:$0xff]
    %v157 = vld [vmem:[#allocation2 + $0x140] sm:$0xff]
    %v158 = vld [vmem:[#allocation2 + $0x148] sm:$0xff]
    %v159 = vld [vmem:[#allocation2 + $0x150] sm:$0xff]
    %v160 = vld [vmem:[#allocation2 + $0x158] sm:$0xff]
    %v161 = vld [vmem:[#allocation2 + $0x160] sm:$0xff]
    %v162 = vld [vmem:[#allocation2 + $0x168] sm:$0xff]
    %v163 = vld [vmem:[#allocation2 + $0x170] sm:$0xff]
    %v164 = vld [vmem:[#allocation2 + $0x178] sm:$0xff]
    %v213 = vcombine.low %v117, %v123
    %v214 = vcombine.high %v117, %v123
    %v215 = vcombine.low %v129, %v135
    %v216 = vcombine.high %v129, %v135
    %v218 = vunpack.c.l.s4 1983009808
    %v219 = vunpack.c.0.s8 %v218
    %v220 = vlaneseq
    %v221 = vshrl.u32 %v220, 7
    %v222 = vsub.s32 %v219, %v221
    %v223 = vrot.slane %v213, %v222
    %v225 = vunpack.c.l.s4 1983009808
    %v226 = vunpack.c.0.s8 %v225
    %v227 = vlaneseq
    %v228 = vshrl.u32 %v227, 7
    %v229 = vsub.s32 %v226, %v228
    %v230 = vrot.slane %v214, %v229
    %v232 = vunpack.c.l.s4 1983009808
    %v233 = vunpack.c.0.s8 %v232
    %v234 = vlaneseq
    %v235 = vshrl.u32 %v234, 7
    %v236 = vsub.s32 %v233, %v235
    %v237 = vrot.slane %v215, %v236
    %v239 = vunpack.c.l.s4 1983009808
    %v240 = vunpack.c.0.s8 %v239
    %v241 = vlaneseq
    %v242 = vshrl.u32 %v241, 7
    %v243 = vsub.s32 %v240, %v242
    %v244 = vrot.slane %v216, %v243
    %v245 = vcombine.low %v223, %v237
    %v246 = vcombine.high %v223, %v237
    %v247 = vcombine.low %v230, %v244
    %v248 = vcombine.high %v230, %v244
    %v249 = vcombine.low %v118, %v124
    %v250 = vcombine.high %v118, %v124
    %v251 = vcombine.low %v130, %v136
    %v252 = vcombine.high %v130, %v136
    %v254 = vunpack.c.l.s4 1983009808
    %v255 = vunpack.c.0.s8 %v254
    %v256 = vlaneseq
    %v257 = vshrl.u32 %v256, 7
    %v258 = vsub.s32 %v255, %v257
    %v259 = vrot.slane %v249, %v258
    %v261 = vunpack.c.l.s4 1983009808
    %v262 = vunpack.c.0.s8 %v261
    %v263 = vlaneseq
    %v264 = vshrl.u32 %v263, 7
    %v265 = vsub.s32 %v262, %v264
    %v266 = vrot.slane %v250, %v265
    %v268 = vunpack.c.l.s4 1983009808
    %v269 = vunpack.c.0.s8 %v268
    %v270 = vlaneseq
    %v271 = vshrl.u32 %v270, 7
    %v272 = vsub.s32 %v269, %v271
    %v273 = vrot.slane %v251, %v272
    %v275 = vunpack.c.l.s4 1983009808
    %v276 = vunpack.c.0.s8 %v275
    %v277 = vlaneseq
    %v278 = vshrl.u32 %v277, 7
    %v279 = vsub.s32 %v276, %v278
    %v280 = vrot.slane %v252, %v279
    %v281 = vcombine.low %v259, %v273
    %v282 = vcombine.high %v259, %v273
    %v283 = vcombine.low %v266, %v280
    %v284 = vcombine.high %v266, %v280
    %v285 = vcombine.low %v119, %v125
    %v286 = vcombine.high %v119, %v125
    %v287 = vcombine.low %v131, %v137
    %v288 = vcombine.high %v131, %v137
    %v290 = vunpack.c.l.s4 1983009808
    %v291 = vunpack.c.0.s8 %v290
    %v292 = vlaneseq
    %v293 = vshrl.u32 %v292, 7
    %v294 = vsub.s32 %v291, %v293
    %v295 = vrot.slane %v285, %v294
    %v297 = vunpack.c.l.s4 1983009808
    %v298 = vunpack.c.0.s8 %v297
    %v299 = vlaneseq
    %v300 = vshrl.u32 %v299, 7
    %v301 = vsub.s32 %v298, %v300
    %v302 = vrot.slane %v286, %v301
    %v304 = vunpack.c.l.s4 1983009808
    %v305 = vunpack.c.0.s8 %v304
    %v306 = vlaneseq
    %v307 = vshrl.u32 %v306, 7
    %v308 = vsub.s32 %v305, %v307
    %v309 = vrot.slane %v287, %v308
    %v311 = vunpack.c.l.s4 1983009808
    %v312 = vunpack.c.0.s8 %v311
    %v313 = vlaneseq
    %v314 = vshrl.u32 %v313, 7
    %v315 = vsub.s32 %v312, %v314
    %v316 = vrot.slane %v288, %v315
    %v317 = vcombine.low %v295, %v309
    %v318 = vcombine.high %v295, %v309
    %v319 = vcombine.low %v302, %v316
    %v320 = vcombine.high %v302, %v316
    %v321 = vcombine.low %v120, %v126
    %v322 = vcombine.high %v120, %v126
    %v323 = vcombine.low %v132, %v138
    %v324 = vcombine.high %v132, %v138
    %v326 = vunpack.c.l.s4 1983009808
    %v327 = vunpack.c.0.s8 %v326
    %v328 = vlaneseq
    %v329 = vshrl.u32 %v328, 7
    %v330 = vsub.s32 %v327, %v329
    %v331 = vrot.slane %v321, %v330
    %v333 = vunpack.c.l.s4 1983009808
    %v334 = vunpack.c.0.s8 %v333
    %v335 = vlaneseq
    %v336 = vshrl.u32 %v335, 7
    %v337 = vsub.s32 %v334, %v336
    %v338 = vrot.slane %v322, %v337
    %v340 = vunpack.c.l.s4 1983009808
    %v341 = vunpack.c.0.s8 %v340
    %v342 = vlaneseq
    %v343 = vshrl.u32 %v342, 7
    %v344 = vsub.s32 %v341, %v343
    %v345 = vrot.slane %v323, %v344
    %v347 = vunpack.c.l.s4 1983009808
    %v348 = vunpack.c.0.s8 %v347
    %v349 = vlaneseq
    %v350 = vshrl.u32 %v349, 7
    %v351 = vsub.s32 %v348, %v350
    %v352 = vrot.slane %v324, %v351
    %v353 = vcombine.low %v331, %v345
    %v354 = vcombine.high %v331, %v345
    %v355 = vcombine.low %v338, %v352
    %v356 = vcombine.high %v338, %v352
    %v357 = vcombine.low %v121, %v127
    %v358 = vcombine.high %v121, %v127
    %v359 = vcombine.low %v133, %v139
    %v360 = vcombine.high %v133, %v139
    %v362 = vunpack.c.l.s4 1983009808
    %v363 = vunpack.c.0.s8 %v362
    %v364 = vlaneseq
    %v365 = vshrl.u32 %v364, 7
    %v366 = vsub.s32 %v363, %v365
    %v367 = vrot.slane %v357, %v366
    %v369 = vunpack.c.l.s4 1983009808
    %v370 = vunpack.c.0.s8 %v369
    %v371 = vlaneseq
    %v372 = vshrl.u32 %v371, 7
    %v373 = vsub.s32 %v370, %v372
    %v374 = vrot.slane %v358, %v373
    %v376 = vunpack.c.l.s4 1983009808
    %v377 = vunpack.c.0.s8 %v376
    %v378 = vlaneseq
    %v379 = vshrl.u32 %v378, 7
    %v380 = vsub.s32 %v377, %v379
    %v381 = vrot.slane %v359, %v380
    %v383 = vunpack.c.l.s4 1983009808
    %v384 = vunpack.c.0.s8 %v383
    %v385 = vlaneseq
    %v386 = vshrl.u32 %v385, 7
    %v387 = vsub.s32 %v384, %v386
    %v388 = vrot.slane %v360, %v387
    %v389 = vcombine.low %v367, %v381
    %v390 = vcombine.high %v367, %v381
    %v391 = vcombine.low %v374, %v388
    %v392 = vcombine.high %v374, %v388
    %v393 = vcombine.low %v122, %v128
    %v394 = vcombine.high %v122, %v128
    %v395 = vcombine.low %v134, %v140
    %v396 = vcombine.high %v134, %v140
    %v398 = vunpack.c.l.s4 1983009808
    %v399 = vunpack.c.0.s8 %v398
    %v400 = vlaneseq
    %v401 = vshrl.u32 %v400, 7
    %v402 = vsub.s32 %v399, %v401
    %v403 = vrot.slane %v393, %v402
    %v405 = vunpack.c.l.s4 1983009808
    %v406 = vunpack.c.0.s8 %v405
    %v407 = vlaneseq
    %v408 = vshrl.u32 %v407, 7
    %v409 = vsub.s32 %v406, %v408
    %v410 = vrot.slane %v394, %v409
    %v412 = vunpack.c.l.s4 1983009808
    %v413 = vunpack.c.0.s8 %v412
    %v414 = vlaneseq
    %v415 = vshrl.u32 %v414, 7
    %v416 = vsub.s32 %v413, %v415
    %v417 = vrot.slane %v395, %v416
    %v419 = vunpack.c.l.s4 1983009808
    %v420 = vunpack.c.0.s8 %v419
    %v421 = vlaneseq
    %v422 = vshrl.u32 %v421, 7
    %v423 = vsub.s32 %v420, %v422
    %v424 = vrot.slane %v396, %v423
    %v425 = vcombine.low %v403, %v417
    %v426 = vcombine.high %v403, %v417
    %v427 = vcombine.low %v410, %v424
    %v428 = vcombine.high %v410, %v424
    %v429 = vcombine.low %v141, %v147
    %v430 = vcombine.high %v141, %v147
    %v431 = vcombine.low %v153, %v159
    %v432 = vcombine.high %v153, %v159
    %v434 = vunpack.c.l.s4 1983009808
    %v435 = vunpack.c.0.s8 %v434
    %v436 = vlaneseq
    %v437 = vshrl.u32 %v436, 7
    %v438 = vsub.s32 %v435, %v437
    %v439 = vrot.slane %v429, %v438
    %v441 = vunpack.c.l.s4 1983009808
    %v442 = vunpack.c.0.s8 %v441
    %v443 = vlaneseq
    %v444 = vshrl.u32 %v443, 7
    %v445 = vsub.s32 %v442, %v444
    %v446 = vrot.slane %v430, %v445
    %v448 = vunpack.c.l.s4 1983009808
    %v449 = vunpack.c.0.s8 %v448
    %v450 = vlaneseq
    %v451 = vshrl.u32 %v450, 7
    %v452 = vsub.s32 %v449, %v451
    %v453 = vrot.slane %v431, %v452
    %v455 = vunpack.c.l.s4 1983009808
    %v456 = vunpack.c.0.s8 %v455
    %v457 = vlaneseq
    %v458 = vshrl.u32 %v457, 7
    %v459 = vsub.s32 %v456, %v458
    %v460 = vrot.slane %v432, %v459
    %v461 = vcombine.low %v439, %v453
    %v462 = vcombine.high %v439, %v453
    %v463 = vcombine.low %v446, %v460
    %v464 = vcombine.high %v446, %v460
    %v465 = vcombine.low %v142, %v148
    %v466 = vcombine.high %v142, %v148
    %v467 = vcombine.low %v154, %v160
    %v468 = vcombine.high %v154, %v160
    %v470 = vunpack.c.l.s4 1983009808
    %v471 = vunpack.c.0.s8 %v470
    %v472 = vlaneseq
    %v473 = vshrl.u32 %v472, 7
    %v474 = vsub.s32 %v471, %v473
    %v475 = vrot.slane %v465, %v474
    %v477 = vunpack.c.l.s4 1983009808
    %v478 = vunpack.c.0.s8 %v477
    %v479 = vlaneseq
    %v480 = vshrl.u32 %v479, 7
    %v481 = vsub.s32 %v478, %v480
    %v482 = vrot.slane %v466, %v481
    %v484 = vunpack.c.l.s4 1983009808
    %v485 = vunpack.c.0.s8 %v484
    %v486 = vlaneseq
    %v487 = vshrl.u32 %v486, 7
    %v488 = vsub.s32 %v485, %v487
    %v489 = vrot.slane %v467, %v488
    %v491 = vunpack.c.l.s4 1983009808
    %v492 = vunpack.c.0.s8 %v491
    %v493 = vlaneseq
    %v494 = vshrl.u32 %v493, 7
    %v495 = vsub.s32 %v492, %v494
    %v496 = vrot.slane %v468, %v495
    %v497 = vcombine.low %v475, %v489
    %v498 = vcombine.high %v475, %v489
    %v499 = vcombine.low %v482, %v496
    %v500 = vcombine.high %v482, %v496
    %v501 = vcombine.low %v143, %v149
    %v502 = vcombine.high %v143, %v149
    %v503 = vcombine.low %v155, %v161
    %v504 = vcombine.high %v155, %v161
    %v506 = vunpack.c.l.s4 1983009808
    %v507 = vunpack.c.0.s8 %v506
    %v508 = vlaneseq
    %v509 = vshrl.u32 %v508, 7
    %v510 = vsub.s32 %v507, %v509
    %v511 = vrot.slane %v501, %v510
    %v513 = vunpack.c.l.s4 1983009808
    %v514 = vunpack.c.0.s8 %v513
    %v515 = vlaneseq
    %v516 = vshrl.u32 %v515, 7
    %v517 = vsub.s32 %v514, %v516
    %v518 = vrot.slane %v502, %v517
    %v520 = vunpack.c.l.s4 1983009808
    %v521 = vunpack.c.0.s8 %v520
    %v522 = vlaneseq
    %v523 = vshrl.u32 %v522, 7
    %v524 = vsub.s32 %v521, %v523
    %v525 = vrot.slane %v503, %v524
    %v527 = vunpack.c.l.s4 1983009808
    %v528 = vunpack.c.0.s8 %v527
    %v529 = vlaneseq
    %v530 = vshrl.u32 %v529, 7
    %v531 = vsub.s32 %v528, %v530
    %v532 = vrot.slane %v504, %v531
    %v533 = vcombine.low %v511, %v525
    %v534 = vcombine.high %v511, %v525
    %v535 = vcombine.low %v518, %v532
    %v536 = vcombine.high %v518, %v532
    %v537 = vcombine.low %v144, %v150
    %v538 = vcombine.high %v144, %v150
    %v539 = vcombine.low %v156, %v162
    %v540 = vcombine.high %v156, %v162
    %v542 = vunpack.c.l.s4 1983009808
    %v543 = vunpack.c.0.s8 %v542
    %v544 = vlaneseq
    %v545 = vshrl.u32 %v544, 7
    %v546 = vsub.s32 %v543, %v545
    %v547 = vrot.slane %v537, %v546
    %v549 = vunpack.c.l.s4 1983009808
    %v550 = vunpack.c.0.s8 %v549
    %v551 = vlaneseq
    %v552 = vshrl.u32 %v551, 7
    %v553 = vsub.s32 %v550, %v552
    %v554 = vrot.slane %v538, %v553
    %v556 = vunpack.c.l.s4 1983009808
    %v557 = vunpack.c.0.s8 %v556
    %v558 = vlaneseq
    %v559 = vshrl.u32 %v558, 7
    %v560 = vsub.s32 %v557, %v559
    %v561 = vrot.slane %v539, %v560
    %v563 = vunpack.c.l.s4 1983009808
    %v564 = vunpack.c.0.s8 %v563
    %v565 = vlaneseq
    %v566 = vshrl.u32 %v565, 7
    %v567 = vsub.s32 %v564, %v566
    %v568 = vrot.slane %v540, %v567
    %v569 = vcombine.low %v547, %v561
    %v570 = vcombine.high %v547, %v561
    %v571 = vcombine.low %v554, %v568
    %v572 = vcombine.high %v554, %v568
    %v573 = vcombine.low %v145, %v151
    %v574 = vcombine.high %v145, %v151
    %v575 = vcombine.low %v157, %v163
    %v576 = vcombine.high %v157, %v163
    %v578 = vunpack.c.l.s4 1983009808
    %v579 = vunpack.c.0.s8 %v578
    %v580 = vlaneseq
    %v581 = vshrl.u32 %v580, 7
    %v582 = vsub.s32 %v579, %v581
    %v583 = vrot.slane %v573, %v582
    %v585 = vunpack.c.l.s4 1983009808
    %v586 = vunpack.c.0.s8 %v585
    %v587 = vlaneseq
    %v588 = vshrl.u32 %v587, 7
    %v589 = vsub.s32 %v586, %v588
    %v590 = vrot.slane %v574, %v589
    %v592 = vunpack.c.l.s4 1983009808
    %v593 = vunpack.c.0.s8 %v592
    %v594 = vlaneseq
    %v595 = vshrl.u32 %v594, 7
    %v596 = vsub.s32 %v593, %v595
    %v597 = vrot.slane %v575, %v596
    %v599 = vunpack.c.l.s4 1983009808
    %v600 = vunpack.c.0.s8 %v599
    %v601 = vlaneseq
    %v602 = vshrl.u32 %v601, 7
    %v603 = vsub.s32 %v600, %v602
    %v604 = vrot.slane %v576, %v603
    %v605 = vcombine.low %v583, %v597
    %v606 = vcombine.high %v583, %v597
    %v607 = vcombine.low %v590, %v604
    %v608 = vcombine.high %v590, %v604
    %v609 = vcombine.low %v146, %v152
    %v610 = vcombine.high %v146, %v152
    %v611 = vcombine.low %v158, %v164
    %v612 = vcombine.high %v158, %v164
    %v614 = vunpack.c.l.s4 1983009808
    %v615 = vunpack.c.0.s8 %v614
    %v616 = vlaneseq
    %v617 = vshrl.u32 %v616, 7
    %v618 = vsub.s32 %v615, %v617
    %v619 = vrot.slane %v609, %v618
    %v621 = vunpack.c.l.s4 1983009808
    %v622 = vunpack.c.0.s8 %v621
    %v623 = vlaneseq
    %v624 = vshrl.u32 %v623, 7
    %v625 = vsub.s32 %v622, %v624
    %v626 = vrot.slane %v610, %v625
    %v628 = vunpack.c.l.s4 1983009808
    %v629 = vunpack.c.0.s8 %v628
    %v630 = vlaneseq
    %v631 = vshrl.u32 %v630, 7
    %v632 = vsub.s32 %v629, %v631
    %v633 = vrot.slane %v611, %v632
    %v635 = vunpack.c.l.s4 1983009808
    %v636 = vunpack.c.0.s8 %v635
    %v637 = vlaneseq
    %v638 = vshrl.u32 %v637, 7
    %v639 = vsub.s32 %v636, %v638
    %v640 = vrot.slane %v612, %v639
    %v641 = vcombine.low %v619, %v633
    %v642 = vcombine.high %v619, %v633
    %v643 = vcombine.low %v626, %v640
    %v644 = vcombine.high %v626, %v640
    %v693 = vpack.c.bf16 %v461, %v245
    %v694 = vpack.c.bf16 %v462, %v246
    %v695 = vpack.c.bf16 %v463, %v247
    %v696 = vpack.c.bf16 %v464, %v248
    %v697 = vpack.c.bf16 %v497, %v281
    %v698 = vpack.c.bf16 %v498, %v282
    %v699 = vpack.c.bf16 %v499, %v283
    %v700 = vpack.c.bf16 %v500, %v284
    %v701 = vpack.c.bf16 %v533, %v317
    %v702 = vpack.c.bf16 %v534, %v318
    %v703 = vpack.c.bf16 %v535, %v319
    %v704 = vpack.c.bf16 %v536, %v320
    %v705 = vpack.c.bf16 %v569, %v353
    %v706 = vpack.c.bf16 %v570, %v354
    %v707 = vpack.c.bf16 %v571, %v355
    %v708 = vpack.c.bf16 %v572, %v356
    %v709 = vpack.c.bf16 %v605, %v389
    %v710 = vpack.c.bf16 %v606, %v390
    %v711 = vpack.c.bf16 %v607, %v391
    %v712 = vpack.c.bf16 %v608, %v392
    %v713 = vpack.c.bf16 %v641, %v425
    %v714 = vpack.c.bf16 %v642, %v426
    %v715 = vpack.c.bf16 %v643, %v427
    %v716 = vpack.c.bf16 %v644, %v428
    %v717 = vld [vmem:[#allocation5] sm:$0xff]
    %v718 = vld [vmem:[#allocation5 + $0x8] sm:$0xff]
    %v719 = vld [vmem:[#allocation5 + $0x10] sm:$0xff]
    %v720 = vld [vmem:[#allocation5 + $0x18] sm:$0xff]
    %v721 = vld [vmem:[#allocation5 + $0x20] sm:$0xff]
    %v722 = vld [vmem:[#allocation5 + $0x28] sm:$0xff]
    %v723 = vld [vmem:[#allocation5 + $0x30] sm:$0xff]
    %v724 = vld [vmem:[#allocation5 + $0x38] sm:$0xff]
    %v725 = vld [vmem:[#allocation5 + $0x40] sm:$0xff]
    %v726 = vld [vmem:[#allocation5 + $0x48] sm:$0xff]
    %v727 = vld [vmem:[#allocation5 + $0x50] sm:$0xff]
    %v728 = vld [vmem:[#allocation5 + $0x58] sm:$0xff]
    %v729 = vld [vmem:[#allocation5 + $0x60] sm:$0xff]
    %v730 = vld [vmem:[#allocation5 + $0x68] sm:$0xff]
    %v731 = vld [vmem:[#allocation5 + $0x70] sm:$0xff]
    %v732 = vld [vmem:[#allocation5 + $0x78] sm:$0xff]
    %v733 = vld [vmem:[#allocation5 + $0x80] sm:$0xff]
    %v734 = vld [vmem:[#allocation5 + $0x88] sm:$0xff]
    %v735 = vld [vmem:[#allocation5 + $0x90] sm:$0xff]
    %v736 = vld [vmem:[#allocation5 + $0x98] sm:$0xff]
    %v737 = vld [vmem:[#allocation5 + $0xa0] sm:$0xff]
    %v738 = vld [vmem:[#allocation5 + $0xa8] sm:$0xff]
    %v739 = vld [vmem:[#allocation5 + $0xb0] sm:$0xff]
    %v740 = vld [vmem:[#allocation5 + $0xb8] sm:$0xff]
    %v741 = vld [vmem:[#allocation5 + $0xc0] sm:$0xff]
    %v742 = vld [vmem:[#allocation5 + $0xc8] sm:$0xff]
    %v743 = vld [vmem:[#allocation5 + $0xd0] sm:$0xff]
    %v744 = vld [vmem:[#allocation5 + $0xd8] sm:$0xff]
    %v745 = vld [vmem:[#allocation5 + $0xe0] sm:$0xff]
    %v746 = vld [vmem:[#allocation5 + $0xe8] sm:$0xff]
    %v747 = vld [vmem:[#allocation5 + $0xf0] sm:$0xff]
    %v748 = vld [vmem:[#allocation5 + $0xf8] sm:$0xff]
    %v749 = vld [vmem:[#allocation5 + $0x100] sm:$0xff]
    %v750 = vld [vmem:[#allocation5 + $0x108] sm:$0xff]
    %v751 = vld [vmem:[#allocation5 + $0x110] sm:$0xff]
    %v752 = vld [vmem:[#allocation5 + $0x118] sm:$0xff]
    %v753 = vld [vmem:[#allocation5 + $0x120] sm:$0xff]
    %v754 = vld [vmem:[#allocation5 + $0x128] sm:$0xff]
    %v755 = vld [vmem:[#allocation5 + $0x130] sm:$0xff]
    %v756 = vld [vmem:[#allocation5 + $0x138] sm:$0xff]
    %v757 = vld [vmem:[#allocation5 + $0x140] sm:$0xff]
    %v758 = vld [vmem:[#allocation5 + $0x148] sm:$0xff]
    %v759 = vld [vmem:[#allocation5 + $0x150] sm:$0xff]
    %v760 = vld [vmem:[#allocation5 + $0x158] sm:$0xff]
    %v761 = vld [vmem:[#allocation5 + $0x160] sm:$0xff]
    %v762 = vld [vmem:[#allocation5 + $0x168] sm:$0xff]
    %v763 = vld [vmem:[#allocation5 + $0x170] sm:$0xff]
    %v764 = vld [vmem:[#allocation5 + $0x178] sm:$0xff]
    %v765 = vld [vmem:[#allocation5 + $0x180] sm:$0xff]
    %v766 = vld [vmem:[#allocation5 + $0x188] sm:$0xff]
    %v767 = vld [vmem:[#allocation5 + $0x190] sm:$0xff]
    %v768 = vld [vmem:[#allocation5 + $0x198] sm:$0xff]
    %v769 = vld [vmem:[#allocation5 + $0x1a0] sm:$0xff]
    %v770 = vld [vmem:[#allocation5 + $0x1a8] sm:$0xff]
    %v771 = vld [vmem:[#allocation5 + $0x1b0] sm:$0xff]
    %v772 = vld [vmem:[#allocation5 + $0x1b8] sm:$0xff]
    %v773 = vld [vmem:[#allocation5 + $0x1c0] sm:$0xff]
    %v774 = vld [vmem:[#allocation5 + $0x1c8] sm:$0xff]
    %v775 = vld [vmem:[#allocation5 + $0x1d0] sm:$0xff]
    %v776 = vld [vmem:[#allocation5 + $0x1d8] sm:$0xff]
    %v777 = vld [vmem:[#allocation5 + $0x1e0] sm:$0xff]
    %v778 = vld [vmem:[#allocation5 + $0x1e8] sm:$0xff]
    %v779 = vld [vmem:[#allocation5 + $0x1f0] sm:$0xff]
    %v780 = vld [vmem:[#allocation5 + $0x1f8] sm:$0xff]
    %v781 = vld [vmem:[#allocation5 + $0x200] sm:$0xff]
    %v782 = vld [vmem:[#allocation5 + $0x208] sm:$0xff]
    %v783 = vld [vmem:[#allocation5 + $0x210] sm:$0xff]
    %v784 = vld [vmem:[#allocation5 + $0x218] sm:$0xff]
    %v785 = vld [vmem:[#allocation5 + $0x220] sm:$0xff]
    %v786 = vld [vmem:[#allocation5 + $0x228] sm:$0xff]
    %v787 = vld [vmem:[#allocation5 + $0x230] sm:$0xff]
    %v788 = vld [vmem:[#allocation5 + $0x238] sm:$0xff]
    %v789 = vld [vmem:[#allocation5 + $0x240] sm:$0xff]
    %v790 = vld [vmem:[#allocation5 + $0x248] sm:$0xff]
    %v791 = vld [vmem:[#allocation5 + $0x250] sm:$0xff]
    %v792 = vld [vmem:[#allocation5 + $0x258] sm:$0xff]
    %v793 = vld [vmem:[#allocation5 + $0x260] sm:$0xff]
    %v794 = vld [vmem:[#allocation5 + $0x268] sm:$0xff]
    %v795 = vld [vmem:[#allocation5 + $0x270] sm:$0xff]
    %v796 = vld [vmem:[#allocation5 + $0x278] sm:$0xff]
    %v797 = vld [vmem:[#allocation5 + $0x280] sm:$0xff]
    %v798 = vld [vmem:[#allocation5 + $0x288] sm:$0xff]
    %v799 = vld [vmem:[#allocation5 + $0x290] sm:$0xff]
    %v800 = vld [vmem:[#allocation5 + $0x298] sm:$0xff]
    %v801 = vld [vmem:[#allocation5 + $0x2a0] sm:$0xff]
    %v802 = vld [vmem:[#allocation5 + $0x2a8] sm:$0xff]
    %v803 = vld [vmem:[#allocation5 + $0x2b0] sm:$0xff]
    %v804 = vld [vmem:[#allocation5 + $0x2b8] sm:$0xff]
    %v805 = vld [vmem:[#allocation5 + $0x2c0] sm:$0xff]
    %v806 = vld [vmem:[#allocation5 + $0x2c8] sm:$0xff]
    %v807 = vld [vmem:[#allocation5 + $0x2d0] sm:$0xff]
    %v808 = vld [vmem:[#allocation5 + $0x2d8] sm:$0xff]
    %v809 = vld [vmem:[#allocation5 + $0x2e0] sm:$0xff]
    %v810 = vld [vmem:[#allocation5 + $0x2e8] sm:$0xff]
    %v811 = vld [vmem:[#allocation5 + $0x2f0] sm:$0xff]
    %v812 = vld [vmem:[#allocation5 + $0x2f8] sm:$0xff]
    %v813 = vld [vmem:[#allocation5 + $0x300] sm:$0xff]
    %v814 = vld [vmem:[#allocation5 + $0x308] sm:$0xff]
    %v815 = vld [vmem:[#allocation5 + $0x310] sm:$0xff]
    %v816 = vld [vmem:[#allocation5 + $0x318] sm:$0xff]
    %v817 = vld [vmem:[#allocation5 + $0x320] sm:$0xff]
    %v818 = vld [vmem:[#allocation5 + $0x328] sm:$0xff]
    %v819 = vld [vmem:[#allocation5 + $0x330] sm:$0xff]
    %v820 = vld [vmem:[#allocation5 + $0x338] sm:$0xff]
    %v821 = vld [vmem:[#allocation5 + $0x340] sm:$0xff]
    %v822 = vld [vmem:[#allocation5 + $0x348] sm:$0xff]
    %v823 = vld [vmem:[#allocation5 + $0x350] sm:$0xff]
    %v824 = vld [vmem:[#allocation5 + $0x358] sm:$0xff]
    %v825 = vld [vmem:[#allocation5 + $0x360] sm:$0xff]
    %v826 = vld [vmem:[#allocation5 + $0x368] sm:$0xff]
    %v827 = vld [vmem:[#allocation5 + $0x370] sm:$0xff]
    %v828 = vld [vmem:[#allocation5 + $0x378] sm:$0xff]
    %v829 = vld [vmem:[#allocation5 + $0x380] sm:$0xff]
    %v830 = vld [vmem:[#allocation5 + $0x388] sm:$0xff]
    %v831 = vld [vmem:[#allocation5 + $0x390] sm:$0xff]
    %v832 = vld [vmem:[#allocation5 + $0x398] sm:$0xff]
    %v833 = vld [vmem:[#allocation5 + $0x3a0] sm:$0xff]
    %v834 = vld [vmem:[#allocation5 + $0x3a8] sm:$0xff]
    %v835 = vld [vmem:[#allocation5 + $0x3b0] sm:$0xff]
    %v836 = vld [vmem:[#allocation5 + $0x3b8] sm:$0xff]
    %v837 = vld [vmem:[#allocation5 + $0x3c0] sm:$0xff]
    %v838 = vld [vmem:[#allocation5 + $0x3c8] sm:$0xff]
    %v839 = vld [vmem:[#allocation5 + $0x3d0] sm:$0xff]
    %v840 = vld [vmem:[#allocation5 + $0x3d8] sm:$0xff]
    %v841 = vld [vmem:[#allocation5 + $0x3e0] sm:$0xff]
    %v842 = vld [vmem:[#allocation5 + $0x3e8] sm:$0xff]
    %v843 = vld [vmem:[#allocation5 + $0x3f0] sm:$0xff]
    %v844 = vld [vmem:[#allocation5 + $0x3f8] sm:$0xff]
    %v845 = vld [vmem:[#allocation5 + $0x400] sm:$0xff]
    %v846 = vld [vmem:[#allocation5 + $0x408] sm:$0xff]
    %v847 = vld [vmem:[#allocation5 + $0x410] sm:$0xff]
    %v848 = vld [vmem:[#allocation5 + $0x418] sm:$0xff]
    %v849 = vld [vmem:[#allocation5 + $0x420] sm:$0xff]
    %v850 = vld [vmem:[#allocation5 + $0x428] sm:$0xff]
    %v851 = vld [vmem:[#allocation5 + $0x430] sm:$0xff]
    %v852 = vld [vmem:[#allocation5 + $0x438] sm:$0xff]
    %v853 = vld [vmem:[#allocation5 + $0x440] sm:$0xff]
    %v854 = vld [vmem:[#allocation5 + $0x448] sm:$0xff]
    %v855 = vld [vmem:[#allocation5 + $0x450] sm:$0xff]
    %v856 = vld [vmem:[#allocation5 + $0x458] sm:$0xff]
    %v857 = vld [vmem:[#allocation5 + $0x460] sm:$0xff]
    %v858 = vld [vmem:[#allocation5 + $0x468] sm:$0xff]
    %v859 = vld [vmem:[#allocation5 + $0x470] sm:$0xff]
    %v860 = vld [vmem:[#allocation5 + $0x478] sm:$0xff]
    %v861 = vld [vmem:[#allocation5 + $0x480] sm:$0xff]
    %v862 = vld [vmem:[#allocation5 + $0x488] sm:$0xff]
    %v863 = vld [vmem:[#allocation5 + $0x490] sm:$0xff]
    %v864 = vld [vmem:[#allocation5 + $0x498] sm:$0xff]
    %v865 = vld [vmem:[#allocation5 + $0x4a0] sm:$0xff]
    %v866 = vld [vmem:[#allocation5 + $0x4a8] sm:$0xff]
    %v867 = vld [vmem:[#allocation5 + $0x4b0] sm:$0xff]
    %v868 = vld [vmem:[#allocation5 + $0x4b8] sm:$0xff]
    %v869 = vld [vmem:[#allocation5 + $0x4c0] sm:$0xff]
    %v870 = vld [vmem:[#allocation5 + $0x4c8] sm:$0xff]
    %v871 = vld [vmem:[#allocation5 + $0x4d0] sm:$0xff]
    %v872 = vld [vmem:[#allocation5 + $0x4d8] sm:$0xff]
    %v873 = vld [vmem:[#allocation5 + $0x4e0] sm:$0xff]
    %v874 = vld [vmem:[#allocation5 + $0x4e8] sm:$0xff]
    %v875 = vld [vmem:[#allocation5 + $0x4f0] sm:$0xff]
    %v876 = vld [vmem:[#allocation5 + $0x4f8] sm:$0xff]
    %v877 = vld [vmem:[#allocation5 + $0x500] sm:$0xff]
    %v878 = vld [vmem:[#allocation5 + $0x508] sm:$0xff]
    %v879 = vld [vmem:[#allocation5 + $0x510] sm:$0xff]
    %v880 = vld [vmem:[#allocation5 + $0x518] sm:$0xff]
    %v881 = vld [vmem:[#allocation5 + $0x520] sm:$0xff]
    %v882 = vld [vmem:[#allocation5 + $0x528] sm:$0xff]
    %v883 = vld [vmem:[#allocation5 + $0x530] sm:$0xff]
    %v884 = vld [vmem:[#allocation5 + $0x538] sm:$0xff]
    %v885 = vld [vmem:[#allocation5 + $0x540] sm:$0xff]
    %v886 = vld [vmem:[#allocation5 + $0x548] sm:$0xff]
    %v887 = vld [vmem:[#allocation5 + $0x550] sm:$0xff]
    %v888 = vld [vmem:[#allocation5 + $0x558] sm:$0xff]
    %v889 = vld [vmem:[#allocation5 + $0x560] sm:$0xff]
    %v890 = vld [vmem:[#allocation5 + $0x568] sm:$0xff]
    %v891 = vld [vmem:[#allocation5 + $0x570] sm:$0xff]
    %v892 = vld [vmem:[#allocation5 + $0x578] sm:$0xff]
    %v893 = vld [vmem:[#allocation5 + $0x580] sm:$0xff]
    %v894 = vld [vmem:[#allocation5 + $0x588] sm:$0xff]
    %v895 = vld [vmem:[#allocation5 + $0x590] sm:$0xff]
    %v896 = vld [vmem:[#allocation5 + $0x598] sm:$0xff]
    %v897 = vld [vmem:[#allocation5 + $0x5a0] sm:$0xff]
    %v898 = vld [vmem:[#allocation5 + $0x5a8] sm:$0xff]
    %v899 = vld [vmem:[#allocation5 + $0x5b0] sm:$0xff]
    %v900 = vld [vmem:[#allocation5 + $0x5b8] sm:$0xff]
    %v901 = vld [vmem:[#allocation5 + $0x5c0] sm:$0xff]
    %v902 = vld [vmem:[#allocation5 + $0x5c8] sm:$0xff]
    %v903 = vld [vmem:[#allocation5 + $0x5d0] sm:$0xff]
    %v904 = vld [vmem:[#allocation5 + $0x5d8] sm:$0xff]
    %v905 = vld [vmem:[#allocation5 + $0x5e0] sm:$0xff]
    %v906 = vld [vmem:[#allocation5 + $0x5e8] sm:$0xff]
    %v907 = vld [vmem:[#allocation5 + $0x5f0] sm:$0xff]
    %v908 = vld [vmem:[#allocation5 + $0x5f8] sm:$0xff]
    %v909 = vld [vmem:[#allocation5 + $0x600] sm:$0xff]
    %v910 = vld [vmem:[#allocation5 + $0x608] sm:$0xff]
    %v911 = vld [vmem:[#allocation5 + $0x610] sm:$0xff]
    %v912 = vld [vmem:[#allocation5 + $0x618] sm:$0xff]
    %v913 = vld [vmem:[#allocation5 + $0x620] sm:$0xff]
    %v914 = vld [vmem:[#allocation5 + $0x628] sm:$0xff]
    %v915 = vld [vmem:[#allocation5 + $0x630] sm:$0xff]
    %v916 = vld [vmem:[#allocation5 + $0x638] sm:$0xff]
    %v917 = vld [vmem:[#allocation5 + $0x640] sm:$0xff]
    %v918 = vld [vmem:[#allocation5 + $0x648] sm:$0xff]
    %v919 = vld [vmem:[#allocation5 + $0x650] sm:$0xff]
    %v920 = vld [vmem:[#allocation5 + $0x658] sm:$0xff]
    %v921 = vld [vmem:[#allocation5 + $0x660] sm:$0xff]
    %v922 = vld [vmem:[#allocation5 + $0x668] sm:$0xff]
    %v923 = vld [vmem:[#allocation5 + $0x670] sm:$0xff]
    %v924 = vld [vmem:[#allocation5 + $0x678] sm:$0xff]
    %v925 = vld [vmem:[#allocation5 + $0x680] sm:$0xff]
    %v926 = vld [vmem:[#allocation5 + $0x688] sm:$0xff]
    %v927 = vld [vmem:[#allocation5 + $0x690] sm:$0xff]
    %v928 = vld [vmem:[#allocation5 + $0x698] sm:$0xff]
    %v929 = vld [vmem:[#allocation5 + $0x6a0] sm:$0xff]
    %v930 = vld [vmem:[#allocation5 + $0x6a8] sm:$0xff]
    %v931 = vld [vmem:[#allocation5 + $0x6b0] sm:$0xff]
    %v932 = vld [vmem:[#allocation5 + $0x6b8] sm:$0xff]
    %v933 = vld [vmem:[#allocation5 + $0x6c0] sm:$0xff]
    %v934 = vld [vmem:[#allocation5 + $0x6c8] sm:$0xff]
    %v935 = vld [vmem:[#allocation5 + $0x6d0] sm:$0xff]
    %v936 = vld [vmem:[#allocation5 + $0x6d8] sm:$0xff]
    %v937 = vld [vmem:[#allocation5 + $0x6e0] sm:$0xff]
    %v938 = vld [vmem:[#allocation5 + $0x6e8] sm:$0xff]
    %v939 = vld [vmem:[#allocation5 + $0x6f0] sm:$0xff]
    %v940 = vld [vmem:[#allocation5 + $0x6f8] sm:$0xff]
    %v941 = vld [vmem:[#allocation5 + $0x700] sm:$0xff]
    %v942 = vld [vmem:[#allocation5 + $0x708] sm:$0xff]
    %v943 = vld [vmem:[#allocation5 + $0x710] sm:$0xff]
    %v944 = vld [vmem:[#allocation5 + $0x718] sm:$0xff]
    %v945 = vld [vmem:[#allocation5 + $0x720] sm:$0xff]
    %v946 = vld [vmem:[#allocation5 + $0x728] sm:$0xff]
    %v947 = vld [vmem:[#allocation5 + $0x730] sm:$0xff]
    %v948 = vld [vmem:[#allocation5 + $0x738] sm:$0xff]
    %v949 = vld [vmem:[#allocation5 + $0x740] sm:$0xff]
    %v950 = vld [vmem:[#allocation5 + $0x748] sm:$0xff]
    %v951 = vld [vmem:[#allocation5 + $0x750] sm:$0xff]
    %v952 = vld [vmem:[#allocation5 + $0x758] sm:$0xff]
    %v953 = vld [vmem:[#allocation5 + $0x760] sm:$0xff]
    %v954 = vld [vmem:[#allocation5 + $0x768] sm:$0xff]
    %v955 = vld [vmem:[#allocation5 + $0x770] sm:$0xff]
    %v956 = vld [vmem:[#allocation5 + $0x778] sm:$0xff]
    %v957 = vld [vmem:[#allocation5 + $0x780] sm:$0xff]
    %v958 = vld [vmem:[#allocation5 + $0x788] sm:$0xff]
    %v959 = vld [vmem:[#allocation5 + $0x790] sm:$0xff]
    %v960 = vld [vmem:[#allocation5 + $0x798] sm:$0xff]
    %v961 = vld [vmem:[#allocation5 + $0x7a0] sm:$0xff]
    %v962 = vld [vmem:[#allocation5 + $0x7a8] sm:$0xff]
    %v963 = vld [vmem:[#allocation5 + $0x7b0] sm:$0xff]
    %v964 = vld [vmem:[#allocation5 + $0x7b8] sm:$0xff]
    %v965 = vld [vmem:[#allocation5 + $0x7c0] sm:$0xff]
    %v966 = vld [vmem:[#allocation5 + $0x7c8] sm:$0xff]
    %v967 = vld [vmem:[#allocation5 + $0x7d0] sm:$0xff]
    %v968 = vld [vmem:[#allocation5 + $0x7d8] sm:$0xff]
    %v969 = vld [vmem:[#allocation5 + $0x7e0] sm:$0xff]
    %v970 = vld [vmem:[#allocation5 + $0x7e8] sm:$0xff]
    %v971 = vld [vmem:[#allocation5 + $0x7f0] sm:$0xff]
    %v972 = vld [vmem:[#allocation5 + $0x7f8] sm:$0xff]
    %v973 = vld [vmem:[#allocation5 + $0x800] sm:$0xff]
    %v974 = vld [vmem:[#allocation5 + $0x808] sm:$0xff]
    %v975 = vld [vmem:[#allocation5 + $0x810] sm:$0xff]
    %v976 = vld [vmem:[#allocation5 + $0x818] sm:$0xff]
    %v977 = vld [vmem:[#allocation5 + $0x820] sm:$0xff]
    %v978 = vld [vmem:[#allocation5 + $0x828] sm:$0xff]
    %v979 = vld [vmem:[#allocation5 + $0x830] sm:$0xff]
    %v980 = vld [vmem:[#allocation5 + $0x838] sm:$0xff]
    %v981 = vld [vmem:[#allocation5 + $0x840] sm:$0xff]
    %v982 = vld [vmem:[#allocation5 + $0x848] sm:$0xff]
    %v983 = vld [vmem:[#allocation5 + $0x850] sm:$0xff]
    %v984 = vld [vmem:[#allocation5 + $0x858] sm:$0xff]
    %v985 = vld [vmem:[#allocation5 + $0x860] sm:$0xff]
    %v986 = vld [vmem:[#allocation5 + $0x868] sm:$0xff]
    %v987 = vld [vmem:[#allocation5 + $0x870] sm:$0xff]
    %v988 = vld [vmem:[#allocation5 + $0x878] sm:$0xff]
    %v989 = vld [vmem:[#allocation5 + $0x880] sm:$0xff]
    %v990 = vld [vmem:[#allocation5 + $0x888] sm:$0xff]
    %v991 = vld [vmem:[#allocation5 + $0x890] sm:$0xff]
    %v992 = vld [vmem:[#allocation5 + $0x898] sm:$0xff]
    %v993 = vld [vmem:[#allocation5 + $0x8a0] sm:$0xff]
    %v994 = vld [vmem:[#allocation5 + $0x8a8] sm:$0xff]
    %v995 = vld [vmem:[#allocation5 + $0x8b0] sm:$0xff]
    %v996 = vld [vmem:[#allocation5 + $0x8b8] sm:$0xff]
    %v997 = vld [vmem:[#allocation5 + $0x8c0] sm:$0xff]
    %v998 = vld [vmem:[#allocation5 + $0x8c8] sm:$0xff]
    %v999 = vld [vmem:[#allocation5 + $0x8d0] sm:$0xff]
    %v1000 = vld [vmem:[#allocation5 + $0x8d8] sm:$0xff]
    %v1001 = vld [vmem:[#allocation5 + $0x8e0] sm:$0xff]
    %v1002 = vld [vmem:[#allocation5 + $0x8e8] sm:$0xff]
    %v1003 = vld [vmem:[#allocation5 + $0x8f0] sm:$0xff]
    %v1004 = vld [vmem:[#allocation5 + $0x8f8] sm:$0xff]
    %v1005 = vld [vmem:[#allocation5 + $0x900] sm:$0xff]
    %v1006 = vld [vmem:[#allocation5 + $0x908] sm:$0xff]
    %v1007 = vld [vmem:[#allocation5 + $0x910] sm:$0xff]
    %v1008 = vld [vmem:[#allocation5 + $0x918] sm:$0xff]
    %v1009 = vld [vmem:[#allocation5 + $0x920] sm:$0xff]
    %v1010 = vld [vmem:[#allocation5 + $0x928] sm:$0xff]
    %v1011 = vld [vmem:[#allocation5 + $0x930] sm:$0xff]
    %v1012 = vld [vmem:[#allocation5 + $0x938] sm:$0xff]
    %v1013 = vld [vmem:[#allocation5 + $0x940] sm:$0xff]
    %v1014 = vld [vmem:[#allocation5 + $0x948] sm:$0xff]
    %v1015 = vld [vmem:[#allocation5 + $0x950] sm:$0xff]
    %v1016 = vld [vmem:[#allocation5 + $0x958] sm:$0xff]
    %v1017 = vld [vmem:[#allocation5 + $0x960] sm:$0xff]
    %v1018 = vld [vmem:[#allocation5 + $0x968] sm:$0xff]
    %v1019 = vld [vmem:[#allocation5 + $0x970] sm:$0xff]
    %v1020 = vld [vmem:[#allocation5 + $0x978] sm:$0xff]
    %v1021 = vld [vmem:[#allocation5 + $0x980] sm:$0xff]
    %v1022 = vld [vmem:[#allocation5 + $0x988] sm:$0xff]
    %v1023 = vld [vmem:[#allocation5 + $0x990] sm:$0xff]
    %v1024 = vld [vmem:[#allocation5 + $0x998] sm:$0xff]
    %v1025 = vld [vmem:[#allocation5 + $0x9a0] sm:$0xff]
    %v1026 = vld [vmem:[#allocation5 + $0x9a8] sm:$0xff]
    %v1027 = vld [vmem:[#allocation5 + $0x9b0] sm:$0xff]
    %v1028 = vld [vmem:[#allocation5 + $0x9b8] sm:$0xff]
    %v1029 = vld [vmem:[#allocation5 + $0x9c0] sm:$0xff]
    %v1030 = vld [vmem:[#allocation5 + $0x9c8] sm:$0xff]
    %v1031 = vld [vmem:[#allocation5 + $0x9d0] sm:$0xff]
    %v1032 = vld [vmem:[#allocation5 + $0x9d8] sm:$0xff]
    %v1033 = vld [vmem:[#allocation5 + $0x9e0] sm:$0xff]
    %v1034 = vld [vmem:[#allocation5 + $0x9e8] sm:$0xff]
    %v1035 = vld [vmem:[#allocation5 + $0x9f0] sm:$0xff]
    %v1036 = vld [vmem:[#allocation5 + $0x9f8] sm:$0xff]
    %v1037 = vld [vmem:[#allocation5 + $0xa00] sm:$0xff]
    %v1038 = vld [vmem:[#allocation5 + $0xa08] sm:$0xff]
    %v1039 = vld [vmem:[#allocation5 + $0xa10] sm:$0xff]
    %v1040 = vld [vmem:[#allocation5 + $0xa18] sm:$0xff]
    %v1041 = vld [vmem:[#allocation5 + $0xa20] sm:$0xff]
    %v1042 = vld [vmem:[#allocation5 + $0xa28] sm:$0xff]
    %v1043 = vld [vmem:[#allocation5 + $0xa30] sm:$0xff]
    %v1044 = vld [vmem:[#allocation5 + $0xa38] sm:$0xff]
    %v1045 = vld [vmem:[#allocation5 + $0xa40] sm:$0xff]
    %v1046 = vld [vmem:[#allocation5 + $0xa48] sm:$0xff]
    %v1047 = vld [vmem:[#allocation5 + $0xa50] sm:$0xff]
    %v1048 = vld [vmem:[#allocation5 + $0xa58] sm:$0xff]
    %v1049 = vld [vmem:[#allocation5 + $0xa60] sm:$0xff]
    %v1050 = vld [vmem:[#allocation5 + $0xa68] sm:$0xff]
    %v1051 = vld [vmem:[#allocation5 + $0xa70] sm:$0xff]
    %v1052 = vld [vmem:[#allocation5 + $0xa78] sm:$0xff]
    %v1053 = vld [vmem:[#allocation5 + $0xa80] sm:$0xff]
    %v1054 = vld [vmem:[#allocation5 + $0xa88] sm:$0xff]
    %v1055 = vld [vmem:[#allocation5 + $0xa90] sm:$0xff]
    %v1056 = vld [vmem:[#allocation5 + $0xa98] sm:$0xff]
    %v1057 = vld [vmem:[#allocation5 + $0xaa0] sm:$0xff]
    %v1058 = vld [vmem:[#allocation5 + $0xaa8] sm:$0xff]
    %v1059 = vld [vmem:[#allocation5 + $0xab0] sm:$0xff]
    %v1060 = vld [vmem:[#allocation5 + $0xab8] sm:$0xff]
    %v1061 = vld [vmem:[#allocation5 + $0xac0] sm:$0xff]
    %v1062 = vld [vmem:[#allocation5 + $0xac8] sm:$0xff]
    %v1063 = vld [vmem:[#allocation5 + $0xad0] sm:$0xff]
    %v1064 = vld [vmem:[#allocation5 + $0xad8] sm:$0xff]
    %v1065 = vld [vmem:[#allocation5 + $0xae0] sm:$0xff]
    %v1066 = vld [vmem:[#allocation5 + $0xae8] sm:$0xff]
    %v1067 = vld [vmem:[#allocation5 + $0xaf0] sm:$0xff]
    %v1068 = vld [vmem:[#allocation5 + $0xaf8] sm:$0xff]
    %v1069 = vld [vmem:[#allocation5 + $0xb00] sm:$0xff]
    %v1070 = vld [vmem:[#allocation5 + $0xb08] sm:$0xff]
    %v1071 = vld [vmem:[#allocation5 + $0xb10] sm:$0xff]
    %v1072 = vld [vmem:[#allocation5 + $0xb18] sm:$0xff]
    %v1073 = vld [vmem:[#allocation5 + $0xb20] sm:$0xff]
    %v1074 = vld [vmem:[#allocation5 + $0xb28] sm:$0xff]
    %v1075 = vld [vmem:[#allocation5 + $0xb30] sm:$0xff]
    %v1076 = vld [vmem:[#allocation5 + $0xb38] sm:$0xff]
    %v1077 = vld [vmem:[#allocation5 + $0xb40] sm:$0xff]
    %v1078 = vld [vmem:[#allocation5 + $0xb48] sm:$0xff]
    %v1079 = vld [vmem:[#allocation5 + $0xb50] sm:$0xff]
    %v1080 = vld [vmem:[#allocation5 + $0xb58] sm:$0xff]
    %v1081 = vld [vmem:[#allocation5 + $0xb60] sm:$0xff]
    %v1082 = vld [vmem:[#allocation5 + $0xb68] sm:$0xff]
    %v1083 = vld [vmem:[#allocation5 + $0xb70] sm:$0xff]
    %v1084 = vld [vmem:[#allocation5 + $0xb78] sm:$0xff]
    %v1085 = vld [vmem:[#allocation5 + $0xb80] sm:$0xff]
    %v1086 = vld [vmem:[#allocation5 + $0xb88] sm:$0xff]
    %v1087 = vld [vmem:[#allocation5 + $0xb90] sm:$0xff]
    %v1088 = vld [vmem:[#allocation5 + $0xb98] sm:$0xff]
    %v1089 = vld [vmem:[#allocation5 + $0xba0] sm:$0xff]
    %v1090 = vld [vmem:[#allocation5 + $0xba8] sm:$0xff]
    %v1091 = vld [vmem:[#allocation5 + $0xbb0] sm:$0xff]
    %v1092 = vld [vmem:[#allocation5 + $0xbb8] sm:$0xff]
    %v1093 = vld [vmem:[#allocation5 + $0xbc0] sm:$0xff]
    %v1094 = vld [vmem:[#allocation5 + $0xbc8] sm:$0xff]
    %v1095 = vld [vmem:[#allocation5 + $0xbd0] sm:$0xff]
    %v1096 = vld [vmem:[#allocation5 + $0xbd8] sm:$0xff]
    %v1097 = vld [vmem:[#allocation5 + $0xbe0] sm:$0xff]
    %v1098 = vld [vmem:[#allocation5 + $0xbe8] sm:$0xff]
    %v1099 = vld [vmem:[#allocation5 + $0xbf0] sm:$0xff]
    %v1100 = vld [vmem:[#allocation5 + $0xbf8] sm:$0xff]
    %v1101 = vld [vmem:[#allocation7] sm:$0x3]
    %v1103 = vlaneseq
    %v1104 = vshrl.u32 %v1103, 7
    %v1105 = vsub.s32 0, %v1104
    %v1106 = vrot.slane %v1101, %v1105
    %v1107 = vlaneseq
    %v1108 = vshrl.u32 %v1107, 7
    %v1109 = vsub.s32 1, %v1108
    %v1110 = vrot.slane %v1101, %v1109
    %v1497 = vunpack.c.l.b16 %v717
    %v1498 = vunpack.c.h.b16 %v717
    %v1499 = vunpack.c.l.b16 %v718
    %v1500 = vunpack.c.h.b16 %v718
    %v1501 = vunpack.c.l.b16 %v719
    %v1502 = vunpack.c.h.b16 %v719
    %v1503 = vunpack.c.l.b16 %v720
    %v1504 = vunpack.c.h.b16 %v720
    %v1505 = vunpack.c.l.b16 %v721
    %v1506 = vunpack.c.h.b16 %v721
    %v1507 = vunpack.c.l.b16 %v722
    %v1508 = vunpack.c.h.b16 %v722
    %v1509 = vunpack.c.l.b16 %v723
    %v1510 = vunpack.c.h.b16 %v723
    %v1511 = vunpack.c.l.b16 %v724
    %v1512 = vunpack.c.h.b16 %v724
    %v1513 = vunpack.c.l.b16 %v725
    %v1514 = vunpack.c.h.b16 %v725
    %v1515 = vunpack.c.l.b16 %v726
    %v1516 = vunpack.c.h.b16 %v726
    %v1517 = vunpack.c.l.b16 %v727
    %v1518 = vunpack.c.h.b16 %v727
    %v1519 = vunpack.c.l.b16 %v728
    %v1520 = vunpack.c.h.b16 %v728
    %v1521 = vunpack.c.l.b16 %v729
    %v1522 = vunpack.c.h.b16 %v729
    %v1523 = vunpack.c.l.b16 %v730
    %v1524 = vunpack.c.h.b16 %v730
    %v1525 = vunpack.c.l.b16 %v731
    %v1526 = vunpack.c.h.b16 %v731
    %v1527 = vunpack.c.l.b16 %v732
    %v1528 = vunpack.c.h.b16 %v732
    %v1529 = vunpack.c.l.b16 %v733
    %v1530 = vunpack.c.h.b16 %v733
    %v1531 = vunpack.c.l.b16 %v734
    %v1532 = vunpack.c.h.b16 %v734
    %v1533 = vunpack.c.l.b16 %v735
    %v1534 = vunpack.c.h.b16 %v735
    %v1535 = vunpack.c.l.b16 %v736
    %v1536 = vunpack.c.h.b16 %v736
    %v1537 = vunpack.c.l.b16 %v737
    %v1538 = vunpack.c.h.b16 %v737
    %v1539 = vunpack.c.l.b16 %v738
    %v1540 = vunpack.c.h.b16 %v738
    %v1541 = vunpack.c.l.b16 %v739
    %v1542 = vunpack.c.h.b16 %v739
    %v1543 = vunpack.c.l.b16 %v740
    %v1544 = vunpack.c.h.b16 %v740
    %v1545 = vunpack.c.l.b16 %v741
    %v1546 = vunpack.c.h.b16 %v741
    %v1547 = vunpack.c.l.b16 %v742
    %v1548 = vunpack.c.h.b16 %v742
    %v1549 = vunpack.c.l.b16 %v743
    %v1550 = vunpack.c.h.b16 %v743
    %v1551 = vunpack.c.l.b16 %v744
    %v1552 = vunpack.c.h.b16 %v744
    %v1553 = vunpack.c.l.b16 %v745
    %v1554 = vunpack.c.h.b16 %v745
    %v1555 = vunpack.c.l.b16 %v746
    %v1556 = vunpack.c.h.b16 %v746
    %v1557 = vunpack.c.l.b16 %v747
    %v1558 = vunpack.c.h.b16 %v747
    %v1559 = vunpack.c.l.b16 %v748
    %v1560 = vunpack.c.h.b16 %v748
    %v1561 = vunpack.c.l.b16 %v749
    %v1562 = vunpack.c.h.b16 %v749
    %v1563 = vunpack.c.l.b16 %v750
    %v1564 = vunpack.c.h.b16 %v750
    %v1565 = vunpack.c.l.b16 %v751
    %v1566 = vunpack.c.h.b16 %v751
    %v1567 = vunpack.c.l.b16 %v752
    %v1568 = vunpack.c.h.b16 %v752
    %v1569 = vunpack.c.l.b16 %v753
    %v1570 = vunpack.c.h.b16 %v753
    %v1571 = vunpack.c.l.b16 %v754
    %v1572 = vunpack.c.h.b16 %v754
    %v1573 = vunpack.c.l.b16 %v755
    %v1574 = vunpack.c.h.b16 %v755
    %v1575 = vunpack.c.l.b16 %v756
    %v1576 = vunpack.c.h.b16 %v756
    %v1577 = vunpack.c.l.b16 %v757
    %v1578 = vunpack.c.h.b16 %v757
    %v1579 = vunpack.c.l.b16 %v758
    %v1580 = vunpack.c.h.b16 %v758
    %v1581 = vunpack.c.l.b16 %v759
    %v1582 = vunpack.c.h.b16 %v759
    %v1583 = vunpack.c.l.b16 %v760
    %v1584 = vunpack.c.h.b16 %v760
    %v1585 = vunpack.c.l.b16 %v761
    %v1586 = vunpack.c.h.b16 %v761
    %v1587 = vunpack.c.l.b16 %v762
    %v1588 = vunpack.c.h.b16 %v762
    %v1589 = vunpack.c.l.b16 %v763
    %v1590 = vunpack.c.h.b16 %v763
    %v1591 = vunpack.c.l.b16 %v764
    %v1592 = vunpack.c.h.b16 %v764
    %v1593 = vunpack.c.l.b16 %v765
    %v1594 = vunpack.c.h.b16 %v765
    %v1595 = vunpack.c.l.b16 %v766
    %v1596 = vunpack.c.h.b16 %v766
    %v1597 = vunpack.c.l.b16 %v767
    %v1598 = vunpack.c.h.b16 %v767
    %v1599 = vunpack.c.l.b16 %v768
    %v1600 = vunpack.c.h.b16 %v768
    %v1601 = vunpack.c.l.b16 %v769
    %v1602 = vunpack.c.h.b16 %v769
    %v1603 = vunpack.c.l.b16 %v770
    %v1604 = vunpack.c.h.b16 %v770
    %v1605 = vunpack.c.l.b16 %v771
    %v1606 = vunpack.c.h.b16 %v771
    %v1607 = vunpack.c.l.b16 %v772
    %v1608 = vunpack.c.h.b16 %v772
    %v1609 = vunpack.c.l.b16 %v773
    %v1610 = vunpack.c.h.b16 %v773
    %v1611 = vunpack.c.l.b16 %v774
    %v1612 = vunpack.c.h.b16 %v774
    %v1613 = vunpack.c.l.b16 %v775
    %v1614 = vunpack.c.h.b16 %v775
    %v1615 = vunpack.c.l.b16 %v776
    %v1616 = vunpack.c.h.b16 %v776
    %v1617 = vunpack.c.l.b16 %v777
    %v1618 = vunpack.c.h.b16 %v777
    %v1619 = vunpack.c.l.b16 %v778
    %v1620 = vunpack.c.h.b16 %v778
    %v1621 = vunpack.c.l.b16 %v779
    %v1622 = vunpack.c.h.b16 %v779
    %v1623 = vunpack.c.l.b16 %v780
    %v1624 = vunpack.c.h.b16 %v780
    %v1625 = vunpack.c.l.b16 %v781
    %v1626 = vunpack.c.h.b16 %v781
    %v1627 = vunpack.c.l.b16 %v782
    %v1628 = vunpack.c.h.b16 %v782
    %v1629 = vunpack.c.l.b16 %v783
    %v1630 = vunpack.c.h.b16 %v783
    %v1631 = vunpack.c.l.b16 %v784
    %v1632 = vunpack.c.h.b16 %v784
    %v1633 = vunpack.c.l.b16 %v785
    %v1634 = vunpack.c.h.b16 %v785
    %v1635 = vunpack.c.l.b16 %v786
    %v1636 = vunpack.c.h.b16 %v786
    %v1637 = vunpack.c.l.b16 %v787
    %v1638 = vunpack.c.h.b16 %v787
    %v1639 = vunpack.c.l.b16 %v788
    %v1640 = vunpack.c.h.b16 %v788
    %v1641 = vunpack.c.l.b16 %v789
    %v1642 = vunpack.c.h.b16 %v789
    %v1643 = vunpack.c.l.b16 %v790
    %v1644 = vunpack.c.h.b16 %v790
    %v1645 = vunpack.c.l.b16 %v791
    %v1646 = vunpack.c.h.b16 %v791
    %v1647 = vunpack.c.l.b16 %v792
    %v1648 = vunpack.c.h.b16 %v792
    %v1649 = vunpack.c.l.b16 %v793
    %v1650 = vunpack.c.h.b16 %v793
    %v1651 = vunpack.c.l.b16 %v794
    %v1652 = vunpack.c.h.b16 %v794
    %v1653 = vunpack.c.l.b16 %v795
    %v1654 = vunpack.c.h.b16 %v795
    %v1655 = vunpack.c.l.b16 %v796
    %v1656 = vunpack.c.h.b16 %v796
    %v1657 = vunpack.c.l.b16 %v797
    %v1658 = vunpack.c.h.b16 %v797
    %v1659 = vunpack.c.l.b16 %v798
    %v1660 = vunpack.c.h.b16 %v798
    %v1661 = vunpack.c.l.b16 %v799
    %v1662 = vunpack.c.h.b16 %v799
    %v1663 = vunpack.c.l.b16 %v800
    %v1664 = vunpack.c.h.b16 %v800
    %v1665 = vunpack.c.l.b16 %v801
    %v1666 = vunpack.c.h.b16 %v801
    %v1667 = vunpack.c.l.b16 %v802
    %v1668 = vunpack.c.h.b16 %v802
    %v1669 = vunpack.c.l.b16 %v803
    %v1670 = vunpack.c.h.b16 %v803
    %v1671 = vunpack.c.l.b16 %v804
    %v1672 = vunpack.c.h.b16 %v804
    %v1673 = vunpack.c.l.b16 %v805
    %v1674 = vunpack.c.h.b16 %v805
    %v1675 = vunpack.c.l.b16 %v806
    %v1676 = vunpack.c.h.b16 %v806
    %v1677 = vunpack.c.l.b16 %v807
    %v1678 = vunpack.c.h.b16 %v807
    %v1679 = vunpack.c.l.b16 %v808
    %v1680 = vunpack.c.h.b16 %v808
    %v1681 = vunpack.c.l.b16 %v809
    %v1682 = vunpack.c.h.b16 %v809
    %v1683 = vunpack.c.l.b16 %v810
    %v1684 = vunpack.c.h.b16 %v810
    %v1685 = vunpack.c.l.b16 %v811
    %v1686 = vunpack.c.h.b16 %v811
    %v1687 = vunpack.c.l.b16 %v812
    %v1688 = vunpack.c.h.b16 %v812
    %v1689 = vunpack.c.l.b16 %v813
    %v1690 = vunpack.c.h.b16 %v813
    %v1691 = vunpack.c.l.b16 %v814
    %v1692 = vunpack.c.h.b16 %v814
    %v1693 = vunpack.c.l.b16 %v815
    %v1694 = vunpack.c.h.b16 %v815
    %v1695 = vunpack.c.l.b16 %v816
    %v1696 = vunpack.c.h.b16 %v816
    %v1697 = vunpack.c.l.b16 %v817
    %v1698 = vunpack.c.h.b16 %v817
    %v1699 = vunpack.c.l.b16 %v818
    %v1700 = vunpack.c.h.b16 %v818
    %v1701 = vunpack.c.l.b16 %v819
    %v1702 = vunpack.c.h.b16 %v819
    %v1703 = vunpack.c.l.b16 %v820
    %v1704 = vunpack.c.h.b16 %v820
    %v1705 = vunpack.c.l.b16 %v821
    %v1706 = vunpack.c.h.b16 %v821
    %v1707 = vunpack.c.l.b16 %v822
    %v1708 = vunpack.c.h.b16 %v822
    %v1709 = vunpack.c.l.b16 %v823
    %v1710 = vunpack.c.h.b16 %v823
    %v1711 = vunpack.c.l.b16 %v824
    %v1712 = vunpack.c.h.b16 %v824
    %v1713 = vunpack.c.l.b16 %v825
    %v1714 = vunpack.c.h.b16 %v825
    %v1715 = vunpack.c.l.b16 %v826
    %v1716 = vunpack.c.h.b16 %v826
    %v1717 = vunpack.c.l.b16 %v827
    %v1718 = vunpack.c.h.b16 %v827
    %v1719 = vunpack.c.l.b16 %v828
    %v1720 = vunpack.c.h.b16 %v828
    %v1721 = vunpack.c.l.b16 %v829
    %v1722 = vunpack.c.h.b16 %v829
    %v1723 = vunpack.c.l.b16 %v830
    %v1724 = vunpack.c.h.b16 %v830
    %v1725 = vunpack.c.l.b16 %v831
    %v1726 = vunpack.c.h.b16 %v831
    %v1727 = vunpack.c.l.b16 %v832
    %v1728 = vunpack.c.h.b16 %v832
    %v1729 = vunpack.c.l.b16 %v833
    %v1730 = vunpack.c.h.b16 %v833
    %v1731 = vunpack.c.l.b16 %v834
    %v1732 = vunpack.c.h.b16 %v834
    %v1733 = vunpack.c.l.b16 %v835
    %v1734 = vunpack.c.h.b16 %v835
    %v1735 = vunpack.c.l.b16 %v836
    %v1736 = vunpack.c.h.b16 %v836
    %v1737 = vunpack.c.l.b16 %v837
    %v1738 = vunpack.c.h.b16 %v837
    %v1739 = vunpack.c.l.b16 %v838
    %v1740 = vunpack.c.h.b16 %v838
    %v1741 = vunpack.c.l.b16 %v839
    %v1742 = vunpack.c.h.b16 %v839
    %v1743 = vunpack.c.l.b16 %v840
    %v1744 = vunpack.c.h.b16 %v840
    %v1745 = vunpack.c.l.b16 %v841
    %v1746 = vunpack.c.h.b16 %v841
    %v1747 = vunpack.c.l.b16 %v842
    %v1748 = vunpack.c.h.b16 %v842
    %v1749 = vunpack.c.l.b16 %v843
    %v1750 = vunpack.c.h.b16 %v843
    %v1751 = vunpack.c.l.b16 %v844
    %v1752 = vunpack.c.h.b16 %v844
    %v1753 = vunpack.c.l.b16 %v845
    %v1754 = vunpack.c.h.b16 %v845
    %v1755 = vunpack.c.l.b16 %v846
    %v1756 = vunpack.c.h.b16 %v846
    %v1757 = vunpack.c.l.b16 %v847
    %v1758 = vunpack.c.h.b16 %v847
    %v1759 = vunpack.c.l.b16 %v848
    %v1760 = vunpack.c.h.b16 %v848
    %v1761 = vunpack.c.l.b16 %v849
    %v1762 = vunpack.c.h.b16 %v849
    %v1763 = vunpack.c.l.b16 %v850
    %v1764 = vunpack.c.h.b16 %v850
    %v1765 = vunpack.c.l.b16 %v851
    %v1766 = vunpack.c.h.b16 %v851
    %v1767 = vunpack.c.l.b16 %v852
    %v1768 = vunpack.c.h.b16 %v852
    %v1769 = vunpack.c.l.b16 %v853
    %v1770 = vunpack.c.h.b16 %v853
    %v1771 = vunpack.c.l.b16 %v854
    %v1772 = vunpack.c.h.b16 %v854
    %v1773 = vunpack.c.l.b16 %v855
    %v1774 = vunpack.c.h.b16 %v855
    %v1775 = vunpack.c.l.b16 %v856
    %v1776 = vunpack.c.h.b16 %v856
    %v1777 = vunpack.c.l.b16 %v857
    %v1778 = vunpack.c.h.b16 %v857
    %v1779 = vunpack.c.l.b16 %v858
    %v1780 = vunpack.c.h.b16 %v858
    %v1781 = vunpack.c.l.b16 %v859
    %v1782 = vunpack.c.h.b16 %v859
    %v1783 = vunpack.c.l.b16 %v860
    %v1784 = vunpack.c.h.b16 %v860
    %v1785 = vunpack.c.l.b16 %v861
    %v1786 = vunpack.c.h.b16 %v861
    %v1787 = vunpack.c.l.b16 %v862
    %v1788 = vunpack.c.h.b16 %v862
    %v1789 = vunpack.c.l.b16 %v863
    %v1790 = vunpack.c.h.b16 %v863
    %v1791 = vunpack.c.l.b16 %v864
    %v1792 = vunpack.c.h.b16 %v864
    %v1793 = vunpack.c.l.b16 %v865
    %v1794 = vunpack.c.h.b16 %v865
    %v1795 = vunpack.c.l.b16 %v866
    %v1796 = vunpack.c.h.b16 %v866
    %v1797 = vunpack.c.l.b16 %v867
    %v1798 = vunpack.c.h.b16 %v867
    %v1799 = vunpack.c.l.b16 %v868
    %v1800 = vunpack.c.h.b16 %v868
    %v1801 = vunpack.c.l.b16 %v869
    %v1802 = vunpack.c.h.b16 %v869
    %v1803 = vunpack.c.l.b16 %v870
    %v1804 = vunpack.c.h.b16 %v870
    %v1805 = vunpack.c.l.b16 %v871
    %v1806 = vunpack.c.h.b16 %v871
    %v1807 = vunpack.c.l.b16 %v872
    %v1808 = vunpack.c.h.b16 %v872
    %v1809 = vunpack.c.l.b16 %v873
    %v1810 = vunpack.c.h.b16 %v873
    %v1811 = vunpack.c.l.b16 %v874
    %v1812 = vunpack.c.h.b16 %v874
    %v1813 = vunpack.c.l.b16 %v875
    %v1814 = vunpack.c.h.b16 %v875
    %v1815 = vunpack.c.l.b16 %v876
    %v1816 = vunpack.c.h.b16 %v876
    %v1817 = vunpack.c.l.b16 %v877
    %v1818 = vunpack.c.h.b16 %v877
    %v1819 = vunpack.c.l.b16 %v878
    %v1820 = vunpack.c.h.b16 %v878
    %v1821 = vunpack.c.l.b16 %v879
    %v1822 = vunpack.c.h.b16 %v879
    %v1823 = vunpack.c.l.b16 %v880
    %v1824 = vunpack.c.h.b16 %v880
    %v1825 = vunpack.c.l.b16 %v881
    %v1826 = vunpack.c.h.b16 %v881
    %v1827 = vunpack.c.l.b16 %v882
    %v1828 = vunpack.c.h.b16 %v882
    %v1829 = vunpack.c.l.b16 %v883
    %v1830 = vunpack.c.h.b16 %v883
    %v1831 = vunpack.c.l.b16 %v884
    %v1832 = vunpack.c.h.b16 %v884
    %v1833 = vunpack.c.l.b16 %v885
    %v1834 = vunpack.c.h.b16 %v885
    %v1835 = vunpack.c.l.b16 %v886
    %v1836 = vunpack.c.h.b16 %v886
    %v1837 = vunpack.c.l.b16 %v887
    %v1838 = vunpack.c.h.b16 %v887
    %v1839 = vunpack.c.l.b16 %v888
    %v1840 = vunpack.c.h.b16 %v888
    %v1841 = vunpack.c.l.b16 %v889
    %v1842 = vunpack.c.h.b16 %v889
    %v1843 = vunpack.c.l.b16 %v890
    %v1844 = vunpack.c.h.b16 %v890
    %v1845 = vunpack.c.l.b16 %v891
    %v1846 = vunpack.c.h.b16 %v891
    %v1847 = vunpack.c.l.b16 %v892
    %v1848 = vunpack.c.h.b16 %v892
    %v1849 = vunpack.c.l.b16 %v893
    %v1850 = vunpack.c.h.b16 %v893
    %v1851 = vunpack.c.l.b16 %v894
    %v1852 = vunpack.c.h.b16 %v894
    %v1853 = vunpack.c.l.b16 %v895
    %v1854 = vunpack.c.h.b16 %v895
    %v1855 = vunpack.c.l.b16 %v896
    %v1856 = vunpack.c.h.b16 %v896
    %v1857 = vunpack.c.l.b16 %v897
    %v1858 = vunpack.c.h.b16 %v897
    %v1859 = vunpack.c.l.b16 %v898
    %v1860 = vunpack.c.h.b16 %v898
    %v1861 = vunpack.c.l.b16 %v899
    %v1862 = vunpack.c.h.b16 %v899
    %v1863 = vunpack.c.l.b16 %v900
    %v1864 = vunpack.c.h.b16 %v900
    %v1865 = vunpack.c.l.b16 %v901
    %v1866 = vunpack.c.h.b16 %v901
    %v1867 = vunpack.c.l.b16 %v902
    %v1868 = vunpack.c.h.b16 %v902
    %v1869 = vunpack.c.l.b16 %v903
    %v1870 = vunpack.c.h.b16 %v903
    %v1871 = vunpack.c.l.b16 %v904
    %v1872 = vunpack.c.h.b16 %v904
    %v1873 = vunpack.c.l.b16 %v905
    %v1874 = vunpack.c.h.b16 %v905
    %v1875 = vunpack.c.l.b16 %v906
    %v1876 = vunpack.c.h.b16 %v906
    %v1877 = vunpack.c.l.b16 %v907
    %v1878 = vunpack.c.h.b16 %v907
    %v1879 = vunpack.c.l.b16 %v908
    %v1880 = vunpack.c.h.b16 %v908
    %v1881 = vunpack.c.l.b16 %v909
    %v1882 = vunpack.c.h.b16 %v909
    %v1883 = vunpack.c.l.b16 %v910
    %v1884 = vunpack.c.h.b16 %v910
    %v1885 = vunpack.c.l.b16 %v911
    %v1886 = vunpack.c.h.b16 %v911
    %v1887 = vunpack.c.l.b16 %v912
    %v1888 = vunpack.c.h.b16 %v912
    %v1889 = vunpack.c.l.b16 %v913
    %v1890 = vunpack.c.h.b16 %v913
    %v1891 = vunpack.c.l.b16 %v914
    %v1892 = vunpack.c.h.b16 %v914
    %v1893 = vunpack.c.l.b16 %v915
    %v1894 = vunpack.c.h.b16 %v915
    %v1895 = vunpack.c.l.b16 %v916
    %v1896 = vunpack.c.h.b16 %v916
    %v1897 = vunpack.c.l.b16 %v917
    %v1898 = vunpack.c.h.b16 %v917
    %v1899 = vunpack.c.l.b16 %v918
    %v1900 = vunpack.c.h.b16 %v918
    %v1901 = vunpack.c.l.b16 %v919
    %v1902 = vunpack.c.h.b16 %v919
    %v1903 = vunpack.c.l.b16 %v920
    %v1904 = vunpack.c.h.b16 %v920
    %v1905 = vunpack.c.l.b16 %v921
    %v1906 = vunpack.c.h.b16 %v921
    %v1907 = vunpack.c.l.b16 %v922
    %v1908 = vunpack.c.h.b16 %v922
    %v1909 = vunpack.c.l.b16 %v923
    %v1910 = vunpack.c.h.b16 %v923
    %v1911 = vunpack.c.l.b16 %v924
    %v1912 = vunpack.c.h.b16 %v924
    %v1913 = vunpack.c.l.b16 %v925
    %v1914 = vunpack.c.h.b16 %v925
    %v1915 = vunpack.c.l.b16 %v926
    %v1916 = vunpack.c.h.b16 %v926
    %v1917 = vunpack.c.l.b16 %v927
    %v1918 = vunpack.c.h.b16 %v927
    %v1919 = vunpack.c.l.b16 %v928
    %v1920 = vunpack.c.h.b16 %v928
    %v1921 = vunpack.c.l.b16 %v929
    %v1922 = vunpack.c.h.b16 %v929
    %v1923 = vunpack.c.l.b16 %v930
    %v1924 = vunpack.c.h.b16 %v930
    %v1925 = vunpack.c.l.b16 %v931
    %v1926 = vunpack.c.h.b16 %v931
    %v1927 = vunpack.c.l.b16 %v932
    %v1928 = vunpack.c.h.b16 %v932
    %v1929 = vunpack.c.l.b16 %v933
    %v1930 = vunpack.c.h.b16 %v933
    %v1931 = vunpack.c.l.b16 %v934
    %v1932 = vunpack.c.h.b16 %v934
    %v1933 = vunpack.c.l.b16 %v935
    %v1934 = vunpack.c.h.b16 %v935
    %v1935 = vunpack.c.l.b16 %v936
    %v1936 = vunpack.c.h.b16 %v936
    %v1937 = vunpack.c.l.b16 %v937
    %v1938 = vunpack.c.h.b16 %v937
    %v1939 = vunpack.c.l.b16 %v938
    %v1940 = vunpack.c.h.b16 %v938
    %v1941 = vunpack.c.l.b16 %v939
    %v1942 = vunpack.c.h.b16 %v939
    %v1943 = vunpack.c.l.b16 %v940
    %v1944 = vunpack.c.h.b16 %v940
    %v1945 = vunpack.c.l.b16 %v941
    %v1946 = vunpack.c.h.b16 %v941
    %v1947 = vunpack.c.l.b16 %v942
    %v1948 = vunpack.c.h.b16 %v942
    %v1949 = vunpack.c.l.b16 %v943
    %v1950 = vunpack.c.h.b16 %v943
    %v1951 = vunpack.c.l.b16 %v944
    %v1952 = vunpack.c.h.b16 %v944
    %v1953 = vunpack.c.l.b16 %v945
    %v1954 = vunpack.c.h.b16 %v945
    %v1955 = vunpack.c.l.b16 %v946
    %v1956 = vunpack.c.h.b16 %v946
    %v1957 = vunpack.c.l.b16 %v947
    %v1958 = vunpack.c.h.b16 %v947
    %v1959 = vunpack.c.l.b16 %v948
    %v1960 = vunpack.c.h.b16 %v948
    %v1961 = vunpack.c.l.b16 %v949
    %v1962 = vunpack.c.h.b16 %v949
    %v1963 = vunpack.c.l.b16 %v950
    %v1964 = vunpack.c.h.b16 %v950
    %v1965 = vunpack.c.l.b16 %v951
    %v1966 = vunpack.c.h.b16 %v951
    %v1967 = vunpack.c.l.b16 %v952
    %v1968 = vunpack.c.h.b16 %v952
    %v1969 = vunpack.c.l.b16 %v953
    %v1970 = vunpack.c.h.b16 %v953
    %v1971 = vunpack.c.l.b16 %v954
    %v1972 = vunpack.c.h.b16 %v954
    %v1973 = vunpack.c.l.b16 %v955
    %v1974 = vunpack.c.h.b16 %v955
    %v1975 = vunpack.c.l.b16 %v956
    %v1976 = vunpack.c.h.b16 %v956
    %v1977 = vunpack.c.l.b16 %v957
    %v1978 = vunpack.c.h.b16 %v957
    %v1979 = vunpack.c.l.b16 %v958
    %v1980 = vunpack.c.h.b16 %v958
    %v1981 = vunpack.c.l.b16 %v959
    %v1982 = vunpack.c.h.b16 %v959
    %v1983 = vunpack.c.l.b16 %v960
    %v1984 = vunpack.c.h.b16 %v960
    %v1985 = vunpack.c.l.b16 %v961
    %v1986 = vunpack.c.h.b16 %v961
    %v1987 = vunpack.c.l.b16 %v962
    %v1988 = vunpack.c.h.b16 %v962
    %v1989 = vunpack.c.l.b16 %v963
    %v1990 = vunpack.c.h.b16 %v963
    %v1991 = vunpack.c.l.b16 %v964
    %v1992 = vunpack.c.h.b16 %v964
    %v1993 = vunpack.c.l.b16 %v965
    %v1994 = vunpack.c.h.b16 %v965
    %v1995 = vunpack.c.l.b16 %v966
    %v1996 = vunpack.c.h.b16 %v966
    %v1997 = vunpack.c.l.b16 %v967
    %v1998 = vunpack.c.h.b16 %v967
    %v1999 = vunpack.c.l.b16 %v968
    %v2000 = vunpack.c.h.b16 %v968
    %v2001 = vunpack.c.l.b16 %v969
    %v2002 = vunpack.c.h.b16 %v969
    %v2003 = vunpack.c.l.b16 %v970
    %v2004 = vunpack.c.h.b16 %v970
    %v2005 = vunpack.c.l.b16 %v971
    %v2006 = vunpack.c.h.b16 %v971
    %v2007 = vunpack.c.l.b16 %v972
    %v2008 = vunpack.c.h.b16 %v972
    %v2009 = vunpack.c.l.b16 %v973
    %v2010 = vunpack.c.h.b16 %v973
    %v2011 = vunpack.c.l.b16 %v974
    %v2012 = vunpack.c.h.b16 %v974
    %v2013 = vunpack.c.l.b16 %v975
    %v2014 = vunpack.c.h.b16 %v975
    %v2015 = vunpack.c.l.b16 %v976
    %v2016 = vunpack.c.h.b16 %v976
    %v2017 = vunpack.c.l.b16 %v977
    %v2018 = vunpack.c.h.b16 %v977
    %v2019 = vunpack.c.l.b16 %v978
    %v2020 = vunpack.c.h.b16 %v978
    %v2021 = vunpack.c.l.b16 %v979
    %v2022 = vunpack.c.h.b16 %v979
    %v2023 = vunpack.c.l.b16 %v980
    %v2024 = vunpack.c.h.b16 %v980
    %v2025 = vunpack.c.l.b16 %v981
    %v2026 = vunpack.c.h.b16 %v981
    %v2027 = vunpack.c.l.b16 %v982
    %v2028 = vunpack.c.h.b16 %v982
    %v2029 = vunpack.c.l.b16 %v983
    %v2030 = vunpack.c.h.b16 %v983
    %v2031 = vunpack.c.l.b16 %v984
    %v2032 = vunpack.c.h.b16 %v984
    %v2033 = vunpack.c.l.b16 %v985
    %v2034 = vunpack.c.h.b16 %v985
    %v2035 = vunpack.c.l.b16 %v986
    %v2036 = vunpack.c.h.b16 %v986
    %v2037 = vunpack.c.l.b16 %v987
    %v2038 = vunpack.c.h.b16 %v987
    %v2039 = vunpack.c.l.b16 %v988
    %v2040 = vunpack.c.h.b16 %v988
    %v2041 = vunpack.c.l.b16 %v989
    %v2042 = vunpack.c.h.b16 %v989
    %v2043 = vunpack.c.l.b16 %v990
    %v2044 = vunpack.c.h.b16 %v990
    %v2045 = vunpack.c.l.b16 %v991
    %v2046 = vunpack.c.h.b16 %v991
    %v2047 = vunpack.c.l.b16 %v992
    %v2048 = vunpack.c.h.b16 %v992
    %v2049 = vunpack.c.l.b16 %v993
    %v2050 = vunpack.c.h.b16 %v993
    %v2051 = vunpack.c.l.b16 %v994
    %v2052 = vunpack.c.h.b16 %v994
    %v2053 = vunpack.c.l.b16 %v995
    %v2054 = vunpack.c.h.b16 %v995
    %v2055 = vunpack.c.l.b16 %v996
    %v2056 = vunpack.c.h.b16 %v996
    %v2057 = vunpack.c.l.b16 %v997
    %v2058 = vunpack.c.h.b16 %v997
    %v2059 = vunpack.c.l.b16 %v998
    %v2060 = vunpack.c.h.b16 %v998
    %v2061 = vunpack.c.l.b16 %v999
    %v2062 = vunpack.c.h.b16 %v999
    %v2063 = vunpack.c.l.b16 %v1000
    %v2064 = vunpack.c.h.b16 %v1000
    %v2065 = vunpack.c.l.b16 %v1001
    %v2066 = vunpack.c.h.b16 %v1001
    %v2067 = vunpack.c.l.b16 %v1002
    %v2068 = vunpack.c.h.b16 %v1002
    %v2069 = vunpack.c.l.b16 %v1003
    %v2070 = vunpack.c.h.b16 %v1003
    %v2071 = vunpack.c.l.b16 %v1004
    %v2072 = vunpack.c.h.b16 %v1004
    %v2073 = vunpack.c.l.b16 %v1005
    %v2074 = vunpack.c.h.b16 %v1005
    %v2075 = vunpack.c.l.b16 %v1006
    %v2076 = vunpack.c.h.b16 %v1006
    %v2077 = vunpack.c.l.b16 %v1007
    %v2078 = vunpack.c.h.b16 %v1007
    %v2079 = vunpack.c.l.b16 %v1008
    %v2080 = vunpack.c.h.b16 %v1008
    %v2081 = vunpack.c.l.b16 %v1009
    %v2082 = vunpack.c.h.b16 %v1009
    %v2083 = vunpack.c.l.b16 %v1010
    %v2084 = vunpack.c.h.b16 %v1010
    %v2085 = vunpack.c.l.b16 %v1011
    %v2086 = vunpack.c.h.b16 %v1011
    %v2087 = vunpack.c.l.b16 %v1012
    %v2088 = vunpack.c.h.b16 %v1012
    %v2089 = vunpack.c.l.b16 %v1013
    %v2090 = vunpack.c.h.b16 %v1013
    %v2091 = vunpack.c.l.b16 %v1014
    %v2092 = vunpack.c.h.b16 %v1014
    %v2093 = vunpack.c.l.b16 %v1015
    %v2094 = vunpack.c.h.b16 %v1015
    %v2095 = vunpack.c.l.b16 %v1016
    %v2096 = vunpack.c.h.b16 %v1016
    %v2097 = vunpack.c.l.b16 %v1017
    %v2098 = vunpack.c.h.b16 %v1017
    %v2099 = vunpack.c.l.b16 %v1018
    %v2100 = vunpack.c.h.b16 %v1018
    %v2101 = vunpack.c.l.b16 %v1019
    %v2102 = vunpack.c.h.b16 %v1019
    %v2103 = vunpack.c.l.b16 %v1020
    %v2104 = vunpack.c.h.b16 %v1020
    %v2105 = vunpack.c.l.b16 %v1021
    %v2106 = vunpack.c.h.b16 %v1021
    %v2107 = vunpack.c.l.b16 %v1022
    %v2108 = vunpack.c.h.b16 %v1022
    %v2109 = vunpack.c.l.b16 %v1023
    %v2110 = vunpack.c.h.b16 %v1023
    %v2111 = vunpack.c.l.b16 %v1024
    %v2112 = vunpack.c.h.b16 %v1024
    %v2113 = vunpack.c.l.b16 %v1025
    %v2114 = vunpack.c.h.b16 %v1025
    %v2115 = vunpack.c.l.b16 %v1026
    %v2116 = vunpack.c.h.b16 %v1026
    %v2117 = vunpack.c.l.b16 %v1027
    %v2118 = vunpack.c.h.b16 %v1027
    %v2119 = vunpack.c.l.b16 %v1028
    %v2120 = vunpack.c.h.b16 %v1028
    %v2121 = vunpack.c.l.b16 %v1029
    %v2122 = vunpack.c.h.b16 %v1029
    %v2123 = vunpack.c.l.b16 %v1030
    %v2124 = vunpack.c.h.b16 %v1030
    %v2125 = vunpack.c.l.b16 %v1031
    %v2126 = vunpack.c.h.b16 %v1031
    %v2127 = vunpack.c.l.b16 %v1032
    %v2128 = vunpack.c.h.b16 %v1032
    %v2129 = vunpack.c.l.b16 %v1033
    %v2130 = vunpack.c.h.b16 %v1033
    %v2131 = vunpack.c.l.b16 %v1034
    %v2132 = vunpack.c.h.b16 %v1034
    %v2133 = vunpack.c.l.b16 %v1035
    %v2134 = vunpack.c.h.b16 %v1035
    %v2135 = vunpack.c.l.b16 %v1036
    %v2136 = vunpack.c.h.b16 %v1036
    %v2137 = vunpack.c.l.b16 %v1037
    %v2138 = vunpack.c.h.b16 %v1037
    %v2139 = vunpack.c.l.b16 %v1038
    %v2140 = vunpack.c.h.b16 %v1038
    %v2141 = vunpack.c.l.b16 %v1039
    %v2142 = vunpack.c.h.b16 %v1039
    %v2143 = vunpack.c.l.b16 %v1040
    %v2144 = vunpack.c.h.b16 %v1040
    %v2145 = vunpack.c.l.b16 %v1041
    %v2146 = vunpack.c.h.b16 %v1041
    %v2147 = vunpack.c.l.b16 %v1042
    %v2148 = vunpack.c.h.b16 %v1042
    %v2149 = vunpack.c.l.b16 %v1043
    %v2150 = vunpack.c.h.b16 %v1043
    %v2151 = vunpack.c.l.b16 %v1044
    %v2152 = vunpack.c.h.b16 %v1044
    %v2153 = vunpack.c.l.b16 %v1045
    %v2154 = vunpack.c.h.b16 %v1045
    %v2155 = vunpack.c.l.b16 %v1046
    %v2156 = vunpack.c.h.b16 %v1046
    %v2157 = vunpack.c.l.b16 %v1047
    %v2158 = vunpack.c.h.b16 %v1047
    %v2159 = vunpack.c.l.b16 %v1048
    %v2160 = vunpack.c.h.b16 %v1048
    %v2161 = vunpack.c.l.b16 %v1049
    %v2162 = vunpack.c.h.b16 %v1049
    %v2163 = vunpack.c.l.b16 %v1050
    %v2164 = vunpack.c.h.b16 %v1050
    %v2165 = vunpack.c.l.b16 %v1051
    %v2166 = vunpack.c.h.b16 %v1051
    %v2167 = vunpack.c.l.b16 %v1052
    %v2168 = vunpack.c.h.b16 %v1052
    %v2169 = vunpack.c.l.b16 %v1053
    %v2170 = vunpack.c.h.b16 %v1053
    %v2171 = vunpack.c.l.b16 %v1054
    %v2172 = vunpack.c.h.b16 %v1054
    %v2173 = vunpack.c.l.b16 %v1055
    %v2174 = vunpack.c.h.b16 %v1055
    %v2175 = vunpack.c.l.b16 %v1056
    %v2176 = vunpack.c.h.b16 %v1056
    %v2177 = vunpack.c.l.b16 %v1057
    %v2178 = vunpack.c.h.b16 %v1057
    %v2179 = vunpack.c.l.b16 %v1058
    %v2180 = vunpack.c.h.b16 %v1058
    %v2181 = vunpack.c.l.b16 %v1059
    %v2182 = vunpack.c.h.b16 %v1059
    %v2183 = vunpack.c.l.b16 %v1060
    %v2184 = vunpack.c.h.b16 %v1060
    %v2185 = vunpack.c.l.b16 %v1061
    %v2186 = vunpack.c.h.b16 %v1061
    %v2187 = vunpack.c.l.b16 %v1062
    %v2188 = vunpack.c.h.b16 %v1062
    %v2189 = vunpack.c.l.b16 %v1063
    %v2190 = vunpack.c.h.b16 %v1063
    %v2191 = vunpack.c.l.b16 %v1064
    %v2192 = vunpack.c.h.b16 %v1064
    %v2193 = vunpack.c.l.b16 %v1065
    %v2194 = vunpack.c.h.b16 %v1065
    %v2195 = vunpack.c.l.b16 %v1066
    %v2196 = vunpack.c.h.b16 %v1066
    %v2197 = vunpack.c.l.b16 %v1067
    %v2198 = vunpack.c.h.b16 %v1067
    %v2199 = vunpack.c.l.b16 %v1068
    %v2200 = vunpack.c.h.b16 %v1068
    %v2201 = vunpack.c.l.b16 %v1069
    %v2202 = vunpack.c.h.b16 %v1069
    %v2203 = vunpack.c.l.b16 %v1070
    %v2204 = vunpack.c.h.b16 %v1070
    %v2205 = vunpack.c.l.b16 %v1071
    %v2206 = vunpack.c.h.b16 %v1071
    %v2207 = vunpack.c.l.b16 %v1072
    %v2208 = vunpack.c.h.b16 %v1072
    %v2209 = vunpack.c.l.b16 %v1073
    %v2210 = vunpack.c.h.b16 %v1073
    %v2211 = vunpack.c.l.b16 %v1074
    %v2212 = vunpack.c.h.b16 %v1074
    %v2213 = vunpack.c.l.b16 %v1075
    %v2214 = vunpack.c.h.b16 %v1075
    %v2215 = vunpack.c.l.b16 %v1076
    %v2216 = vunpack.c.h.b16 %v1076
    %v2217 = vunpack.c.l.b16 %v1077
    %v2218 = vunpack.c.h.b16 %v1077
    %v2219 = vunpack.c.l.b16 %v1078
    %v2220 = vunpack.c.h.b16 %v1078
    %v2221 = vunpack.c.l.b16 %v1079
    %v2222 = vunpack.c.h.b16 %v1079
    %v2223 = vunpack.c.l.b16 %v1080
    %v2224 = vunpack.c.h.b16 %v1080
    %v2225 = vunpack.c.l.b16 %v1081
    %v2226 = vunpack.c.h.b16 %v1081
    %v2227 = vunpack.c.l.b16 %v1082
    %v2228 = vunpack.c.h.b16 %v1082
    %v2229 = vunpack.c.l.b16 %v1083
    %v2230 = vunpack.c.h.b16 %v1083
    %v2231 = vunpack.c.l.b16 %v1084
    %v2232 = vunpack.c.h.b16 %v1084
    %v2233 = vunpack.c.l.b16 %v1085
    %v2234 = vunpack.c.h.b16 %v1085
    %v2235 = vunpack.c.l.b16 %v1086
    %v2236 = vunpack.c.h.b16 %v1086
    %v2237 = vunpack.c.l.b16 %v1087
    %v2238 = vunpack.c.h.b16 %v1087
    %v2239 = vunpack.c.l.b16 %v1088
    %v2240 = vunpack.c.h.b16 %v1088
    %v2241 = vunpack.c.l.b16 %v1089
    %v2242 = vunpack.c.h.b16 %v1089
    %v2243 = vunpack.c.l.b16 %v1090
    %v2244 = vunpack.c.h.b16 %v1090
    %v2245 = vunpack.c.l.b16 %v1091
    %v2246 = vunpack.c.h.b16 %v1091
    %v2247 = vunpack.c.l.b16 %v1092
    %v2248 = vunpack.c.h.b16 %v1092
    %v2249 = vunpack.c.l.b16 %v1093
    %v2250 = vunpack.c.h.b16 %v1093
    %v2251 = vunpack.c.l.b16 %v1094
    %v2252 = vunpack.c.h.b16 %v1094
    %v2253 = vunpack.c.l.b16 %v1095
    %v2254 = vunpack.c.h.b16 %v1095
    %v2255 = vunpack.c.l.b16 %v1096
    %v2256 = vunpack.c.h.b16 %v1096
    %v2257 = vunpack.c.l.b16 %v1097
    %v2258 = vunpack.c.h.b16 %v1097
    %v2259 = vunpack.c.l.b16 %v1098
    %v2260 = vunpack.c.h.b16 %v1098
    %v2261 = vunpack.c.l.b16 %v1099
    %v2262 = vunpack.c.h.b16 %v1099
    %v2263 = vunpack.c.l.b16 %v1100
    %v2264 = vunpack.c.h.b16 %v1100
    %v2265 = vpack.c.b16 %v1499, %v1497
    %v2266 = vpack.c.b16 %v1500, %v1498
    %v2267 = vpack.c.b16 %v1503, %v1501
    %v2268 = vpack.c.b16 %v1504, %v1502
    %v2269 = vpack.c.b16 %v1507, %v1505
    %v2270 = vpack.c.b16 %v1508, %v1506
    %v2271 = vpack.c.b16 %v1511, %v1509
    %v2272 = vpack.c.b16 %v1512, %v1510
    %v2273 = vpack.c.b16 %v1515, %v1513
    %v2274 = vpack.c.b16 %v1516, %v1514
    %v2275 = vpack.c.b16 %v1519, %v1517
    %v2276 = vpack.c.b16 %v1520, %v1518
    %v2277 = vpack.c.b16 %v1523, %v1521
    %v2278 = vpack.c.b16 %v1524, %v1522
    %v2279 = vpack.c.b16 %v1527, %v1525
    %v2280 = vpack.c.b16 %v1528, %v1526
    %v2281 = vpack.c.b16 %v1531, %v1529
    %v2282 = vpack.c.b16 %v1532, %v1530
    %v2283 = vpack.c.b16 %v1535, %v1533
    %v2284 = vpack.c.b16 %v1536, %v1534
    %v2285 = vpack.c.b16 %v1539, %v1537
    %v2286 = vpack.c.b16 %v1540, %v1538
    %v2287 = vpack.c.b16 %v1543, %v1541
    %v2288 = vpack.c.b16 %v1544, %v1542
    %v2289 = vpack.c.b16 %v1547, %v1545
    %v2290 = vpack.c.b16 %v1548, %v1546
    %v2291 = vpack.c.b16 %v1551, %v1549
    %v2292 = vpack.c.b16 %v1552, %v1550
    %v2293 = vpack.c.b16 %v1555, %v1553
    %v2294 = vpack.c.b16 %v1556, %v1554
    %v2295 = vpack.c.b16 %v1559, %v1557
    %v2296 = vpack.c.b16 %v1560, %v1558
    %v2297 = vpack.c.b16 %v1563, %v1561
    %v2298 = vpack.c.b16 %v1564, %v1562
    %v2299 = vpack.c.b16 %v1567, %v1565
    %v2300 = vpack.c.b16 %v1568, %v1566
    %v2301 = vpack.c.b16 %v1571, %v1569
    %v2302 = vpack.c.b16 %v1572, %v1570
    %v2303 = vpack.c.b16 %v1575, %v1573
    %v2304 = vpack.c.b16 %v1576, %v1574
    %v2305 = vpack.c.b16 %v1579, %v1577
    %v2306 = vpack.c.b16 %v1580, %v1578
    %v2307 = vpack.c.b16 %v1583, %v1581
    %v2308 = vpack.c.b16 %v1584, %v1582
    %v2309 = vpack.c.b16 %v1587, %v1585
    %v2310 = vpack.c.b16 %v1588, %v1586
    %v2311 = vpack.c.b16 %v1591, %v1589
    %v2312 = vpack.c.b16 %v1592, %v1590
    %v2313 = vpack.c.b16 %v1595, %v1593
    %v2314 = vpack.c.b16 %v1596, %v1594
    %v2315 = vpack.c.b16 %v1599, %v1597
    %v2316 = vpack.c.b16 %v1600, %v1598
    %v2317 = vpack.c.b16 %v1603, %v1601
    %v2318 = vpack.c.b16 %v1604, %v1602
    %v2319 = vpack.c.b16 %v1607, %v1605
    %v2320 = vpack.c.b16 %v1608, %v1606
    %v2321 = vpack.c.b16 %v1611, %v1609
    %v2322 = vpack.c.b16 %v1612, %v1610
    %v2323 = vpack.c.b16 %v1615, %v1613
    %v2324 = vpack.c.b16 %v1616, %v1614
    %v2325 = vpack.c.b16 %v1619, %v1617
    %v2326 = vpack.c.b16 %v1620, %v1618
    %v2327 = vpack.c.b16 %v1623, %v1621
    %v2328 = vpack.c.b16 %v1624, %v1622
    %v2329 = vpack.c.b16 %v1627, %v1625
    %v2330 = vpack.c.b16 %v1628, %v1626
    %v2331 = vpack.c.b16 %v1631, %v1629
    %v2332 = vpack.c.b16 %v1632, %v1630
    %v2333 = vpack.c.b16 %v1635, %v1633
    %v2334 = vpack.c.b16 %v1636, %v1634
    %v2335 = vpack.c.b16 %v1639, %v1637
    %v2336 = vpack.c.b16 %v1640, %v1638
    %v2337 = vpack.c.b16 %v1643, %v1641
    %v2338 = vpack.c.b16 %v1644, %v1642
    %v2339 = vpack.c.b16 %v1647, %v1645
    %v2340 = vpack.c.b16 %v1648, %v1646
    %v2341 = vpack.c.b16 %v1651, %v1649
    %v2342 = vpack.c.b16 %v1652, %v1650
    %v2343 = vpack.c.b16 %v1655, %v1653
    %v2344 = vpack.c.b16 %v1656, %v1654
    %v2345 = vpack.c.b16 %v1659, %v1657
    %v2346 = vpack.c.b16 %v1660, %v1658
    %v2347 = vpack.c.b16 %v1663, %v1661
    %v2348 = vpack.c.b16 %v1664, %v1662
    %v2349 = vpack.c.b16 %v1667, %v1665
    %v2350 = vpack.c.b16 %v1668, %v1666
    %v2351 = vpack.c.b16 %v1671, %v1669
    %v2352 = vpack.c.b16 %v1672, %v1670
    %v2353 = vpack.c.b16 %v1675, %v1673
    %v2354 = vpack.c.b16 %v1676, %v1674
    %v2355 = vpack.c.b16 %v1679, %v1677
    %v2356 = vpack.c.b16 %v1680, %v1678
    %v2357 = vpack.c.b16 %v1683, %v1681
    %v2358 = vpack.c.b16 %v1684, %v1682
    %v2359 = vpack.c.b16 %v1687, %v1685
    %v2360 = vpack.c.b16 %v1688, %v1686
    %v2361 = vpack.c.b16 %v1691, %v1689
    %v2362 = vpack.c.b16 %v1692, %v1690
    %v2363 = vpack.c.b16 %v1695, %v1693
    %v2364 = vpack.c.b16 %v1696, %v1694
    %v2365 = vpack.c.b16 %v1699, %v1697
    %v2366 = vpack.c.b16 %v1700, %v1698
    %v2367 = vpack.c.b16 %v1703, %v1701
    %v2368 = vpack.c.b16 %v1704, %v1702
    %v2369 = vpack.c.b16 %v1707, %v1705
    %v2370 = vpack.c.b16 %v1708, %v1706
    %v2371 = vpack.c.b16 %v1711, %v1709
    %v2372 = vpack.c.b16 %v1712, %v1710
    %v2373 = vpack.c.b16 %v1715, %v1713
    %v2374 = vpack.c.b16 %v1716, %v1714
    %v2375 = vpack.c.b16 %v1719, %v1717
    %v2376 = vpack.c.b16 %v1720, %v1718
    %v2377 = vpack.c.b16 %v1723, %v1721
    %v2378 = vpack.c.b16 %v1724, %v1722
    %v2379 = vpack.c.b16 %v1727, %v1725
    %v2380 = vpack.c.b16 %v1728, %v1726
    %v2381 = vpack.c.b16 %v1731, %v1729
    %v2382 = vpack.c.b16 %v1732, %v1730
    %v2383 = vpack.c.b16 %v1735, %v1733
    %v2384 = vpack.c.b16 %v1736, %v1734
    %v2385 = vpack.c.b16 %v1739, %v1737
    %v2386 = vpack.c.b16 %v1740, %v1738
    %v2387 = vpack.c.b16 %v1743, %v1741
    %v2388 = vpack.c.b16 %v1744, %v1742
    %v2389 = vpack.c.b16 %v1747, %v1745
    %v2390 = vpack.c.b16 %v1748, %v1746
    %v2391 = vpack.c.b16 %v1751, %v1749
    %v2392 = vpack.c.b16 %v1752, %v1750
    %v2393 = vpack.c.b16 %v1755, %v1753
    %v2394 = vpack.c.b16 %v1756, %v1754
    %v2395 = vpack.c.b16 %v1759, %v1757
    %v2396 = vpack.c.b16 %v1760, %v1758
    %v2397 = vpack.c.b16 %v1763, %v1761
    %v2398 = vpack.c.b16 %v1764, %v1762
    %v2399 = vpack.c.b16 %v1767, %v1765
    %v2400 = vpack.c.b16 %v1768, %v1766
    %v2401 = vpack.c.b16 %v1771, %v1769
    %v2402 = vpack.c.b16 %v1772, %v1770
    %v2403 = vpack.c.b16 %v1775, %v1773
    %v2404 = vpack.c.b16 %v1776, %v1774
    %v2405 = vpack.c.b16 %v1779, %v1777
    %v2406 = vpack.c.b16 %v1780, %v1778
    %v2407 = vpack.c.b16 %v1783, %v1781
    %v2408 = vpack.c.b16 %v1784, %v1782
    %v2409 = vpack.c.b16 %v1787, %v1785
    %v2410 = vpack.c.b16 %v1788, %v1786
    %v2411 = vpack.c.b16 %v1791, %v1789
    %v2412 = vpack.c.b16 %v1792, %v1790
    %v2413 = vpack.c.b16 %v1795, %v1793
    %v2414 = vpack.c.b16 %v1796, %v1794
    %v2415 = vpack.c.b16 %v1799, %v1797
    %v2416 = vpack.c.b16 %v1800, %v1798
    %v2417 = vpack.c.b16 %v1803, %v1801
    %v2418 = vpack.c.b16 %v1804, %v1802
    %v2419 = vpack.c.b16 %v1807, %v1805
    %v2420 = vpack.c.b16 %v1808, %v1806
    %v2421 = vpack.c.b16 %v1811, %v1809
    %v2422 = vpack.c.b16 %v1812, %v1810
    %v2423 = vpack.c.b16 %v1815, %v1813
    %v2424 = vpack.c.b16 %v1816, %v1814
    %v2425 = vpack.c.b16 %v1819, %v1817
    %v2426 = vpack.c.b16 %v1820, %v1818
    %v2427 = vpack.c.b16 %v1823, %v1821
    %v2428 = vpack.c.b16 %v1824, %v1822
    %v2429 = vpack.c.b16 %v1827, %v1825
    %v2430 = vpack.c.b16 %v1828, %v1826
    %v2431 = vpack.c.b16 %v1831, %v1829
    %v2432 = vpack.c.b16 %v1832, %v1830
    %v2433 = vpack.c.b16 %v1835, %v1833
    %v2434 = vpack.c.b16 %v1836, %v1834
    %v2435 = vpack.c.b16 %v1839, %v1837
    %v2436 = vpack.c.b16 %v1840, %v1838
    %v2437 = vpack.c.b16 %v1843, %v1841
    %v2438 = vpack.c.b16 %v1844, %v1842
    %v2439 = vpack.c.b16 %v1847, %v1845
    %v2440 = vpack.c.b16 %v1848, %v1846
    %v2441 = vpack.c.b16 %v1851, %v1849
    %v2442 = vpack.c.b16 %v1852, %v1850
    %v2443 = vpack.c.b16 %v1855, %v1853
    %v2444 = vpack.c.b16 %v1856, %v1854
    %v2445 = vpack.c.b16 %v1859, %v1857
    %v2446 = vpack.c.b16 %v1860, %v1858
    %v2447 = vpack.c.b16 %v1863, %v1861
    %v2448 = vpack.c.b16 %v1864, %v1862
    %v2449 = vpack.c.b16 %v1867, %v1865
    %v2450 = vpack.c.b16 %v1868, %v1866
    %v2451 = vpack.c.b16 %v1871, %v1869
    %v2452 = vpack.c.b16 %v1872, %v1870
    %v2453 = vpack.c.b16 %v1875, %v1873
    %v2454 = vpack.c.b16 %v1876, %v1874
    %v2455 = vpack.c.b16 %v1879, %v1877
    %v2456 = vpack.c.b16 %v1880, %v1878
    %v2457 = vpack.c.b16 %v1883, %v1881
    %v2458 = vpack.c.b16 %v1884, %v1882
    %v2459 = vpack.c.b16 %v1887, %v1885
    %v2460 = vpack.c.b16 %v1888, %v1886
    %v2461 = vpack.c.b16 %v1891, %v1889
    %v2462 = vpack.c.b16 %v1892, %v1890
    %v2463 = vpack.c.b16 %v1895, %v1893
    %v2464 = vpack.c.b16 %v1896, %v1894
    %v2465 = vpack.c.b16 %v1899, %v1897
    %v2466 = vpack.c.b16 %v1900, %v1898
    %v2467 = vpack.c.b16 %v1903, %v1901
    %v2468 = vpack.c.b16 %v1904, %v1902
    %v2469 = vpack.c.b16 %v1907, %v1905
    %v2470 = vpack.c.b16 %v1908, %v1906
    %v2471 = vpack.c.b16 %v1911, %v1909
    %v2472 = vpack.c.b16 %v1912, %v1910
    %v2473 = vpack.c.b16 %v1915, %v1913
    %v2474 = vpack.c.b16 %v1916, %v1914
    %v2475 = vpack.c.b16 %v1919, %v1917
    %v2476 = vpack.c.b16 %v1920, %v1918
    %v2477 = vpack.c.b16 %v1923, %v1921
    %v2478 = vpack.c.b16 %v1924, %v1922
    %v2479 = vpack.c.b16 %v1927, %v1925
    %v2480 = vpack.c.b16 %v1928, %v1926
    %v2481 = vpack.c.b16 %v1931, %v1929
    %v2482 = vpack.c.b16 %v1932, %v1930
    %v2483 = vpack.c.b16 %v1935, %v1933
    %v2484 = vpack.c.b16 %v1936, %v1934
    %v2485 = vpack.c.b16 %v1939, %v1937
    %v2486 = vpack.c.b16 %v1940, %v1938
    %v2487 = vpack.c.b16 %v1943, %v1941
    %v2488 = vpack.c.b16 %v1944, %v1942
    %v2489 = vpack.c.b16 %v1947, %v1945
    %v2490 = vpack.c.b16 %v1948, %v1946
    %v2491 = vpack.c.b16 %v1951, %v1949
    %v2492 = vpack.c.b16 %v1952, %v1950
    %v2493 = vpack.c.b16 %v1955, %v1953
    %v2494 = vpack.c.b16 %v1956, %v1954
    %v2495 = vpack.c.b16 %v1959, %v1957
    %v2496 = vpack.c.b16 %v1960, %v1958
    %v2497 = vpack.c.b16 %v1963, %v1961
    %v2498 = vpack.c.b16 %v1964, %v1962
    %v2499 = vpack.c.b16 %v1967, %v1965
    %v2500 = vpack.c.b16 %v1968, %v1966
    %v2501 = vpack.c.b16 %v1971, %v1969
    %v2502 = vpack.c.b16 %v1972, %v1970
    %v2503 = vpack.c.b16 %v1975, %v1973
    %v2504 = vpack.c.b16 %v1976, %v1974
    %v2505 = vpack.c.b16 %v1979, %v1977
    %v2506 = vpack.c.b16 %v1980, %v1978
    %v2507 = vpack.c.b16 %v1983, %v1981
    %v2508 = vpack.c.b16 %v1984, %v1982
    %v2509 = vpack.c.b16 %v1987, %v1985
    %v2510 = vpack.c.b16 %v1988, %v1986
    %v2511 = vpack.c.b16 %v1991, %v1989
    %v2512 = vpack.c.b16 %v1992, %v1990
    %v2513 = vpack.c.b16 %v1995, %v1993
    %v2514 = vpack.c.b16 %v1996, %v1994
    %v2515 = vpack.c.b16 %v1999, %v1997
    %v2516 = vpack.c.b16 %v2000, %v1998
    %v2517 = vpack.c.b16 %v2003, %v2001
    %v2518 = vpack.c.b16 %v2004, %v2002
    %v2519 = vpack.c.b16 %v2007, %v2005
    %v2520 = vpack.c.b16 %v2008, %v2006
    %v2521 = vpack.c.b16 %v2011, %v2009
    %v2522 = vpack.c.b16 %v2012, %v2010
    %v2523 = vpack.c.b16 %v2015, %v2013
    %v2524 = vpack.c.b16 %v2016, %v2014
    %v2525 = vpack.c.b16 %v2019, %v2017
    %v2526 = vpack.c.b16 %v2020, %v2018
    %v2527 = vpack.c.b16 %v2023, %v2021
    %v2528 = vpack.c.b16 %v2024, %v2022
    %v2529 = vpack.c.b16 %v2027, %v2025
    %v2530 = vpack.c.b16 %v2028, %v2026
    %v2531 = vpack.c.b16 %v2031, %v2029
    %v2532 = vpack.c.b16 %v2032, %v2030
    %v2533 = vpack.c.b16 %v2035, %v2033
    %v2534 = vpack.c.b16 %v2036, %v2034
    %v2535 = vpack.c.b16 %v2039, %v2037
    %v2536 = vpack.c.b16 %v2040, %v2038
    %v2537 = vpack.c.b16 %v2043, %v2041
    %v2538 = vpack.c.b16 %v2044, %v2042
    %v2539 = vpack.c.b16 %v2047, %v2045
    %v2540 = vpack.c.b16 %v2048, %v2046
    %v2541 = vpack.c.b16 %v2051, %v2049
    %v2542 = vpack.c.b16 %v2052, %v2050
    %v2543 = vpack.c.b16 %v2055, %v2053
    %v2544 = vpack.c.b16 %v2056, %v2054
    %v2545 = vpack.c.b16 %v2059, %v2057
    %v2546 = vpack.c.b16 %v2060, %v2058
    %v2547 = vpack.c.b16 %v2063, %v2061
    %v2548 = vpack.c.b16 %v2064, %v2062
    %v2549 = vpack.c.b16 %v2067, %v2065
    %v2550 = vpack.c.b16 %v2068, %v2066
    %v2551 = vpack.c.b16 %v2071, %v2069
    %v2552 = vpack.c.b16 %v2072, %v2070
    %v2553 = vpack.c.b16 %v2075, %v2073
    %v2554 = vpack.c.b16 %v2076, %v2074
    %v2555 = vpack.c.b16 %v2079, %v2077
    %v2556 = vpack.c.b16 %v2080, %v2078
    %v2557 = vpack.c.b16 %v2083, %v2081
    %v2558 = vpack.c.b16 %v2084, %v2082
    %v2559 = vpack.c.b16 %v2087, %v2085
    %v2560 = vpack.c.b16 %v2088, %v2086
    %v2561 = vpack.c.b16 %v2091, %v2089
    %v2562 = vpack.c.b16 %v2092, %v2090
    %v2563 = vpack.c.b16 %v2095, %v2093
    %v2564 = vpack.c.b16 %v2096, %v2094
    %v2565 = vpack.c.b16 %v2099, %v2097
    %v2566 = vpack.c.b16 %v2100, %v2098
    %v2567 = vpack.c.b16 %v2103, %v2101
    %v2568 = vpack.c.b16 %v2104, %v2102
    %v2569 = vpack.c.b16 %v2107, %v2105
    %v2570 = vpack.c.b16 %v2108, %v2106
    %v2571 = vpack.c.b16 %v2111, %v2109
    %v2572 = vpack.c.b16 %v2112, %v2110
    %v2573 = vpack.c.b16 %v2115, %v2113
    %v2574 = vpack.c.b16 %v2116, %v2114
    %v2575 = vpack.c.b16 %v2119, %v2117
    %v2576 = vpack.c.b16 %v2120, %v2118
    %v2577 = vpack.c.b16 %v2123, %v2121
    %v2578 = vpack.c.b16 %v2124, %v2122
    %v2579 = vpack.c.b16 %v2127, %v2125
    %v2580 = vpack.c.b16 %v2128, %v2126
    %v2581 = vpack.c.b16 %v2131, %v2129
    %v2582 = vpack.c.b16 %v2132, %v2130
    %v2583 = vpack.c.b16 %v2135, %v2133
    %v2584 = vpack.c.b16 %v2136, %v2134
    %v2585 = vpack.c.b16 %v2139, %v2137
    %v2586 = vpack.c.b16 %v2140, %v2138
    %v2587 = vpack.c.b16 %v2143, %v2141
    %v2588 = vpack.c.b16 %v2144, %v2142
    %v2589 = vpack.c.b16 %v2147, %v2145
    %v2590 = vpack.c.b16 %v2148, %v2146
    %v2591 = vpack.c.b16 %v2151, %v2149
    %v2592 = vpack.c.b16 %v2152, %v2150
    %v2593 = vpack.c.b16 %v2155, %v2153
    %v2594 = vpack.c.b16 %v2156, %v2154
    %v2595 = vpack.c.b16 %v2159, %v2157
    %v2596 = vpack.c.b16 %v2160, %v2158
    %v2597 = vpack.c.b16 %v2163, %v2161
    %v2598 = vpack.c.b16 %v2164, %v2162
    %v2599 = vpack.c.b16 %v2167, %v2165
    %v2600 = vpack.c.b16 %v2168, %v2166
    %v2601 = vpack.c.b16 %v2171, %v2169
    %v2602 = vpack.c.b16 %v2172, %v2170
    %v2603 = vpack.c.b16 %v2175, %v2173
    %v2604 = vpack.c.b16 %v2176, %v2174
    %v2605 = vpack.c.b16 %v2179, %v2177
    %v2606 = vpack.c.b16 %v2180, %v2178
    %v2607 = vpack.c.b16 %v2183, %v2181
    %v2608 = vpack.c.b16 %v2184, %v2182
    %v2609 = vpack.c.b16 %v2187, %v2185
    %v2610 = vpack.c.b16 %v2188, %v2186
    %v2611 = vpack.c.b16 %v2191, %v2189
    %v2612 = vpack.c.b16 %v2192, %v2190
    %v2613 = vpack.c.b16 %v2195, %v2193
    %v2614 = vpack.c.b16 %v2196, %v2194
    %v2615 = vpack.c.b16 %v2199, %v2197
    %v2616 = vpack.c.b16 %v2200, %v2198
    %v2617 = vpack.c.b16 %v2203, %v2201
    %v2618 = vpack.c.b16 %v2204, %v2202
    %v2619 = vpack.c.b16 %v2207, %v2205
    %v2620 = vpack.c.b16 %v2208, %v2206
    %v2621 = vpack.c.b16 %v2211, %v2209
    %v2622 = vpack.c.b16 %v2212, %v2210
    %v2623 = vpack.c.b16 %v2215, %v2213
    %v2624 = vpack.c.b16 %v2216, %v2214
    %v2625 = vpack.c.b16 %v2219, %v2217
    %v2626 = vpack.c.b16 %v2220, %v2218
    %v2627 = vpack.c.b16 %v2223, %v2221
    %v2628 = vpack.c.b16 %v2224, %v2222
    %v2629 = vpack.c.b16 %v2227, %v2225
    %v2630 = vpack.c.b16 %v2228, %v2226
    %v2631 = vpack.c.b16 %v2231, %v2229
    %v2632 = vpack.c.b16 %v2232, %v2230
    %v2633 = vpack.c.b16 %v2235, %v2233
    %v2634 = vpack.c.b16 %v2236, %v2234
    %v2635 = vpack.c.b16 %v2239, %v2237
    %v2636 = vpack.c.b16 %v2240, %v2238
    %v2637 = vpack.c.b16 %v2243, %v2241
    %v2638 = vpack.c.b16 %v2244, %v2242
    %v2639 = vpack.c.b16 %v2247, %v2245
    %v2640 = vpack.c.b16 %v2248, %v2246
    %v2641 = vpack.c.b16 %v2251, %v2249
    %v2642 = vpack.c.b16 %v2252, %v2250
    %v2643 = vpack.c.b16 %v2255, %v2253
    %v2644 = vpack.c.b16 %v2256, %v2254
    %v2645 = vpack.c.b16 %v2259, %v2257
    %v2646 = vpack.c.b16 %v2260, %v2258
    %v2647 = vpack.c.b16 %v2263, %v2261
    %v2648 = vpack.c.b16 %v2264, %v2262
    %3033 = vmatprep.subr.bf16.mxu0 %v2280
    %3034 = vmatpush1.bf16.msra.mxu0 %v2279
    %3035 = vmatprep.subr.bf16.mxu0 %v2278
    %3036 = vmatpush1.bf16.msra.mxu0 %v2277
    %3037 = vmatprep.subr.bf16.mxu0 %v2276
    %3038 = vmatpush1.bf16.msra.mxu0 %v2275
    %3039 = vmatprep.subr.bf16.mxu0 %v2274
    %3040 = vmatpush1.bf16.msra.mxu0 %v2273
    %3041 = vmatprep.subr.bf16.mxu0 %v2272
    %3042 = vmatpush1.bf16.msra.mxu0 %v2271
    %3043 = vmatprep.subr.bf16.mxu0 %v2270
    %3044 = vmatpush1.bf16.msra.mxu0 %v2269
    %3045 = vmatprep.subr.bf16.mxu0 %v2268
    %3046 = vmatpush1.bf16.msra.mxu0 %v2267
    %3047 = vmatprep.subr.bf16.mxu0 %v2266
    %3048 = vmatpush1.bf16.msra.mxu0 %v2265
    %3049 = vmatprep.subr.bf16.mxu0 %v2296
    %3050 = vmatpush2.bf16.msra.mxu0 %v2295
    %3051 = vmatprep.subr.bf16.mxu0 %v2294
    %3052 = vmatpush2.bf16.msra.mxu0 %v2293
    %3053 = vmatprep.subr.bf16.mxu0 %v2292
    %3054 = vmatpush2.bf16.msra.mxu0 %v2291
    %3055 = vmatprep.subr.bf16.mxu0 %v2290
    %3056 = vmatpush2.bf16.msra.mxu0 %v2289
    %3057 = vmatprep.subr.bf16.mxu0 %v2288
    %3058 = vmatpush2.bf16.msra.mxu0 %v2287
    %3059 = vmatprep.subr.bf16.mxu0 %v2286
    %3060 = vmatpush2.bf16.msra.mxu0 %v2285
    %3061 = vmatprep.subr.bf16.mxu0 %v2284
    %3062 = vmatpush2.bf16.msra.mxu0 %v2283
    %3063 = vmatprep.subr.bf16.mxu0 %v2282
    %3064 = vmatpush2.bf16.msra.mxu0 %v2281
    %3065 = vmatprep.mubr.bf16.mxu0 %v694
    %3066 = vmatmul.mubr.bf16.gmra.mxu0 %v693
    %v3067 = vpop.f32.mrf.mxu0
    %v3068 = vadd.f32 %v1106, %v3067
    %v3069 = vpop.f32.mrf.mxu0
    %v3070 = vadd.f32 %v1110, %v3069
    %v3071 = vpop.f32.mrf.mxu0
    %v3072 = vadd.f32 %v1106, %v3071
    %v3073 = vpop.f32.mrf.mxu0
    %v3074 = vadd.f32 %v1110, %v3073
    %3075 = vdwg.mxu0
    %3076 = vmatprep.subr.bf16.mxu0 %v2312
    %3077 = vmatpush1.bf16.msra.mxu0 %v2311
    %3078 = vmatprep.subr.bf16.mxu0 %v2310
    %3079 = vmatpush1.bf16.msra.mxu0 %v2309
    %3080 = vmatprep.subr.bf16.mxu0 %v2308
    %3081 = vmatpush1.bf16.msra.mxu0 %v2307
    %3082 = vmatprep.subr.bf16.mxu0 %v2306
    %3083 = vmatpush1.bf16.msra.mxu0 %v2305
    %3084 = vmatprep.subr.bf16.mxu0 %v2304
    %3085 = vmatpush1.bf16.msra.mxu0 %v2303
    %3086 = vmatprep.subr.bf16.mxu0 %v2302
    %3087 = vmatpush1.bf16.msra.mxu0 %v2301
    %3088 = vmatprep.subr.bf16.mxu0 %v2300
    %3089 = vmatpush1.bf16.msra.mxu0 %v2299
    %3090 = vmatprep.subr.bf16.mxu0 %v2298
    %3091 = vmatpush1.bf16.msra.mxu0 %v2297
    %3092 = vmatprep.subr.bf16.mxu0 %v2328
    %3093 = vmatpush2.bf16.msra.mxu0 %v2327
    %3094 = vmatprep.subr.bf16.mxu0 %v2326
    %3095 = vmatpush2.bf16.msra.mxu0 %v2325
    %3096 = vmatprep.subr.bf16.mxu0 %v2324
    %3097 = vmatpush2.bf16.msra.mxu0 %v2323
    %3098 = vmatprep.subr.bf16.mxu0 %v2322
    %3099 = vmatpush2.bf16.msra.mxu0 %v2321
    %3100 = vmatprep.subr.bf16.mxu0 %v2320
    %3101 = vmatpush2.bf16.msra.mxu0 %v2319
    %3102 = vmatprep.subr.bf16.mxu0 %v2318
    %3103 = vmatpush2.bf16.msra.mxu0 %v2317
    %3104 = vmatprep.subr.bf16.mxu0 %v2316
    %3105 = vmatpush2.bf16.msra.mxu0 %v2315
    %3106 = vmatprep.subr.bf16.mxu0 %v2314
    %3107 = vmatpush2.bf16.msra.mxu0 %v2313
    %3108 = vmatprep.mubr.bf16.mxu0 %v696
    %3109 = vmatmul.mubr.bf16.gmra.mxu0 %v695
    %v3110 = vpop.f32.mrf.mxu0
    %v3111 = vadd.f32 %v3068, %v3110
    %v3112 = vpop.f32.mrf.mxu0
    %v3113 = vadd.f32 %v3070, %v3112
    %v3114 = vpop.f32.mrf.mxu0
    %v3115 = vadd.f32 %v3072, %v3114
    %v3116 = vpop.f32.mrf.mxu0
    %v3117 = vadd.f32 %v3074, %v3116
    %3118 = vdwg.mxu0
    %3119 = vmatprep.subr.bf16.mxu0 %v2344
    %3120 = vmatpush1.bf16.msra.mxu0 %v2343
    %3121 = vmatprep.subr.bf16.mxu0 %v2342
    %3122 = vmatpush1.bf16.msra.mxu0 %v2341
    %3123 = vmatprep.subr.bf16.mxu0 %v2340
    %3124 = vmatpush1.bf16.msra.mxu0 %v2339
    %3125 = vmatprep.subr.bf16.mxu0 %v2338
    %3126 = vmatpush1.bf16.msra.mxu0 %v2337
    %3127 = vmatprep.subr.bf16.mxu0 %v2336
    %3128 = vmatpush1.bf16.msra.mxu0 %v2335
    %3129 = vmatprep.subr.bf16.mxu0 %v2334
    %3130 = vmatpush1.bf16.msra.mxu0 %v2333
    %3131 = vmatprep.subr.bf16.mxu0 %v2332
    %3132 = vmatpush1.bf16.msra.mxu0 %v2331
    %3133 = vmatprep.subr.bf16.mxu0 %v2330
    %3134 = vmatpush1.bf16.msra.mxu0 %v2329
    %3135 = vmatprep.subr.bf16.mxu0 %v2360
    %3136 = vmatpush2.bf16.msra.mxu0 %v2359
    %3137 = vmatprep.subr.bf16.mxu0 %v2358
    %3138 = vmatpush2.bf16.msra.mxu0 %v2357
    %3139 = vmatprep.subr.bf16.mxu0 %v2356
    %3140 = vmatpush2.bf16.msra.mxu0 %v2355
    %3141 = vmatprep.subr.bf16.mxu0 %v2354
    %3142 = vmatpush2.bf16.msra.mxu0 %v2353
    %3143 = vmatprep.subr.bf16.mxu0 %v2352
    %3144 = vmatpush2.bf16.msra.mxu0 %v2351
    %3145 = vmatprep.subr.bf16.mxu0 %v2350
    %3146 = vmatpush2.bf16.msra.mxu0 %v2349
    %3147 = vmatprep.subr.bf16.mxu0 %v2348
    %3148 = vmatpush2.bf16.msra.mxu0 %v2347
    %3149 = vmatprep.subr.bf16.mxu0 %v2346
    %3150 = vmatpush2.bf16.msra.mxu0 %v2345
    %3151 = vmatprep.mubr.bf16.mxu0 %v698
    %3152 = vmatmul.mubr.bf16.gmra.mxu0 %v697
    %v3153 = vpop.f32.mrf.mxu0
    %v3154 = vadd.f32 %v3111, %v3153
    %v3155 = vpop.f32.mrf.mxu0
    %v3156 = vadd.f32 %v3113, %v3155
    %v3157 = vpop.f32.mrf.mxu0
    %v3158 = vadd.f32 %v3115, %v3157
    %v3159 = vpop.f32.mrf.mxu0
    %v3160 = vadd.f32 %v3117, %v3159
    %3161 = vdwg.mxu0
    %3162 = vmatprep.subr.bf16.mxu0 %v2376
    %3163 = vmatpush1.bf16.msra.mxu0 %v2375
    %3164 = vmatprep.subr.bf16.mxu0 %v2374
    %3165 = vmatpush1.bf16.msra.mxu0 %v2373
    %3166 = vmatprep.subr.bf16.mxu0 %v2372
    %3167 = vmatpush1.bf16.msra.mxu0 %v2371
    %3168 = vmatprep.subr.bf16.mxu0 %v2370
    %3169 = vmatpush1.bf16.msra.mxu0 %v2369
    %3170 = vmatprep.subr.bf16.mxu0 %v2368
    %3171 = vmatpush1.bf16.msra.mxu0 %v2367
    %3172 = vmatprep.subr.bf16.mxu0 %v2366
    %3173 = vmatpush1.bf16.msra.mxu0 %v2365
    %3174 = vmatprep.subr.bf16.mxu0 %v2364
    %3175 = vmatpush1.bf16.msra.mxu0 %v2363
    %3176 = vmatprep.subr.bf16.mxu0 %v2362
    %3177 = vmatpush1.bf16.msra.mxu0 %v2361
    %3178 = vmatprep.subr.bf16.mxu0 %v2392
    %3179 = vmatpush2.bf16.msra.mxu0 %v2391
    %3180 = vmatprep.subr.bf16.mxu0 %v2390
    %3181 = vmatpush2.bf16.msra.mxu0 %v2389
    %3182 = vmatprep.subr.bf16.mxu0 %v2388
    %3183 = vmatpush2.bf16.msra.mxu0 %v2387
    %3184 = vmatprep.subr.bf16.mxu0 %v2386
    %3185 = vmatpush2.bf16.msra.mxu0 %v2385
    %3186 = vmatprep.subr.bf16.mxu0 %v2384
    %3187 = vmatpush2.bf16.msra.mxu0 %v2383
    %3188 = vmatprep.subr.bf16.mxu0 %v2382
    %3189 = vmatpush2.bf16.msra.mxu0 %v2381
    %3190 = vmatprep.subr.bf16.mxu0 %v2380
    %3191 = vmatpush2.bf16.msra.mxu0 %v2379
    %3192 = vmatprep.subr.bf16.mxu0 %v2378
    %3193 = vmatpush2.bf16.msra.mxu0 %v2377
    %3194 = vmatprep.mubr.bf16.mxu0 %v700
    %3195 = vmatmul.mubr.bf16.gmra.mxu0 %v699
    %v3196 = vpop.f32.mrf.mxu0
    %v3197 = vadd.f32 %v3154, %v3196
    %v3198 = vpop.f32.mrf.mxu0
    %v3199 = vadd.f32 %v3156, %v3198
    %v3200 = vpop.f32.mrf.mxu0
    %v3201 = vadd.f32 %v3158, %v3200
    %v3202 = vpop.f32.mrf.mxu0
    %v3203 = vadd.f32 %v3160, %v3202
    %3204 = vdwg.mxu0
    %3205 = vmatprep.subr.bf16.mxu0 %v2408
    %3206 = vmatpush1.bf16.msra.mxu0 %v2407
    %3207 = vmatprep.subr.bf16.mxu0 %v2406
    %3208 = vmatpush1.bf16.msra.mxu0 %v2405
    %3209 = vmatprep.subr.bf16.mxu0 %v2404
    %3210 = vmatpush1.bf16.msra.mxu0 %v2403
    %3211 = vmatprep.subr.bf16.mxu0 %v2402
    %3212 = vmatpush1.bf16.msra.mxu0 %v2401
    %3213 = vmatprep.subr.bf16.mxu0 %v2400
    %3214 = vmatpush1.bf16.msra.mxu0 %v2399
    %3215 = vmatprep.subr.bf16.mxu0 %v2398
    %3216 = vmatpush1.bf16.msra.mxu0 %v2397
    %3217 = vmatprep.subr.bf16.mxu0 %v2396
    %3218 = vmatpush1.bf16.msra.mxu0 %v2395
    %3219 = vmatprep.subr.bf16.mxu0 %v2394
    %3220 = vmatpush1.bf16.msra.mxu0 %v2393
    %3221 = vmatprep.subr.bf16.mxu0 %v2424
    %3222 = vmatpush2.bf16.msra.mxu0 %v2423
    %3223 = vmatprep.subr.bf16.mxu0 %v2422
    %3224 = vmatpush2.bf16.msra.mxu0 %v2421
    %3225 = vmatprep.subr.bf16.mxu0 %v2420
    %3226 = vmatpush2.bf16.msra.mxu0 %v2419
    %3227 = vmatprep.subr.bf16.mxu0 %v2418
    %3228 = vmatpush2.bf16.msra.mxu0 %v2417
    %3229 = vmatprep.subr.bf16.mxu0 %v2416
    %3230 = vmatpush2.bf16.msra.mxu0 %v2415
    %3231 = vmatprep.subr.bf16.mxu0 %v2414
    %3232 = vmatpush2.bf16.msra.mxu0 %v2413
    %3233 = vmatprep.subr.bf16.mxu0 %v2412
    %3234 = vmatpush2.bf16.msra.mxu0 %v2411
    %3235 = vmatprep.subr.bf16.mxu0 %v2410
    %3236 = vmatpush2.bf16.msra.mxu0 %v2409
    %3237 = vmatprep.mubr.bf16.mxu0 %v702
    %3238 = vmatmul.mubr.bf16.gmra.mxu0 %v701
    %v3239 = vpop.f32.mrf.mxu0
    %v3240 = vadd.f32 %v3197, %v3239
    %v3241 = vpop.f32.mrf.mxu0
    %v3242 = vadd.f32 %v3199, %v3241
    %v3243 = vpop.f32.mrf.mxu0
    %v3244 = vadd.f32 %v3201, %v3243
    %v3245 = vpop.f32.mrf.mxu0
    %v3246 = vadd.f32 %v3203, %v3245
    %3247 = vdwg.mxu0
    %3248 = vmatprep.subr.bf16.mxu0 %v2440
    %3249 = vmatpush1.bf16.msra.mxu0 %v2439
    %3250 = vmatprep.subr.bf16.mxu0 %v2438
    %3251 = vmatpush1.bf16.msra.mxu0 %v2437
    %3252 = vmatprep.subr.bf16.mxu0 %v2436
    %3253 = vmatpush1.bf16.msra.mxu0 %v2435
    %3254 = vmatprep.subr.bf16.mxu0 %v2434
    %3255 = vmatpush1.bf16.msra.mxu0 %v2433
    %3256 = vmatprep.subr.bf16.mxu0 %v2432
    %3257 = vmatpush1.bf16.msra.mxu0 %v2431
    %3258 = vmatprep.subr.bf16.mxu0 %v2430
    %3259 = vmatpush1.bf16.msra.mxu0 %v2429
    %3260 = vmatprep.subr.bf16.mxu0 %v2428
    %3261 = vmatpush1.bf16.msra.mxu0 %v2427
    %3262 = vmatprep.subr.bf16.mxu0 %v2426
    %3263 = vmatpush1.bf16.msra.mxu0 %v2425
    %3264 = vmatprep.subr.bf16.mxu0 %v2456
    %3265 = vmatpush2.bf16.msra.mxu0 %v2455
    %3266 = vmatprep.subr.bf16.mxu0 %v2454
    %3267 = vmatpush2.bf16.msra.mxu0 %v2453
    %3268 = vmatprep.subr.bf16.mxu0 %v2452
    %3269 = vmatpush2.bf16.msra.mxu0 %v2451
    %3270 = vmatprep.subr.bf16.mxu0 %v2450
    %3271 = vmatpush2.bf16.msra.mxu0 %v2449
    %3272 = vmatprep.subr.bf16.mxu0 %v2448
    %3273 = vmatpush2.bf16.msra.mxu0 %v2447
    %3274 = vmatprep.subr.bf16.mxu0 %v2446
    %3275 = vmatpush2.bf16.msra.mxu0 %v2445
    %3276 = vmatprep.subr.bf16.mxu0 %v2444
    %3277 = vmatpush2.bf16.msra.mxu0 %v2443
    %3278 = vmatprep.subr.bf16.mxu0 %v2442
    %3279 = vmatpush2.bf16.msra.mxu0 %v2441
    %3280 = vmatprep.mubr.bf16.mxu0 %v704
    %3281 = vmatmul.mubr.bf16.gmra.mxu0 %v703
    %v3282 = vpop.f32.mrf.mxu0
    %v3283 = vadd.f32 %v3240, %v3282
    %v3284 = vpop.f32.mrf.mxu0
    %v3285 = vadd.f32 %v3242, %v3284
    %v3286 = vpop.f32.mrf.mxu0
    %v3287 = vadd.f32 %v3244, %v3286
    %v3288 = vpop.f32.mrf.mxu0
    %v3289 = vadd.f32 %v3246, %v3288
    %3290 = vdwg.mxu0
    %3291 = vmatprep.subr.bf16.mxu0 %v2472
    %3292 = vmatpush1.bf16.msra.mxu0 %v2471
    %3293 = vmatprep.subr.bf16.mxu0 %v2470
    %3294 = vmatpush1.bf16.msra.mxu0 %v2469
    %3295 = vmatprep.subr.bf16.mxu0 %v2468
    %3296 = vmatpush1.bf16.msra.mxu0 %v2467
    %3297 = vmatprep.subr.bf16.mxu0 %v2466
    %3298 = vmatpush1.bf16.msra.mxu0 %v2465
    %3299 = vmatprep.subr.bf16.mxu0 %v2464
    %3300 = vmatpush1.bf16.msra.mxu0 %v2463
    %3301 = vmatprep.subr.bf16.mxu0 %v2462
    %3302 = vmatpush1.bf16.msra.mxu0 %v2461
    %3303 = vmatprep.subr.bf16.mxu0 %v2460
    %3304 = vmatpush1.bf16.msra.mxu0 %v2459
    %3305 = vmatprep.subr.bf16.mxu0 %v2458
    %3306 = vmatpush1.bf16.msra.mxu0 %v2457
    %3307 = vmatprep.subr.bf16.mxu0 %v2488
    %3308 = vmatpush2.bf16.msra.mxu0 %v2487
    %3309 = vmatprep.subr.bf16.mxu0 %v2486
    %3310 = vmatpush2.bf16.msra.mxu0 %v2485
    %3311 = vmatprep.subr.bf16.mxu0 %v2484
    %3312 = vmatpush2.bf16.msra.mxu0 %v2483
    %3313 = vmatprep.subr.bf16.mxu0 %v2482
    %3314 = vmatpush2.bf16.msra.mxu0 %v2481
    %3315 = vmatprep.subr.bf16.mxu0 %v2480
    %3316 = vmatpush2.bf16.msra.mxu0 %v2479
    %3317 = vmatprep.subr.bf16.mxu0 %v2478
    %3318 = vmatpush2.bf16.msra.mxu0 %v2477
    %3319 = vmatprep.subr.bf16.mxu0 %v2476
    %3320 = vmatpush2.bf16.msra.mxu0 %v2475
    %3321 = vmatprep.subr.bf16.mxu0 %v2474
    %3322 = vmatpush2.bf16.msra.mxu0 %v2473
    %3323 = vmatprep.mubr.bf16.mxu0 %v706
    %3324 = vmatmul.mubr.bf16.gmra.mxu0 %v705
    %v3325 = vpop.f32.mrf.mxu0
    %v3326 = vadd.f32 %v3283, %v3325
    %v3327 = vpop.f32.mrf.mxu0
    %v3328 = vadd.f32 %v3285, %v3327
    %v3329 = vpop.f32.mrf.mxu0
    %v3330 = vadd.f32 %v3287, %v3329
    %v3331 = vpop.f32.mrf.mxu0
    %v3332 = vadd.f32 %v3289, %v3331
    %3333 = vdwg.mxu0
    %3334 = vmatprep.subr.bf16.mxu0 %v2504
    %3335 = vmatpush1.bf16.msra.mxu0 %v2503
    %3336 = vmatprep.subr.bf16.mxu0 %v2502
    %3337 = vmatpush1.bf16.msra.mxu0 %v2501
    %3338 = vmatprep.subr.bf16.mxu0 %v2500
    %3339 = vmatpush1.bf16.msra.mxu0 %v2499
    %3340 = vmatprep.subr.bf16.mxu0 %v2498
    %3341 = vmatpush1.bf16.msra.mxu0 %v2497
    %3342 = vmatprep.subr.bf16.mxu0 %v2496
    %3343 = vmatpush1.bf16.msra.mxu0 %v2495
    %3344 = vmatprep.subr.bf16.mxu0 %v2494
    %3345 = vmatpush1.bf16.msra.mxu0 %v2493
    %3346 = vmatprep.subr.bf16.mxu0 %v2492
    %3347 = vmatpush1.bf16.msra.mxu0 %v2491
    %3348 = vmatprep.subr.bf16.mxu0 %v2490
    %3349 = vmatpush1.bf16.msra.mxu0 %v2489
    %3350 = vmatprep.subr.bf16.mxu0 %v2520
    %3351 = vmatpush2.bf16.msra.mxu0 %v2519
    %3352 = vmatprep.subr.bf16.mxu0 %v2518
    %3353 = vmatpush2.bf16.msra.mxu0 %v2517
    %3354 = vmatprep.subr.bf16.mxu0 %v2516
    %3355 = vmatpush2.bf16.msra.mxu0 %v2515
    %3356 = vmatprep.subr.bf16.mxu0 %v2514
    %3357 = vmatpush2.bf16.msra.mxu0 %v2513
    %3358 = vmatprep.subr.bf16.mxu0 %v2512
    %3359 = vmatpush2.bf16.msra.mxu0 %v2511
    %3360 = vmatprep.subr.bf16.mxu0 %v2510
    %3361 = vmatpush2.bf16.msra.mxu0 %v2509
    %3362 = vmatprep.subr.bf16.mxu0 %v2508
    %3363 = vmatpush2.bf16.msra.mxu0 %v2507
    %3364 = vmatprep.subr.bf16.mxu0 %v2506
    %3365 = vmatpush2.bf16.msra.mxu0 %v2505
    %3366 = vmatprep.mubr.bf16.mxu0 %v708
    %3367 = vmatmul.mubr.bf16.gmra.mxu0 %v707
    %v3368 = vpop.f32.mrf.mxu0
    %v3369 = vadd.f32 %v3326, %v3368
    %v3370 = vpop.f32.mrf.mxu0
    %v3371 = vadd.f32 %v3328, %v3370
    %v3372 = vpop.f32.mrf.mxu0
    %v3373 = vadd.f32 %v3330, %v3372
    %v3374 = vpop.f32.mrf.mxu0
    %v3375 = vadd.f32 %v3332, %v3374
    %3376 = vdwg.mxu0
    %3377 = vmatprep.subr.bf16.mxu0 %v2536
    %3378 = vmatpush1.bf16.msra.mxu0 %v2535
    %3379 = vmatprep.subr.bf16.mxu0 %v2534
    %3380 = vmatpush1.bf16.msra.mxu0 %v2533
    %3381 = vmatprep.subr.bf16.mxu0 %v2532
    %3382 = vmatpush1.bf16.msra.mxu0 %v2531
    %3383 = vmatprep.subr.bf16.mxu0 %v2530
    %3384 = vmatpush1.bf16.msra.mxu0 %v2529
    %3385 = vmatprep.subr.bf16.mxu0 %v2528
    %3386 = vmatpush1.bf16.msra.mxu0 %v2527
    %3387 = vmatprep.subr.bf16.mxu0 %v2526
    %3388 = vmatpush1.bf16.msra.mxu0 %v2525
    %3389 = vmatprep.subr.bf16.mxu0 %v2524
    %3390 = vmatpush1.bf16.msra.mxu0 %v2523
    %3391 = vmatprep.subr.bf16.mxu0 %v2522
    %3392 = vmatpush1.bf16.msra.mxu0 %v2521
    %3393 = vmatprep.subr.bf16.mxu0 %v2552
    %3394 = vmatpush2.bf16.msra.mxu0 %v2551
    %3395 = vmatprep.subr.bf16.mxu0 %v2550
    %3396 = vmatpush2.bf16.msra.mxu0 %v2549
    %3397 = vmatprep.subr.bf16.mxu0 %v2548
    %3398 = vmatpush2.bf16.msra.mxu0 %v2547
    %3399 = vmatprep.subr.bf16.mxu0 %v2546
    %3400 = vmatpush2.bf16.msra.mxu0 %v2545
    %3401 = vmatprep.subr.bf16.mxu0 %v2544
    %3402 = vmatpush2.bf16.msra.mxu0 %v2543
    %3403 = vmatprep.subr.bf16.mxu0 %v2542
    %3404 = vmatpush2.bf16.msra.mxu0 %v2541
    %3405 = vmatprep.subr.bf16.mxu0 %v2540
    %3406 = vmatpush2.bf16.msra.mxu0 %v2539
    %3407 = vmatprep.subr.bf16.mxu0 %v2538
    %3408 = vmatpush2.bf16.msra.mxu0 %v2537
    %3409 = vmatprep.mubr.bf16.mxu0 %v710
    %3410 = vmatmul.mubr.bf16.gmra.mxu0 %v709
    %v3411 = vpop.f32.mrf.mxu0
    %v3412 = vadd.f32 %v3369, %v3411
    %v3413 = vpop.f32.mrf.mxu0
    %v3414 = vadd.f32 %v3371, %v3413
    %v3415 = vpop.f32.mrf.mxu0
    %v3416 = vadd.f32 %v3373, %v3415
    %v3417 = vpop.f32.mrf.mxu0
    %v3418 = vadd.f32 %v3375, %v3417
    %3419 = vdwg.mxu0
    %3420 = vmatprep.subr.bf16.mxu0 %v2568
    %3421 = vmatpush1.bf16.msra.mxu0 %v2567
    %3422 = vmatprep.subr.bf16.mxu0 %v2566
    %3423 = vmatpush1.bf16.msra.mxu0 %v2565
    %3424 = vmatprep.subr.bf16.mxu0 %v2564
    %3425 = vmatpush1.bf16.msra.mxu0 %v2563
    %3426 = vmatprep.subr.bf16.mxu0 %v2562
    %3427 = vmatpush1.bf16.msra.mxu0 %v2561
    %3428 = vmatprep.subr.bf16.mxu0 %v2560
    %3429 = vmatpush1.bf16.msra.mxu0 %v2559
    %3430 = vmatprep.subr.bf16.mxu0 %v2558
    %3431 = vmatpush1.bf16.msra.mxu0 %v2557
    %3432 = vmatprep.subr.bf16.mxu0 %v2556
    %3433 = vmatpush1.bf16.msra.mxu0 %v2555
    %3434 = vmatprep.subr.bf16.mxu0 %v2554
    %3435 = vmatpush1.bf16.msra.mxu0 %v2553
    %3436 = vmatprep.subr.bf16.mxu0 %v2584
    %3437 = vmatpush2.bf16.msra.mxu0 %v2583
    %3438 = vmatprep.subr.bf16.mxu0 %v2582
    %3439 = vmatpush2.bf16.msra.mxu0 %v2581
    %3440 = vmatprep.subr.bf16.mxu0 %v2580
    %3441 = vmatpush2.bf16.msra.mxu0 %v2579
    %3442 = vmatprep.subr.bf16.mxu0 %v2578
    %3443 = vmatpush2.bf16.msra.mxu0 %v2577
    %3444 = vmatprep.subr.bf16.mxu0 %v2576
    %3445 = vmatpush2.bf16.msra.mxu0 %v2575
    %3446 = vmatprep.subr.bf16.mxu0 %v2574
    %3447 = vmatpush2.bf16.msra.mxu0 %v2573
    %3448 = vmatprep.subr.bf16.mxu0 %v2572
    %3449 = vmatpush2.bf16.msra.mxu0 %v2571
    %3450 = vmatprep.subr.bf16.mxu0 %v2570
    %3451 = vmatpush2.bf16.msra.mxu0 %v2569
    %3452 = vmatprep.mubr.bf16.mxu0 %v712
    %3453 = vmatmul.mubr.bf16.gmra.mxu0 %v711
    %v3454 = vpop.f32.mrf.mxu0
    %v3455 = vadd.f32 %v3412, %v3454
    %v3456 = vpop.f32.mrf.mxu0
    %v3457 = vadd.f32 %v3414, %v3456
    %v3458 = vpop.f32.mrf.mxu0
    %v3459 = vadd.f32 %v3416, %v3458
    %v3460 = vpop.f32.mrf.mxu0
    %v3461 = vadd.f32 %v3418, %v3460
    %3462 = vdwg.mxu0
    %3463 = vmatprep.subr.bf16.mxu0 %v2600
    %3464 = vmatpush1.bf16.msra.mxu0 %v2599
    %3465 = vmatprep.subr.bf16.mxu0 %v2598
    %3466 = vmatpush1.bf16.msra.mxu0 %v2597
    %3467 = vmatprep.subr.bf16.mxu0 %v2596
    %3468 = vmatpush1.bf16.msra.mxu0 %v2595
    %3469 = vmatprep.subr.bf16.mxu0 %v2594
    %3470 = vmatpush1.bf16.msra.mxu0 %v2593
    %3471 = vmatprep.subr.bf16.mxu0 %v2592
    %3472 = vmatpush1.bf16.msra.mxu0 %v2591
    %3473 = vmatprep.subr.bf16.mxu0 %v2590
    %3474 = vmatpush1.bf16.msra.mxu0 %v2589
    %3475 = vmatprep.subr.bf16.mxu0 %v2588
    %3476 = vmatpush1.bf16.msra.mxu0 %v2587
    %3477 = vmatprep.subr.bf16.mxu0 %v2586
    %3478 = vmatpush1.bf16.msra.mxu0 %v2585
    %3479 = vmatprep.subr.bf16.mxu0 %v2616
    %3480 = vmatpush2.bf16.msra.mxu0 %v2615
    %3481 = vmatprep.subr.bf16.mxu0 %v2614
    %3482 = vmatpush2.bf16.msra.mxu0 %v2613
    %3483 = vmatprep.subr.bf16.mxu0 %v2612
    %3484 = vmatpush2.bf16.msra.mxu0 %v2611
    %3485 = vmatprep.subr.bf16.mxu0 %v2610
    %3486 = vmatpush2.bf16.msra.mxu0 %v2609
    %3487 = vmatprep.subr.bf16.mxu0 %v2608
    %3488 = vmatpush2.bf16.msra.mxu0 %v2607
    %3489 = vmatprep.subr.bf16.mxu0 %v2606
    %3490 = vmatpush2.bf16.msra.mxu0 %v2605
    %3491 = vmatprep.subr.bf16.mxu0 %v2604
    %3492 = vmatpush2.bf16.msra.mxu0 %v2603
    %3493 = vmatprep.subr.bf16.mxu0 %v2602
    %3494 = vmatpush2.bf16.msra.mxu0 %v2601
    %3495 = vmatprep.mubr.bf16.mxu0 %v714
    %3496 = vmatmul.mubr.bf16.gmra.mxu0 %v713
    %v3497 = vpop.f32.mrf.mxu0
    %v3498 = vadd.f32 %v3455, %v3497
    %v3499 = vpop.f32.mrf.mxu0
    %v3500 = vadd.f32 %v3457, %v3499
    %v3501 = vpop.f32.mrf.mxu0
    %v3502 = vadd.f32 %v3459, %v3501
    %v3503 = vpop.f32.mrf.mxu0
    %v3504 = vadd.f32 %v3461, %v3503
    %3505 = vdwg.mxu0
    %3506 = vmatprep.subr.bf16.mxu0 %v2632
    %3507 = vmatpush1.bf16.msra.mxu0 %v2631
    %3508 = vmatprep.subr.bf16.mxu0 %v2630
    %3509 = vmatpush1.bf16.msra.mxu0 %v2629
    %3510 = vmatprep.subr.bf16.mxu0 %v2628
    %3511 = vmatpush1.bf16.msra.mxu0 %v2627
    %3512 = vmatprep.subr.bf16.mxu0 %v2626
    %3513 = vmatpush1.bf16.msra.mxu0 %v2625
    %3514 = vmatprep.subr.bf16.mxu0 %v2624
    %3515 = vmatpush1.bf16.msra.mxu0 %v2623
    %3516 = vmatprep.subr.bf16.mxu0 %v2622
    %3517 = vmatpush1.bf16.msra.mxu0 %v2621
    %3518 = vmatprep.subr.bf16.mxu0 %v2620
    %3519 = vmatpush1.bf16.msra.mxu0 %v2619
    %3520 = vmatprep.subr.bf16.mxu0 %v2618
    %3521 = vmatpush1.bf16.msra.mxu0 %v2617
    %3522 = vmatprep.subr.bf16.mxu0 %v2648
    %3523 = vmatpush2.bf16.msra.mxu0 %v2647
    %3524 = vmatprep.subr.bf16.mxu0 %v2646
    %3525 = vmatpush2.bf16.msra.mxu0 %v2645
    %3526 = vmatprep.subr.bf16.mxu0 %v2644
    %3527 = vmatpush2.bf16.msra.mxu0 %v2643
    %3528 = vmatprep.subr.bf16.mxu0 %v2642
    %3529 = vmatpush2.bf16.msra.mxu0 %v2641
    %3530 = vmatprep.subr.bf16.mxu0 %v2640
    %3531 = vmatpush2.bf16.msra.mxu0 %v2639
    %3532 = vmatprep.subr.bf16.mxu0 %v2638
    %3533 = vmatpush2.bf16.msra.mxu0 %v2637
    %3534 = vmatprep.subr.bf16.mxu0 %v2636
    %3535 = vmatpush2.bf16.msra.mxu0 %v2635
    %3536 = vmatprep.subr.bf16.mxu0 %v2634
    %3537 = vmatpush2.bf16.msra.mxu0 %v2633
    %3538 = vmatprep.mubr.bf16.mxu0 %v716
    %3539 = vmatmul.mubr.bf16.gmra.mxu0 %v715
    %v3540 = vpop.f32.mrf.mxu0
    %v3541 = vadd.f32 %v3498, %v3540
    %v3542 = vpop.f32.mrf.mxu0
    %v3543 = vadd.f32 %v3500, %v3542
    %v3544 = vpop.f32.mrf.mxu0
    %v3545 = vadd.f32 %v3502, %v3544
    %v3546 = vpop.f32.mrf.mxu0
    %v3547 = vadd.f32 %v3504, %v3546
    %3548 = vdwg.mxu0
    %v3549 = vmax.f32 %v3541, 0.0
    %v3550 = vmax.f32 %v3543, 0.0
    %v3551 = vmax.f32 %v3545, 0.0
    %v3552 = vmax.f32 %v3547, 0.0
    %v3553 = vpack.c.bf16 %v3551, %v3549
    %v3554 = vpack.c.bf16 %v3552, %v3550
    %v3555 = vld [vmem:[#allocation8] sm:$0xf]
    %v3556 = vld [vmem:[#allocation8 + $0x4] sm:$0xf]
    %v3557 = vld [vmem:[#allocation8 + $0x8] sm:$0xf]
    %v3558 = vld [vmem:[#allocation8 + $0xc] sm:$0xf]
    %v3559 = vld [vmem:[#allocation8 + $0x10] sm:$0xf]
    %v3560 = vld [vmem:[#allocation8 + $0x14] sm:$0xf]
    %v3561 = vld [vmem:[#allocation8 + $0x18] sm:$0xf]
    %v3562 = vld [vmem:[#allocation8 + $0x1c] sm:$0xf]
    %v3563 = vld [vmem:[#allocation8 + $0x20] sm:$0xf]
    %v3564 = vld [vmem:[#allocation8 + $0x24] sm:$0xf]
    %v3565 = vld [vmem:[#allocation8 + $0x28] sm:$0xf]
    %v3566 = vld [vmem:[#allocation8 + $0x2c] sm:$0xf]
    %v3567 = vld [vmem:[#allocation8 + $0x30] sm:$0xf]
    %v3568 = vld [vmem:[#allocation8 + $0x34] sm:$0xf]
    %v3569 = vld [vmem:[#allocation8 + $0x38] sm:$0xf]
    %v3570 = vld [vmem:[#allocation8 + $0x3c] sm:$0xf]
    %v3571 = vld [vmem:[#allocation8 + $0x40] sm:$0xf]
    %v3572 = vld [vmem:[#allocation8 + $0x44] sm:$0xf]
    %v3573 = vld [vmem:[#allocation8 + $0x48] sm:$0xf]
    %v3574 = vld [vmem:[#allocation8 + $0x4c] sm:$0xf]
    %v3575 = vld [vmem:[#allocation8 + $0x50] sm:$0xf]
    %v3576 = vld [vmem:[#allocation8 + $0x54] sm:$0xf]
    %v3577 = vld [vmem:[#allocation8 + $0x58] sm:$0xf]
    %v3578 = vld [vmem:[#allocation8 + $0x5c] sm:$0xf]
    %v3579 = vld [vmem:[#allocation8 + $0x60] sm:$0xf]
    %v3580 = vld [vmem:[#allocation8 + $0x64] sm:$0xf]
    %v3581 = vld [vmem:[#allocation8 + $0x68] sm:$0xf]
    %v3582 = vld [vmem:[#allocation8 + $0x6c] sm:$0xf]
    %v3583 = vld [vmem:[#allocation8 + $0x70] sm:$0xf]
    %v3584 = vld [vmem:[#allocation8 + $0x74] sm:$0xf]
    %v3585 = vld [vmem:[#allocation8 + $0x78] sm:$0xf]
    %v3586 = vld [vmem:[#allocation8 + $0x7c] sm:$0xf]
    %v3587 = vld [vmem:[#allocation10] sm:$0x1]
    %v3589 = vlaneseq
    %v3590 = vshrl.u32 %v3589, 7
    %v3591 = vsub.s32 0, %v3590
    %v3592 = vrot.slane %v3587, %v3591
    %v3626 = vunpack.c.l.b16 %v3555
    %v3627 = vunpack.c.l.b16 %v3556
    %v3628 = vunpack.c.l.b16 %v3557
    %v3629 = vunpack.c.l.b16 %v3558
    %v3630 = vunpack.c.l.b16 %v3559
    %v3631 = vunpack.c.l.b16 %v3560
    %v3632 = vunpack.c.l.b16 %v3561
    %v3633 = vunpack.c.l.b16 %v3562
    %v3634 = vunpack.c.l.b16 %v3563
    %v3635 = vunpack.c.l.b16 %v3564
    %v3636 = vunpack.c.l.b16 %v3565
    %v3637 = vunpack.c.l.b16 %v3566
    %v3638 = vunpack.c.l.b16 %v3567
    %v3639 = vunpack.c.l.b16 %v3568
    %v3640 = vunpack.c.l.b16 %v3569
    %v3641 = vunpack.c.l.b16 %v3570
    %v3642 = vunpack.c.l.b16 %v3571
    %v3643 = vunpack.c.l.b16 %v3572
    %v3644 = vunpack.c.l.b16 %v3573
    %v3645 = vunpack.c.l.b16 %v3574
    %v3646 = vunpack.c.l.b16 %v3575
    %v3647 = vunpack.c.l.b16 %v3576
    %v3648 = vunpack.c.l.b16 %v3577
    %v3649 = vunpack.c.l.b16 %v3578
    %v3650 = vunpack.c.l.b16 %v3579
    %v3651 = vunpack.c.l.b16 %v3580
    %v3652 = vunpack.c.l.b16 %v3581
    %v3653 = vunpack.c.l.b16 %v3582
    %v3654 = vunpack.c.l.b16 %v3583
    %v3655 = vunpack.c.l.b16 %v3584
    %v3656 = vunpack.c.l.b16 %v3585
    %v3657 = vunpack.c.l.b16 %v3586
    %v3658 = vpack.c.b16 %v3627, %v3626
    %v3659 = vpack.c.b16 %v3629, %v3628
    %v3660 = vpack.c.b16 %v3631, %v3630
    %v3661 = vpack.c.b16 %v3633, %v3632
    %v3662 = vpack.c.b16 %v3635, %v3634
    %v3663 = vpack.c.b16 %v3637, %v3636
    %v3664 = vpack.c.b16 %v3639, %v3638
    %v3665 = vpack.c.b16 %v3641, %v3640
    %v3666 = vpack.c.b16 %v3643, %v3642
    %v3667 = vpack.c.b16 %v3645, %v3644
    %v3668 = vpack.c.b16 %v3647, %v3646
    %v3669 = vpack.c.b16 %v3649, %v3648
    %v3670 = vpack.c.b16 %v3651, %v3650
    %v3671 = vpack.c.b16 %v3653, %v3652
    %v3672 = vpack.c.b16 %v3655, %v3654
    %v3673 = vpack.c.b16 %v3657, %v3656
    %3690 = vmatprep.subr.bf16.mxu0 0
    %3691 = vmatpush1.bf16.msra.mxu0 %v3665
    %3692 = vmatprep.subr.bf16.mxu0 0
    %3693 = vmatpush1.bf16.msra.mxu0 %v3664
    %3694 = vmatprep.subr.bf16.mxu0 0
    %3695 = vmatpush1.bf16.msra.mxu0 %v3663
    %3696 = vmatprep.subr.bf16.mxu0 0
    %3697 = vmatpush1.bf16.msra.mxu0 %v3662
    %3698 = vmatprep.subr.bf16.mxu0 0
    %3699 = vmatpush1.bf16.msra.mxu0 %v3661
    %3700 = vmatprep.subr.bf16.mxu0 0
    %3701 = vmatpush1.bf16.msra.mxu0 %v3660
    %3702 = vmatprep.subr.bf16.mxu0 0
    %3703 = vmatpush1.bf16.msra.mxu0 %v3659
    %3704 = vmatprep.subr.bf16.mxu0 0
    %3705 = vmatpush1.bf16.msra.mxu0 %v3658
    %3706 = vmatprep.subr.bf16.mxu0 0
    %3707 = vmatpush2.bf16.msra.mxu0 %v3673
    %3708 = vmatprep.subr.bf16.mxu0 0
    %3709 = vmatpush2.bf16.msra.mxu0 %v3672
    %3710 = vmatprep.subr.bf16.mxu0 0
    %3711 = vmatpush2.bf16.msra.mxu0 %v3671
    %3712 = vmatprep.subr.bf16.mxu0 0
    %3713 = vmatpush2.bf16.msra.mxu0 %v3670
    %3714 = vmatprep.subr.bf16.mxu0 0
    %3715 = vmatpush2.bf16.msra.mxu0 %v3669
    %3716 = vmatprep.subr.bf16.mxu0 0
    %3717 = vmatpush2.bf16.msra.mxu0 %v3668
    %3718 = vmatprep.subr.bf16.mxu0 0
    %3719 = vmatpush2.bf16.msra.mxu0 %v3667
    %3720 = vmatprep.subr.bf16.mxu0 0
    %3721 = vmatpush2.bf16.msra.mxu0 %v3666
    %3722 = vmatprep.mubr.bf16.mxu0 %v3554
    %3723 = vmatmul.mubr.bf16.gmra.mxu0 %v3553
    %v3724 = vpop.f32.mrf.mxu0
    %v3725 = vadd.f32 %v3592, %v3724
    %v3726 = vpop.f32.mrf.mxu0
    %v3727 = vpop.f32.mrf.mxu0
    %v3728 = vadd.f32 %v3592, %v3727
    %v3729 = vpop.f32.mrf.mxu0
    %3730 = vdwg.mxu0
    %v3731 = vmax.f32 %v3725, 0.0
    %v3732 = vmax.f32 %v3728, 0.0
    %v3733 = vpack.c.bf16 %v3732, %v3731
    %v3734 = vld [vmem:[#allocation11] sm:$0xf]
    %v3735 = vld [vmem:[#allocation11 + $0x4] sm:$0xf]
    %v3736 = vld [vmem:[#allocation11 + $0x8] sm:$0xf]
    %v3737 = vld [vmem:[#allocation11 + $0xc] sm:$0xf]
    %v3738 = vld [vmem:[#allocation11 + $0x10] sm:$0xf]
    %v3739 = vld [vmem:[#allocation11 + $0x14] sm:$0xf]
    %v3740 = vld [vmem:[#allocation11 + $0x18] sm:$0xf]
    %v3741 = vld [vmem:[#allocation11 + $0x1c] sm:$0xf]
    %v3742 = vld [vmem:[#allocation11 + $0x20] sm:$0xf]
    %v3743 = vld [vmem:[#allocation11 + $0x24] sm:$0xf]
    %v3744 = vld [vmem:[#allocation11 + $0x28] sm:$0xf]
    %v3745 = vld [vmem:[#allocation11 + $0x2c] sm:$0xf]
    %v3746 = vld [vmem:[#allocation11 + $0x30] sm:$0xf]
    %v3747 = vld [vmem:[#allocation11 + $0x34] sm:$0xf]
    %v3748 = vld [vmem:[#allocation11 + $0x38] sm:$0xf]
    %v3749 = vld [vmem:[#allocation11 + $0x3c] sm:$0xf]
    %v3750 = vld [vmem:[#allocation13] sm:$0x1]
    %v3752 = vlaneseq
    %v3753 = vshrl.u32 %v3752, 7
    %v3754 = vsub.s32 0, %v3753
    %v3755 = vrot.slane %v3750, %v3754
    %v3773 = vunpack.c.l.b16 %v3734
    %v3774 = vunpack.c.l.b16 %v3735
    %v3775 = vunpack.c.l.b16 %v3736
    %v3776 = vunpack.c.l.b16 %v3737
    %v3777 = vunpack.c.l.b16 %v3738
    %v3778 = vunpack.c.l.b16 %v3739
    %v3779 = vunpack.c.l.b16 %v3740
    %v3780 = vunpack.c.l.b16 %v3741
    %v3781 = vunpack.c.l.b16 %v3742
    %v3782 = vunpack.c.l.b16 %v3743
    %v3783 = vunpack.c.l.b16 %v3744
    %v3784 = vunpack.c.l.b16 %v3745
    %v3785 = vunpack.c.l.b16 %v3746
    %v3786 = vunpack.c.l.b16 %v3747
    %v3787 = vunpack.c.l.b16 %v3748
    %v3788 = vunpack.c.l.b16 %v3749
    %v3789 = vpack.c.b16 %v3774, %v3773
    %v3790 = vpack.c.b16 %v3776, %v3775
    %v3791 = vpack.c.b16 %v3778, %v3777
    %v3792 = vpack.c.b16 %v3780, %v3779
    %v3793 = vpack.c.b16 %v3782, %v3781
    %v3794 = vpack.c.b16 %v3784, %v3783
    %v3795 = vpack.c.b16 %v3786, %v3785
    %v3796 = vpack.c.b16 %v3788, %v3787
    %3805 = vmatprep.subr.bf16.mxu0 0
    %3806 = vmatpush1.bf16.msra.mxu0 %v3796
    %3807 = vmatprep.subr.bf16.mxu0 0
    %3808 = vmatpush1.bf16.msra.mxu0 %v3795
    %3809 = vmatprep.subr.bf16.mxu0 0
    %3810 = vmatpush1.bf16.msra.mxu0 %v3794
    %3811 = vmatprep.subr.bf16.mxu0 0
    %3812 = vmatpush1.bf16.msra.mxu0 %v3793
    %3813 = vmatprep.subr.bf16.mxu0 0
    %3814 = vmatpush1.bf16.msra.mxu0 %v3792
    %3815 = vmatprep.subr.bf16.mxu0 0
    %3816 = vmatpush1.bf16.msra.mxu0 %v3791
    %3817 = vmatprep.subr.bf16.mxu0 0
    %3818 = vmatpush1.bf16.msra.mxu0 %v3790
    %3819 = vmatprep.subr.bf16.mxu0 0
    %3820 = vmatpush1.bf16.msra.mxu0 %v3789
    %3821 = vmatprep.subr.bf16.mxu0 0
    %3822 = vmatpush2.bf16.msra.mxu0 0
    %3823 = vmatprep.subr.bf16.mxu0 0
    %3824 = vmatpush2.bf16.msra.mxu0 0
    %3825 = vmatprep.subr.bf16.mxu0 0
    %3826 = vmatpush2.bf16.msra.mxu0 0
    %3827 = vmatprep.subr.bf16.mxu0 0
    %3828 = vmatpush2.bf16.msra.mxu0 0
    %3829 = vmatprep.subr.bf16.mxu0 0
    %3830 = vmatpush2.bf16.msra.mxu0 0
    %3831 = vmatprep.subr.bf16.mxu0 0
    %3832 = vmatpush2.bf16.msra.mxu0 0
    %3833 = vmatprep.subr.bf16.mxu0 0
    %3834 = vmatpush2.bf16.msra.mxu0 0
    %3835 = vmatprep.subr.bf16.mxu0 0
    %3836 = vmatpush2.bf16.msra.mxu0 0
    %3837 = vmatprep.mubr.bf16.mxu0 0
    %3838 = vmatmul.mubr.bf16.gmra.mxu0 %v3733
    %v3839 = vpop.f32.mrf.mxu0
    %v3840 = vadd.f32 %v3755, %v3839
    %v3841 = vpop.f32.mrf.mxu0
    %v3842 = vpop.f32.mrf.mxu0
    %v3843 = vadd.f32 %v3755, %v3842
    %v3844 = vpop.f32.mrf.mxu0
    %3845 = vdwg.mxu0
    %v3846 = vpack.c.bf16 %v3843, %v3840
    %v3848 = vcombine.high %v3846, %v3846
    %v3850 = vunpack.c.l.s4 1966171168
    %v3851 = vunpack.c.0.s8 %v3850
    %v3852 = vlaneseq
    %v3853 = vshrl.u32 %v3852, 7
    %v3854 = vsub.s32 %v3851, %v3853
    %v3855 = vrot.slane %v3846, %v3854
    %v3857 = vunpack.c.l.s4 1966171168
    %v3858 = vunpack.c.0.s8 %v3857
    %v3859 = vlaneseq
    %v3860 = vshrl.u32 %v3859, 7
    %v3861 = vsub.s32 %v3858, %v3860
    %v3862 = vrot.slane %v3848, %v3861
    %v3863 = vcombine.high %v3855, %v3855
    %v3864 = vcombine.high %v3862, %v3862
    %v3866 = vunpack.c.l.s4 1966171168
    %v3867 = vunpack.c.0.s8 %v3866
    %v3868 = vlaneseq
    %v3869 = vshrl.u32 %v3868, 7
    %v3870 = vsub.s32 %v3867, %v3869
    %v3871 = vrot.slane %v3855, %v3870
    %v3873 = vunpack.c.l.s4 1966171168
    %v3874 = vunpack.c.0.s8 %v3873
    %v3875 = vlaneseq
    %v3876 = vshrl.u32 %v3875, 7
    %v3877 = vsub.s32 %v3874, %v3876
    %v3878 = vrot.slane %v3862, %v3877
    %v3880 = vunpack.c.l.s4 1966171168
    %v3881 = vunpack.c.0.s8 %v3880
    %v3882 = vlaneseq
    %v3883 = vshrl.u32 %v3882, 7
    %v3884 = vsub.s32 %v3881, %v3883
    %v3885 = vrot.slane %v3863, %v3884
    %v3887 = vunpack.c.l.s4 1966171168
    %v3888 = vunpack.c.0.s8 %v3887
    %v3889 = vlaneseq
    %v3890 = vshrl.u32 %v3889, 7
    %v3891 = vsub.s32 %v3888, %v3890
    %v3892 = vrot.slane %v3864, %v3891
    %v3893 = vcombine.high %v3871, %v3871
    %v3894 = vcombine.high %v3878, %v3878
    %v3895 = vcombine.high %v3885, %v3885
    %v3896 = vcombine.high %v3892, %v3892
    %3905 = vst [vmem:[#allocation14] sm:$0x1] %v3871
    %3906 = vst [vmem:[#allocation14 + $0x1] sm:$0x1] %v3885
    %3907 = vst [vmem:[#allocation14 + $0x2] sm:$0x1] %v3893
    %3908 = vst [vmem:[#allocation14 + $0x3] sm:$0x1] %v3895
    %3909 = vst [vmem:[#allocation14 + $0x4] sm:$0x1] %v3878
    %3910 = vst [vmem:[#allocation14 + $0x5] sm:$0x1] %v3892
    %3911 = vst [vmem:[#allocation14 + $0x6] sm:$0x1] %v3894
    %3912 = vst [vmem:[#allocation14 + $0x7] sm:$0x1] %v3896
    // Predicated region
    $region58: #{tpu_custom_call.1} parent=1 // pred_check
      _
    $region59: #{tpu_custom_call.1} parent=1 // pred_check_branch
      %3914 = sbr.rel (0) target = $region61
    $region60: #{tpu_custom_call.1} parent=1 // pred_region
      %s3916 = ssub.s32 128, 16
      %3917 = vsyncadd [#allocation4], %s3916
      %s3918 = sshll.u32 [#allocation14], 4
      %s3919 = int_to_ptr.vmem [resolvable:$true] %s3918
      %3924 = dma.vmem_to_hbm [thread:$0]  %s3919, 16, %s7, [#allocation4], 16, 16, 1
    $region61: #{tpu_custom_call.1} parent=1 // pred_fallthru
      _
    // Predicated region
    $region62: #{tpu_custom_call.1} parent=1 // pred_check
      _
    $region63: #{tpu_custom_call.1} parent=1 // pred_check_branch
      %3926 = sbr.rel (0) target = $region65
    $region64: #{tpu_custom_call.1} parent=1 // pred_region
      %3927 = dma.done [#allocation4], 128
    $region65: #{tpu_custom_call.1} parent=1 // pred_fallthru
      _
    %3928 = vsyncpa [#allocation3], 1
    %3929 = vsyncpa [#allocation6], 1
    %3930 = vsyncpa [#allocation9], 1
    %3931 = vsyncpa [#allocation12], 1
    %3932 = vsyncpa [#allocation4], 1

</llo_original>
